<compile_context>
chip_gen: v5e
topology: v5e:2x2
jax: 0.10.0
libtpu: 0.0.40
codegen_flags: <defaults>
</compile_context>

<pallas_src>
import jax
import jax.numpy as jnp
from jax import lax
from jax.experimental import pallas as pl
from jax.experimental.pallas import tpu as pltpu


def se_preact_block_kernel(x_ref, bn1s_ref, bn1b_ref, w1_ref,
                           bn2s_ref, bn2b_ref, w2_ref,
                           wsc_ref, wse_ref, wfc_ref,
                           out_ref, pad1_ref, pad2_ref):
    H, W, Cin = x_ref.shape
    Cp = out_ref.shape[-1]
    Hp, Wp = H + 2, W + 2
    h1, h2 = H // 3, (2 * H) // 3

    # Zero only the four 1-pixel halo strips of the padded scratch buffers
    # (the interior is fully rewritten each grid step; re-zero every step so
    # per-core scratch is always valid under megacore sharding).
    def zero_halo(ref, c):
        zr = jnp.zeros((1, Wp, c), ref.dtype)
        ref[0:1, :, :] = zr
        ref[Hp - 1:Hp, :, :] = zr
        zc = jnp.zeros((Hp, 1, c), ref.dtype)
        ref[:, 0:1, :] = zc
        ref[:, Wp - 1:Wp, :] = zc

    zero_halo(pad1_ref, Cin)
    zero_halo(pad2_ref, Cp)

    # ---- relu(bn1(x))  (inference-mode BN folded into scale/shift), f32 ----
    x = x_ref[...]
    o1 = jnp.maximum(x * bn1s_ref[...].reshape(1, 1, Cin)
                     + bn1b_ref[...].reshape(1, 1, Cin), 0.0)
    o1_bf = o1.astype(jnp.bfloat16)

    # ---- shortcut: 1x1 conv (stride 1) on relu(bn1(x)) ----
    sc = jnp.dot(o1_bf.reshape(H * W, Cin), wsc_ref[...],
                 preferred_element_type=jnp.float32)               # (H*W, Cp)

    # ---- conv1: 3x3 / stride 1 / pad 1 as ONE im2col matmul (K = 9*Cin) ----
    pad1_ref[1:H + 1, 1:W + 1, :] = o1_bf
    patches1 = jnp.concatenate(
        [pad1_ref[dh:dh + H, dw:dw + W, :]
         for dh in range(3) for dw in range(3)], axis=-1)          # (H, W, 9*Cin)
    c1 = jnp.dot(patches1.reshape(H * W, 9 * Cin), w1_ref[...],
                 preferred_element_type=jnp.float32)               # (H*W, Cp)

    # ---- relu(bn2(conv1)) ----
    o2 = jnp.maximum(c1 * bn2s_ref[...].reshape(1, Cp)
                     + bn2b_ref[...].reshape(1, Cp), 0.0)
    pad2_ref[1:H + 1, 1:W + 1, :] = o2.astype(jnp.bfloat16).reshape(H, W, Cp)

    # ---- conv2: 3x3 / stride 1 / pad 1 as ONE im2col matmul (K = 9*Cp) ----
    patches2 = jnp.concatenate(
        [pad2_ref[dh:dh + H, dw:dw + W, :]
         for dh in range(3) for dw in range(3)], axis=-1)          # (H, W, 9*Cp)
    c2 = jnp.dot(patches2.reshape(H * W, 9 * Cp), w2_ref[...],
                 preferred_element_type=jnp.float32).reshape(H, W, Cp)
    sc = sc.reshape(H, W, Cp)

    # ---- SKFusion: mean over each H-third, summed ----
    up_y = jnp.sum(c2[:h1].reshape(h1 * W, Cp), axis=0,
                   keepdims=True) * (1.0 / (h1 * W))
    ce_y = jnp.sum(c2[h1:h2].reshape((h2 - h1) * W, Cp), axis=0,
                   keepdims=True) * (1.0 / ((h2 - h1) * W))
    dn_y = jnp.sum(c2[h2:].reshape((H - h2) * W, Cp), axis=0,
                   keepdims=True) * (1.0 / ((H - h2) * W))
    y = up_y + ce_y + dn_y                                         # (1, Cp)

    z = jnp.maximum(jnp.dot(y, wse_ref[...],
                            preferred_element_type=jnp.float32), 0.0)   # (1, d)
    abc = jnp.dot(z, wfc_ref[...],
                  preferred_element_type=jnp.float32)              # (1, 3*Cp)

    # softmax over the M=3 group dimension, approx reciprocal on the EUP
    g0, g1, g2 = abc[:, :Cp], abc[:, Cp:2 * Cp], abc[:, 2 * Cp:]
    m = jnp.maximum(jnp.maximum(g0, g1), g2)
    e0, e1, e2 = jnp.exp(g0 - m), jnp.exp(g1 - m), jnp.exp(g2 - m)
    inv = pl.reciprocal(e0 + e1 + e2, approx=True)
    a = (e0 * inv).reshape(1, 1, Cp)
    b = (e1 * inv).reshape(1, 1, Cp)
    c = (e2 * inv).reshape(1, 1, Cp)

    # ---- per-region scale + residual add via three sliced writes ----
    out_ref[:h1] = a * c2[:h1] + sc[:h1]
    out_ref[h1:h2] = b * c2[h1:h2] + sc[h1:h2]
    out_ref[h2:] = c * c2[h2:] + sc[h2:]


def se_preact_block(x, params):
    B, H, W, Cin = x.shape
    Cp = params["w1"].shape[-1]
    d = params["wse"].shape[-1]

    # Reshape conv weights for single im2col matmuls; matmul operands in bf16.
    w1 = params["w1"].reshape(9 * Cin, Cp).astype(jnp.bfloat16)
    w2 = params["w2"].reshape(9 * Cp, Cp).astype(jnp.bfloat16)
    wsc = params["wsc"].astype(jnp.bfloat16)
    wse = params["wse"]
    wfc = params["wfc"]

    flops = (2 * B * H * W * (9 * Cin * Cp + 9 * Cp * Cp + Cin * Cp)
             + 2 * B * (Cp * d + d * 3 * Cp))
    transcendentals = B * 4 * Cp                       # 3 exps + 1 reciprocal
    bytes_accessed = (4 * x.size + 4 * B * H * W * Cp
                      + 2 * (w1.size + w2.size + wsc.size)
                      + 4 * (wse.size + wfc.size)
                      + 4 * 2 * (Cin + Cp))
    cost = pl.CostEstimate(flops=int(flops),
                           transcendentals=int(transcendentals),
                           bytes_accessed=int(bytes_accessed))

    const = lambda b: (0, 0)
    grid_spec = pltpu.PrefetchScalarGridSpec(
        num_scalar_prefetch=0,
        grid=(B,),
        in_specs=[
            pl.BlockSpec((None, H, W, Cin), lambda b: (b, 0, 0, 0)),
            pl.BlockSpec((1, Cin), const),           # bn1 scale
            pl.BlockSpec((1, Cin), const),           # bn1 shift
            pl.BlockSpec((9 * Cin, Cp), const),      # conv1 weight (im2col)
            pl.BlockSpec((1, Cp), const),            # bn2 scale
            pl.BlockSpec((1, Cp), const),            # bn2 shift
            pl.BlockSpec((9 * Cp, Cp), const),       # conv2 weight (im2col)
            pl.BlockSpec((Cin, Cp), const),          # shortcut 1x1 weight
            pl.BlockSpec((Cp, d), const),            # SE reduce weight
            pl.BlockSpec((d, 3 * Cp), const),        # SE expand weight
        ],
        out_specs=pl.BlockSpec((None, H, W, Cp), lambda b: (b, 0, 0, 0)),
        scratch_shapes=[
            pltpu.VMEM((H + 2, W + 2, Cin), jnp.bfloat16),   # conv1 halo pad
            pltpu.VMEM((H + 2, W + 2, Cp), jnp.bfloat16),    # conv2 halo pad
        ],
    )
    return pl.pallas_call(
        se_preact_block_kernel,
        out_shape=jax.ShapeDtypeStruct((B, H, W, Cp), jnp.float32),
        grid_spec=grid_spec,
        compiler_params=pltpu.CompilerParams(
            dimension_semantics=("parallel",),
            vmem_limit_bytes=64 * 1024 * 1024),
        cost_estimate=cost,
    )(x, params["bn1_s"], params["bn1_b"], w1,
      params["bn2_s"], params["bn2_b"], w2, wsc, wse, wfc)


def reference(x, params):
    """Pure-JAX reference (same math, XLA convs, f32) for verification."""
    B, H, W, Cin = x.shape
    Cp = params["w1"].shape[-1]
    dn = ("NHWC", "HWIO", "NHWC")
    o1 = jax.nn.relu(x * params["bn1_s"].reshape(1, 1, 1, Cin)
                     + params["bn1_b"].reshape(1, 1, 1, Cin))
    sc = jnp.einsum("bhwc,cd->bhwd", o1, params["wsc"])
    c1 = lax.conv_general_dilated(o1, params["w1"].reshape(3, 3, Cin, Cp),
                                  (1, 1), "SAME", dimension_numbers=dn)
    o2 = jax.nn.relu(c1 * params["bn2_s"].reshape(1, 1, 1, Cp)
                     + params["bn2_b"].reshape(1, 1, 1, Cp))
    c2 = lax.conv_general_dilated(o2, params["w2"].reshape(3, 3, Cp, Cp),
                                  (1, 1), "SAME", dimension_numbers=dn)
    h1, h2 = H // 3, (2 * H) // 3
    x1, x2, x3 = c2[:, :h1], c2[:, h1:h2], c2[:, h2:]
    y = x1.mean((1, 2)) + x2.mean((1, 2)) + x3.mean((1, 2))
    z = jax.nn.relu(y @ params["wse"])
    abc = (z @ params["wfc"]).reshape(B, 3, Cp)
    s = jax.nn.softmax(abc, axis=1)
    a, b_, c_ = s[:, 0], s[:, 1], s[:, 2]
    se = jnp.concatenate([a[:, None, None, :] * x1,
                          b_[:, None, None, :] * x2,
                          c_[:, None, None, :] * x3], axis=1)
    return se + sc


def make_params(key, in_planes, planes):
    d = max(planes // 16, 32)                      # SKFusion: d = max(C/r, L)
    ks = jax.random.split(key, 10)
    f32 = jnp.float32
    # BN (inference-mode): fold gamma/beta/mean/var into scale/shift
    g1 = 0.5 + jax.random.uniform(ks[0], (1, in_planes), f32)
    be1 = 0.1 * jax.random.normal(ks[1], (1, in_planes), f32)
    mu1 = 0.1 * jax.random.normal(ks[2], (1, in_planes), f32)
    v1 = 0.5 + jax.random.uniform(ks[3], (1, in_planes), f32)
    g2 = 0.5 + jax.random.uniform(ks[4], (1, planes), f32)
    be2 = 0.1 * jax.random.normal(ks[5], (1, planes), f32)
    mu2 = 0.1 * jax.random.normal(ks[6], (1, planes), f32)
    v2 = 0.5 + jax.random.uniform(ks[7], (1, planes), f32)
    eps = 1e-5
    bn1_s = g1 / jnp.sqrt(v1 + eps)
    bn1_b = be1 - mu1 * bn1_s
    bn2_s = g2 / jnp.sqrt(v2 + eps)
    bn2_b = be2 - mu2 * bn2_s
    wkeys = jax.random.split(ks[8], 5)
    w1 = jax.random.normal(wkeys[0], (9, in_planes, planes), f32) / jnp.sqrt(9.0 * in_planes)
    w2 = jax.random.normal(wkeys[1], (9, planes, planes), f32) / jnp.sqrt(9.0 * planes)
    wsc = jax.random.normal(wkeys[2], (in_planes, planes), f32) / jnp.sqrt(1.0 * in_planes)
    wse = jax.random.normal(wkeys[3], (planes, d), f32) / jnp.sqrt(1.0 * planes)
    wfc = jax.random.normal(wkeys[4], (d, 3 * planes), f32) / jnp.sqrt(1.0 * d)
    return dict(bn1_s=bn1_s, bn1_b=bn1_b, w1=w1,
                bn2_s=bn2_s, bn2_b=bn2_b, w2=w2,
                wsc=wsc, wse=wse, wfc=wfc)


if __name__ == "__main__":
    # SEPreActBlock(in_planes=8, planes=16, stride=1) -> shortcut is a 1x1 conv
    # (in_planes != planes). Input (NHWC): B=2, H=W=12, Cin=8.
    B, H, W = 2, 12, 12
    in_planes, planes = 8, 16

    key = jax.random.PRNGKey(0)
    kx, kp = jax.random.split(key)
    x = jax.random.normal(kx, (B, H, W, in_planes), jnp.float32)
    params = make_params(kp, in_planes, planes)

    out = jax.block_until_ready(se_preact_block(x, params))
    ref = jax.block_until_ready(reference(x, params))

    assert out.shape == (B, H, W, planes), out.shape
    err = float(jnp.max(jnp.abs(out - ref)))
    tol = 5e-2 * (1.0 + float(jnp.max(jnp.abs(ref))))
    assert jnp.all(jnp.isfinite(out)), "non-finite output"
    assert err < tol, f"mismatch vs reference: {err} >= {tol}"
    print("KERNEL_OK")
</pallas_src>

<mosaic_0001>
module attributes {stable_mosaic.version = 11 : i64} {
  func.func @se_preact_block_kernel(%arg0: i32, %arg1: memref<1x12x12x8xf32, #tpu.memory_space<vmem>>, %arg2: memref<1x8xf32, #tpu.memory_space<vmem>>, %arg3: memref<1x8xf32, #tpu.memory_space<vmem>>, %arg4: memref<72x16xbf16, #tpu.memory_space<vmem>>, %arg5: memref<1x16xf32, #tpu.memory_space<vmem>>, %arg6: memref<1x16xf32, #tpu.memory_space<vmem>>, %arg7: memref<144x16xbf16, #tpu.memory_space<vmem>>, %arg8: memref<8x16xbf16, #tpu.memory_space<vmem>>, %arg9: memref<16x32xf32, #tpu.memory_space<vmem>>, %arg10: memref<32x48xf32, #tpu.memory_space<vmem>>, %arg11: memref<1x12x12x16xf32, #tpu.memory_space<vmem>>, %arg12: memref<14x14x8xbf16, #tpu.memory_space<vmem>>, %arg13: memref<14x14x16xbf16, #tpu.memory_space<vmem>>) attributes {dimension_semantics = [#tpu.dimension_semantics<parallel>], iteration_bounds = array<i64: 2>, scalar_prefetch = 0 : i64, scratch_operands = 2 : i64, tpu.core_type = #tpu.core_type<tc>, window_params = [{transform_indices = @transform_0, window_bounds = array<i64: 1, 12, 12, 8>}, {pipeline_mode = #tpu.pipeline_mode<synchronous>, transform_indices = @transform_1, window_bounds = array<i64: 1, 8>}, {pipeline_mode = #tpu.pipeline_mode<synchronous>, transform_indices = @transform_2, window_bounds = array<i64: 1, 8>}, {pipeline_mode = #tpu.pipeline_mode<synchronous>, transform_indices = @transform_3, window_bounds = array<i64: 72, 16>}, {pipeline_mode = #tpu.pipeline_mode<synchronous>, transform_indices = @transform_4, window_bounds = array<i64: 1, 16>}, {pipeline_mode = #tpu.pipeline_mode<synchronous>, transform_indices = @transform_5, window_bounds = array<i64: 1, 16>}, {pipeline_mode = #tpu.pipeline_mode<synchronous>, transform_indices = @transform_6, window_bounds = array<i64: 144, 16>}, {pipeline_mode = #tpu.pipeline_mode<synchronous>, transform_indices = @transform_7, window_bounds = array<i64: 8, 16>}, {pipeline_mode = #tpu.pipeline_mode<synchronous>, transform_indices = @transform_8, window_bounds = array<i64: 16, 32>}, {pipeline_mode = #tpu.pipeline_mode<synchronous>, transform_indices = @transform_9, window_bounds = array<i64: 32, 48>}, {transform_indices = @transform_10, window_bounds = array<i64: 1, 12, 12, 16>}]} {
    %cst = arith.constant 0.000000e+00 : bf16
    %0 = vector.broadcast %cst : bf16 to vector<1x14x8xbf16>
    %c0 = arith.constant 0 : index
    %c0_0 = arith.constant 0 : index
    %c0_1 = arith.constant 0 : index
    %1 = vector.load %arg12[%c0, %c0_0, %c0_1] : memref<14x14x8xbf16, #tpu.memory_space<vmem>>, vector<1x14x8xbf16>
    tpu.vector_store %arg12[%c0, %c0_0, %c0_1], %0 {strides = array<i32>} : memref<14x14x8xbf16, #tpu.memory_space<vmem>>, vector<1x14x8xbf16>,
    %c13 = arith.constant 13 : index
    %c0_2 = arith.constant 0 : index
    %c0_3 = arith.constant 0 : index
    %2 = vector.load %arg12[%c13, %c0_2, %c0_3] : memref<14x14x8xbf16, #tpu.memory_space<vmem>>, vector<1x14x8xbf16>
    tpu.vector_store %arg12[%c13, %c0_2, %c0_3], %0 {strides = array<i32>} : memref<14x14x8xbf16, #tpu.memory_space<vmem>>, vector<1x14x8xbf16>,
    %cst_4 = arith.constant 0.000000e+00 : bf16
    %3 = vector.broadcast %cst_4 : bf16 to vector<14x1x8xbf16>
    %c0_5 = arith.constant 0 : index
    %c0_6 = arith.constant 0 : index
    %c0_7 = arith.constant 0 : index
    %4 = vector.load %arg12[%c0_5, %c0_6, %c0_7] : memref<14x14x8xbf16, #tpu.memory_space<vmem>>, vector<14x1x8xbf16>
    tpu.vector_store %arg12[%c0_5, %c0_6, %c0_7], %3 {strides = array<i32>} : memref<14x14x8xbf16, #tpu.memory_space<vmem>>, vector<14x1x8xbf16>,
    %c0_8 = arith.constant 0 : index
    %c13_9 = arith.constant 13 : index
    %c0_10 = arith.constant 0 : index
    %5 = vector.load %arg12[%c0_8, %c13_9, %c0_10] : memref<14x14x8xbf16, #tpu.memory_space<vmem>>, vector<14x1x8xbf16>
    tpu.vector_store %arg12[%c0_8, %c13_9, %c0_10], %3 {strides = array<i32>} : memref<14x14x8xbf16, #tpu.memory_space<vmem>>, vector<14x1x8xbf16>,
    %cst_11 = arith.constant 0.000000e+00 : bf16
    %6 = vector.broadcast %cst_11 : bf16 to vector<1x14x16xbf16>
    %c0_12 = arith.constant 0 : index
    %c0_13 = arith.constant 0 : index
    %c0_14 = arith.constant 0 : index
    %7 = vector.load %arg13[%c0_12, %c0_13, %c0_14] : memref<14x14x16xbf16, #tpu.memory_space<vmem>>, vector<1x14x16xbf16>
    tpu.vector_store %arg13[%c0_12, %c0_13, %c0_14], %6 {strides = array<i32>} : memref<14x14x16xbf16, #tpu.memory_space<vmem>>, vector<1x14x16xbf16>,
    %c13_15 = arith.constant 13 : index
    %c0_16 = arith.constant 0 : index
    %c0_17 = arith.constant 0 : index
    %8 = vector.load %arg13[%c13_15, %c0_16, %c0_17] : memref<14x14x16xbf16, #tpu.memory_space<vmem>>, vector<1x14x16xbf16>
    tpu.vector_store %arg13[%c13_15, %c0_16, %c0_17], %6 {strides = array<i32>} : memref<14x14x16xbf16, #tpu.memory_space<vmem>>, vector<1x14x16xbf16>,
    %cst_18 = arith.constant 0.000000e+00 : bf16
    %9 = vector.broadcast %cst_18 : bf16 to vector<14x1x16xbf16>
    %c0_19 = arith.constant 0 : index
    %c0_20 = arith.constant 0 : index
    %c0_21 = arith.constant 0 : index
    %10 = vector.load %arg13[%c0_19, %c0_20, %c0_21] : memref<14x14x16xbf16, #tpu.memory_space<vmem>>, vector<14x1x16xbf16>
    tpu.vector_store %arg13[%c0_19, %c0_20, %c0_21], %9 {strides = array<i32>} : memref<14x14x16xbf16, #tpu.memory_space<vmem>>, vector<14x1x16xbf16>,
    %c0_22 = arith.constant 0 : index
    %c13_23 = arith.constant 13 : index
    %c0_24 = arith.constant 0 : index
    %11 = vector.load %arg13[%c0_22, %c13_23, %c0_24] : memref<14x14x16xbf16, #tpu.memory_space<vmem>>, vector<14x1x16xbf16>
    tpu.vector_store %arg13[%c0_22, %c13_23, %c0_24], %9 {strides = array<i32>} : memref<14x14x16xbf16, #tpu.memory_space<vmem>>, vector<14x1x16xbf16>,
    %c0_25 = arith.constant 0 : index
    %c0_26 = arith.constant 0 : index
    %c0_27 = arith.constant 0 : index
    %c0_28 = arith.constant 0 : index
    %12 = vector.load %arg1[%c0_25, %c0_26, %c0_27, %c0_28] : memref<1x12x12x8xf32, #tpu.memory_space<vmem>>, vector<1x12x12x8xf32>
    %13 = vector.shape_cast %12 : vector<1x12x12x8xf32> to vector<12x12x8xf32>
    %c0_29 = arith.constant 0 : index
    %c0_30 = arith.constant 0 : index
    %14 = vector.load %arg2[%c0_29, %c0_30] : memref<1x8xf32, #tpu.memory_space<vmem>>, vector<1x8xf32>
    %15 = vector.shape_cast %14 : vector<1x8xf32> to vector<1x1x8xf32>
    %16 = vector.broadcast %15 : vector<1x1x8xf32> to vector<12x12x8xf32>
    %17 = arith.mulf %13, %16 : vector<12x12x8xf32>
    %c0_31 = arith.constant 0 : index
    %c0_32 = arith.constant 0 : index
    %18 = vector.load %arg3[%c0_31, %c0_32] : memref<1x8xf32, #tpu.memory_space<vmem>>, vector<1x8xf32>
    %19 = vector.shape_cast %18 : vector<1x8xf32> to vector<1x1x8xf32>
    %20 = vector.broadcast %19 : vector<1x1x8xf32> to vector<12x12x8xf32>
    %21 = arith.addf %17, %20 : vector<12x12x8xf32>
    %cst_33 = arith.constant 0.000000e+00 : f32
    %22 = vector.broadcast %cst_33 : f32 to vector<12x12x8xf32>
    %23 = arith.maximumf %21, %22 : vector<12x12x8xf32>
    %24 = arith.truncf %23 : vector<12x12x8xf32> to vector<12x12x8xbf16>
    %25 = vector.shape_cast %24 : vector<12x12x8xbf16> to vector<144x8xbf16>
    %c0_34 = arith.constant 0 : index
    %c0_35 = arith.constant 0 : index
    %26 = vector.load %arg8[%c0_34, %c0_35] : memref<8x16xbf16, #tpu.memory_space<vmem>>, vector<8x16xbf16>
    %cst_36 = arith.constant dense<0.000000e+00> : vector<144x16xf32>
    %27 = tpu.matmul %25, %26, %cst_36 {dimension_numbers = #tpu.dot_dimension_numbers<[1], [0], [0], [1], [0, 0, 1, 1], [], []>} : vector<144x8xbf16>, vector<8x16xbf16>, vector<144x16xf32> -> vector<144x16xf32>
    %c1 = arith.constant 1 : index
    %c1_37 = arith.constant 1 : index
    %c0_38 = arith.constant 0 : index
    %28 = vector.load %arg12[%c1, %c1_37, %c0_38] : memref<14x14x8xbf16, #tpu.memory_space<vmem>>, vector<12x12x8xbf16>
    tpu.vector_store %arg12[%c1, %c1_37, %c0_38], %24 {strides = array<i32>} : memref<14x14x8xbf16, #tpu.memory_space<vmem>>, vector<12x12x8xbf16>,
    %c0_39 = arith.constant 0 : index
    %c0_40 = arith.constant 0 : index
    %c0_41 = arith.constant 0 : index
    %29 = vector.load %arg12[%c0_39, %c0_40, %c0_41] : memref<14x14x8xbf16, #tpu.memory_space<vmem>>, vector<12x12x8xbf16>
    %c0_42 = arith.constant 0 : index
    %c1_43 = arith.constant 1 : index
    %c0_44 = arith.constant 0 : index
    %30 = vector.load %arg12[%c0_42, %c1_43, %c0_44] : memref<14x14x8xbf16, #tpu.memory_space<vmem>>, vector<12x12x8xbf16>
    %c0_45 = arith.constant 0 : index
    %c2 = arith.constant 2 : index
    %c0_46 = arith.constant 0 : index
    %31 = vector.load %arg12[%c0_45, %c2, %c0_46] : memref<14x14x8xbf16, #tpu.memory_space<vmem>>, vector<12x12x8xbf16>
    %c1_47 = arith.constant 1 : index
    %c0_48 = arith.constant 0 : index
    %c0_49 = arith.constant 0 : index
    %32 = vector.load %arg12[%c1_47, %c0_48, %c0_49] : memref<14x14x8xbf16, #tpu.memory_space<vmem>>, vector<12x12x8xbf16>
    %c1_50 = arith.constant 1 : index
    %c1_51 = arith.constant 1 : index
    %c0_52 = arith.constant 0 : index
    %33 = vector.load %arg12[%c1_50, %c1_51, %c0_52] : memref<14x14x8xbf16, #tpu.memory_space<vmem>>, vector<12x12x8xbf16>
    %c1_53 = arith.constant 1 : index
    %c2_54 = arith.constant 2 : index
    %c0_55 = arith.constant 0 : index
    %34 = vector.load %arg12[%c1_53, %c2_54, %c0_55] : memref<14x14x8xbf16, #tpu.memory_space<vmem>>, vector<12x12x8xbf16>
    %c2_56 = arith.constant 2 : index
    %c0_57 = arith.constant 0 : index
    %c0_58 = arith.constant 0 : index
    %35 = vector.load %arg12[%c2_56, %c0_57, %c0_58] : memref<14x14x8xbf16, #tpu.memory_space<vmem>>, vector<12x12x8xbf16>
    %c2_59 = arith.constant 2 : index
    %c1_60 = arith.constant 1 : index
    %c0_61 = arith.constant 0 : index
    %36 = vector.load %arg12[%c2_59, %c1_60, %c0_61] : memref<14x14x8xbf16, #tpu.memory_space<vmem>>, vector<12x12x8xbf16>
    %c2_62 = arith.constant 2 : index
    %c2_63 = arith.constant 2 : index
    %c0_64 = arith.constant 0 : index
    %37 = vector.load %arg12[%c2_62, %c2_63, %c0_64] : memref<14x14x8xbf16, #tpu.memory_space<vmem>>, vector<12x12x8xbf16>
    %38 = tpu.concatenate %29, %30, %31, %32, %33, %34, %35, %36, %37 in 2 : vector<12x12x8xbf16>, vector<12x12x8xbf16>, vector<12x12x8xbf16>, vector<12x12x8xbf16>, vector<12x12x8xbf16>, vector<12x12x8xbf16>, vector<12x12x8xbf16>, vector<12x12x8xbf16>, vector<12x12x8xbf16> -> vector<12x12x72xbf16>
    %39 = vector.shape_cast %38 : vector<12x12x72xbf16> to vector<144x72xbf16>
    %c0_65 = arith.constant 0 : index
    %c0_66 = arith.constant 0 : index
    %40 = vector.load %arg4[%c0_65, %c0_66] : memref<72x16xbf16, #tpu.memory_space<vmem>>, vector<72x16xbf16>
    %cst_67 = arith.constant dense<0.000000e+00> : vector<144x16xf32>
    %41 = tpu.matmul %39, %40, %cst_67 {dimension_numbers = #tpu.dot_dimension_numbers<[1], [0], [0], [1], [0, 0, 1, 1], [], []>} : vector<144x72xbf16>, vector<72x16xbf16>, vector<144x16xf32> -> vector<144x16xf32>
    %c0_68 = arith.constant 0 : index
    %c0_69 = arith.constant 0 : index
    %42 = vector.load %arg5[%c0_68, %c0_69] : memref<1x16xf32, #tpu.memory_space<vmem>>, vector<1x16xf32>
    %43 = vector.broadcast %42 : vector<1x16xf32> to vector<144x16xf32>
    %44 = arith.mulf %41, %43 : vector<144x16xf32>
    %c0_70 = arith.constant 0 : index
    %c0_71 = arith.constant 0 : index
    %45 = vector.load %arg6[%c0_70, %c0_71] : memref<1x16xf32, #tpu.memory_space<vmem>>, vector<1x16xf32>
    %46 = vector.broadcast %45 : vector<1x16xf32> to vector<144x16xf32>
    %47 = arith.addf %44, %46 : vector<144x16xf32>
    %cst_72 = arith.constant 0.000000e+00 : f32
    %48 = vector.broadcast %cst_72 : f32 to vector<144x16xf32>
    %49 = arith.maximumf %47, %48 : vector<144x16xf32>
    %50 = arith.truncf %49 : vector<144x16xf32> to vector<144x16xbf16>
    %51 = vector.shape_cast %50 : vector<144x16xbf16> to vector<12x12x16xbf16>
    %c1_73 = arith.constant 1 : index
    %c1_74 = arith.constant 1 : index
    %c0_75 = arith.constant 0 : index
    %52 = vector.load %arg13[%c1_73, %c1_74, %c0_75] : memref<14x14x16xbf16, #tpu.memory_space<vmem>>, vector<12x12x16xbf16>
    tpu.vector_store %arg13[%c1_73, %c1_74, %c0_75], %51 {strides = array<i32>} : memref<14x14x16xbf16, #tpu.memory_space<vmem>>, vector<12x12x16xbf16>,
    %c0_76 = arith.constant 0 : index
    %c0_77 = arith.constant 0 : index
    %c0_78 = arith.constant 0 : index
    %53 = vector.load %arg13[%c0_76, %c0_77, %c0_78] : memref<14x14x16xbf16, #tpu.memory_space<vmem>>, vector<12x12x16xbf16>
    %c0_79 = arith.constant 0 : index
    %c1_80 = arith.constant 1 : index
    %c0_81 = arith.constant 0 : index
    %54 = vector.load %arg13[%c0_79, %c1_80, %c0_81] : memref<14x14x16xbf16, #tpu.memory_space<vmem>>, vector<12x12x16xbf16>
    %c0_82 = arith.constant 0 : index
    %c2_83 = arith.constant 2 : index
    %c0_84 = arith.constant 0 : index
    %55 = vector.load %arg13[%c0_82, %c2_83, %c0_84] : memref<14x14x16xbf16, #tpu.memory_space<vmem>>, vector<12x12x16xbf16>
    %c1_85 = arith.constant 1 : index
    %c0_86 = arith.constant 0 : index
    %c0_87 = arith.constant 0 : index
    %56 = vector.load %arg13[%c1_85, %c0_86, %c0_87] : memref<14x14x16xbf16, #tpu.memory_space<vmem>>, vector<12x12x16xbf16>
    %c1_88 = arith.constant 1 : index
    %c1_89 = arith.constant 1 : index
    %c0_90 = arith.constant 0 : index
    %57 = vector.load %arg13[%c1_88, %c1_89, %c0_90] : memref<14x14x16xbf16, #tpu.memory_space<vmem>>, vector<12x12x16xbf16>
    %c1_91 = arith.constant 1 : index
    %c2_92 = arith.constant 2 : index
    %c0_93 = arith.constant 0 : index
    %58 = vector.load %arg13[%c1_91, %c2_92, %c0_93] : memref<14x14x16xbf16, #tpu.memory_space<vmem>>, vector<12x12x16xbf16>
    %c2_94 = arith.constant 2 : index
    %c0_95 = arith.constant 0 : index
    %c0_96 = arith.constant 0 : index
    %59 = vector.load %arg13[%c2_94, %c0_95, %c0_96] : memref<14x14x16xbf16, #tpu.memory_space<vmem>>, vector<12x12x16xbf16>
    %c2_97 = arith.constant 2 : index
    %c1_98 = arith.constant 1 : index
    %c0_99 = arith.constant 0 : index
    %60 = vector.load %arg13[%c2_97, %c1_98, %c0_99] : memref<14x14x16xbf16, #tpu.memory_space<vmem>>, vector<12x12x16xbf16>
    %c2_100 = arith.constant 2 : index
    %c2_101 = arith.constant 2 : index
    %c0_102 = arith.constant 0 : index
    %61 = vector.load %arg13[%c2_100, %c2_101, %c0_102] : memref<14x14x16xbf16, #tpu.memory_space<vmem>>, vector<12x12x16xbf16>
    %62 = tpu.concatenate %53, %54, %55, %56, %57, %58, %59, %60, %61 in 2 : vector<12x12x16xbf16>, vector<12x12x16xbf16>, vector<12x12x16xbf16>, vector<12x12x16xbf16>, vector<12x12x16xbf16>, vector<12x12x16xbf16>, vector<12x12x16xbf16>, vector<12x12x16xbf16>, vector<12x12x16xbf16> -> vector<12x12x144xbf16>
    %63 = vector.shape_cast %62 : vector<12x12x144xbf16> to vector<144x144xbf16>
    %c0_103 = arith.constant 0 : index
    %c0_104 = arith.constant 0 : index
    %64 = vector.load %arg7[%c0_103, %c0_104] : memref<144x16xbf16, #tpu.memory_space<vmem>>, vector<144x16xbf16>
    %cst_105 = arith.constant dense<0.000000e+00> : vector<144x16xf32>
    %65 = tpu.matmul %63, %64, %cst_105 {dimension_numbers = #tpu.dot_dimension_numbers<[1], [0], [0], [1], [0, 0, 1, 1], [], []>} : vector<144x144xbf16>, vector<144x16xbf16>, vector<144x16xf32> -> vector<144x16xf32>
    %66 = vector.shape_cast %65 : vector<144x16xf32> to vector<12x12x16xf32>
    %67 = vector.shape_cast %27 : vector<144x16xf32> to vector<12x12x16xf32>
    %68 = vector.extract_strided_slice %66 {offsets = [0, 0, 0], sizes = [4, 12, 16], strides = [1, 1, 1]} : vector<12x12x16xf32> to vector<4x12x16xf32>
    %69 = vector.shape_cast %68 : vector<4x12x16xf32> to vector<48x16xf32>
    %cst_106 = arith.constant dense<0.000000e+00> : vector<16xf32>
    %70 = vector.multi_reduction <add>, %69, %cst_106 [0] : vector<48x16xf32> to vector<16xf32>
    %71 = vector.shape_cast %70 : vector<16xf32> to vector<1x16xf32>
    %cst_107 = arith.constant 0.020833334 : f32
    %72 = vector.broadcast %cst_107 : f32 to vector<1x16xf32>
    %73 = arith.mulf %71, %72 : vector<1x16xf32>
    %74 = vector.extract_strided_slice %66 {offsets = [4, 0, 0], sizes = [4, 12, 16], strides = [1, 1, 1]} : vector<12x12x16xf32> to vector<4x12x16xf32>
    %75 = vector.shape_cast %74 : vector<4x12x16xf32> to vector<48x16xf32>
    %cst_108 = arith.constant dense<0.000000e+00> : vector<16xf32>
    %76 = vector.multi_reduction <add>, %75, %cst_108 [0] : vector<48x16xf32> to vector<16xf32>
    %77 = vector.shape_cast %76 : vector<16xf32> to vector<1x16xf32>
    %cst_109 = arith.constant 0.020833334 : f32
    %78 = vector.broadcast %cst_109 : f32 to vector<1x16xf32>
    %79 = arith.mulf %77, %78 : vector<1x16xf32>
    %80 = vector.extract_strided_slice %66 {offsets = [8, 0, 0], sizes = [4, 12, 16], strides = [1, 1, 1]} : vector<12x12x16xf32> to vector<4x12x16xf32>
    %81 = vector.shape_cast %80 : vector<4x12x16xf32> to vector<48x16xf32>
    %cst_110 = arith.constant dense<0.000000e+00> : vector<16xf32>
    %82 = vector.multi_reduction <add>, %81, %cst_110 [0] : vector<48x16xf32> to vector<16xf32>
    %83 = vector.shape_cast %82 : vector<16xf32> to vector<1x16xf32>
    %cst_111 = arith.constant 0.020833334 : f32
    %84 = vector.broadcast %cst_111 : f32 to vector<1x16xf32>
    %85 = arith.mulf %83, %84 : vector<1x16xf32>
    %86 = arith.addf %73, %79 : vector<1x16xf32>
    %87 = arith.addf %86, %85 : vector<1x16xf32>
    %c0_112 = arith.constant 0 : index
    %c0_113 = arith.constant 0 : index
    %88 = vector.load %arg9[%c0_112, %c0_113] : memref<16x32xf32, #tpu.memory_space<vmem>>, vector<16x32xf32>
    %cst_114 = arith.constant dense<0.000000e+00> : vector<1x32xf32>
    %89 = tpu.matmul %87, %88, %cst_114 {dimension_numbers = #tpu.dot_dimension_numbers<[1], [0], [0], [1], [0, 0, 1, 1], [], []>} : vector<1x16xf32>, vector<16x32xf32>, vector<1x32xf32> -> vector<1x32xf32>
    %cst_115 = arith.constant 0.000000e+00 : f32
    %90 = vector.broadcast %cst_115 : f32 to vector<1x32xf32>
    %91 = arith.maximumf %89, %90 : vector<1x32xf32>
    %c0_116 = arith.constant 0 : index
    %c0_117 = arith.constant 0 : index
    %92 = vector.load %arg10[%c0_116, %c0_117] : memref<32x48xf32, #tpu.memory_space<vmem>>, vector<32x48xf32>
    %cst_118 = arith.constant dense<0.000000e+00> : vector<1x48xf32>
    %93 = tpu.matmul %91, %92, %cst_118 {dimension_numbers = #tpu.dot_dimension_numbers<[1], [0], [0], [1], [0, 0, 1, 1], [], []>} : vector<1x32xf32>, vector<32x48xf32>, vector<1x48xf32> -> vector<1x48xf32>
    %94 = vector.extract_strided_slice %93 {offsets = [0, 0], sizes = [1, 16], strides = [1, 1]} : vector<1x48xf32> to vector<1x16xf32>
    %95 = vector.extract_strided_slice %93 {offsets = [0, 16], sizes = [1, 16], strides = [1, 1]} : vector<1x48xf32> to vector<1x16xf32>
    %96 = vector.extract_strided_slice %93 {offsets = [0, 32], sizes = [1, 16], strides = [1, 1]} : vector<1x48xf32> to vector<1x16xf32>
    %97 = arith.maximumf %94, %95 : vector<1x16xf32>
    %98 = arith.maximumf %97, %96 : vector<1x16xf32>
    %99 = arith.subf %94, %98 : vector<1x16xf32>
    %100 = math.exp %99 : vector<1x16xf32>
    %101 = arith.subf %95, %98 : vector<1x16xf32>
    %102 = math.exp %101 : vector<1x16xf32>
    %103 = arith.subf %96, %98 : vector<1x16xf32>
    %104 = math.exp %103 : vector<1x16xf32>
    %105 = arith.addf %100, %102 : vector<1x16xf32>
    %106 = arith.addf %105, %104 : vector<1x16xf32>
    %107 = tpu.reciprocal %106 {approx = true} : vector<1x16xf32> -> vector<1x16xf32>
    %108 = arith.mulf %100, %107 : vector<1x16xf32>
    %109 = vector.shape_cast %108 : vector<1x16xf32> to vector<1x1x16xf32>
    %110 = arith.mulf %102, %107 : vector<1x16xf32>
    %111 = vector.shape_cast %110 : vector<1x16xf32> to vector<1x1x16xf32>
    %112 = arith.mulf %104, %107 : vector<1x16xf32>
    %113 = vector.shape_cast %112 : vector<1x16xf32> to vector<1x1x16xf32>
    %114 = vector.extract_strided_slice %66 {offsets = [0, 0, 0], sizes = [4, 12, 16], strides = [1, 1, 1]} : vector<12x12x16xf32> to vector<4x12x16xf32>
    %115 = vector.broadcast %109 : vector<1x1x16xf32> to vector<4x12x16xf32>
    %116 = arith.mulf %115, %114 : vector<4x12x16xf32>
    %117 = vector.extract_strided_slice %67 {offsets = [0, 0, 0], sizes = [4, 12, 16], strides = [1, 1, 1]} : vector<12x12x16xf32> to vector<4x12x16xf32>
    %118 = arith.addf %116, %117 : vector<4x12x16xf32>
    %c0_119 = arith.constant 0 : index
    %c0_120 = arith.constant 0 : index
    %c0_121 = arith.constant 0 : index
    %c0_122 = arith.constant 0 : index
    %119 = vector.load %arg11[%c0_119, %c0_120, %c0_121, %c0_122] : memref<1x12x12x16xf32, #tpu.memory_space<vmem>>, vector<1x4x12x16xf32>
    %120 = vector.shape_cast %119 : vector<1x4x12x16xf32> to vector<4x12x16xf32>
    %121 = vector.shape_cast %118 : vector<4x12x16xf32> to vector<1x4x12x16xf32>
    tpu.vector_store %arg11[%c0_119, %c0_120, %c0_121, %c0_122], %121 {strides = array<i32>} : memref<1x12x12x16xf32, #tpu.memory_space<vmem>>, vector<1x4x12x16xf32>,
    %122 = vector.extract_strided_slice %66 {offsets = [4, 0, 0], sizes = [4, 12, 16], strides = [1, 1, 1]} : vector<12x12x16xf32> to vector<4x12x16xf32>
    %123 = vector.broadcast %111 : vector<1x1x16xf32> to vector<4x12x16xf32>
    %124 = arith.mulf %123, %122 : vector<4x12x16xf32>
    %125 = vector.extract_strided_slice %67 {offsets = [4, 0, 0], sizes = [4, 12, 16], strides = [1, 1, 1]} : vector<12x12x16xf32> to vector<4x12x16xf32>
    %126 = arith.addf %124, %125 : vector<4x12x16xf32>
    %c0_123 = arith.constant 0 : index
    %c4 = arith.constant 4 : index
    %c0_124 = arith.constant 0 : index
    %c0_125 = arith.constant 0 : index
    %127 = vector.load %arg11[%c0_123, %c4, %c0_124, %c0_125] : memref<1x12x12x16xf32, #tpu.memory_space<vmem>>, vector<1x4x12x16xf32>
    %128 = vector.shape_cast %127 : vector<1x4x12x16xf32> to vector<4x12x16xf32>
    %129 = vector.shape_cast %126 : vector<4x12x16xf32> to vector<1x4x12x16xf32>
    tpu.vector_store %arg11[%c0_123, %c4, %c0_124, %c0_125], %129 {strides = array<i32>} : memref<1x12x12x16xf32, #tpu.memory_space<vmem>>, vector<1x4x12x16xf32>,
    %130 = vector.extract_strided_slice %66 {offsets = [8, 0, 0], sizes = [4, 12, 16], strides = [1, 1, 1]} : vector<12x12x16xf32> to vector<4x12x16xf32>
    %131 = vector.broadcast %113 : vector<1x1x16xf32> to vector<4x12x16xf32>
    %132 = arith.mulf %131, %130 : vector<4x12x16xf32>
    %133 = vector.extract_strided_slice %67 {offsets = [8, 0, 0], sizes = [4, 12, 16], strides = [1, 1, 1]} : vector<12x12x16xf32> to vector<4x12x16xf32>
    %134 = arith.addf %132, %133 : vector<4x12x16xf32>
    %c0_126 = arith.constant 0 : index
    %c8 = arith.constant 8 : index
    %c0_127 = arith.constant 0 : index
    %c0_128 = arith.constant 0 : index
    %135 = vector.load %arg11[%c0_126, %c8, %c0_127, %c0_128] : memref<1x12x12x16xf32, #tpu.memory_space<vmem>>, vector<1x4x12x16xf32>
    %136 = vector.shape_cast %135 : vector<1x4x12x16xf32> to vector<4x12x16xf32>
    %137 = vector.shape_cast %134 : vector<4x12x16xf32> to vector<1x4x12x16xf32>
    tpu.vector_store %arg11[%c0_126, %c8, %c0_127, %c0_128], %137 {strides = array<i32>} : memref<1x12x12x16xf32, #tpu.memory_space<vmem>>, vector<1x4x12x16xf32>,
    return
  }
  func.func @transform_0(%arg0: i32) -> (i32, i32, i32, i32) {
    %c0_i32 = arith.constant 0 : i32
    %c0_i32_0 = arith.constant 0 : i32
    %c0_i32_1 = arith.constant 0 : i32
    %c0_i32_2 = arith.constant 0 : i32
    return %arg0, %c0_i32, %c0_i32_0, %c0_i32_1 : i32, i32, i32, i32
  }
  func.func @transform_1(%arg0: i32) -> (i32, i32) {
    %c0_i32 = arith.constant 0 : i32
    %c0_i32_0 = arith.constant 0 : i32
    %c0_i32_1 = arith.constant 0 : i32
    return %c0_i32, %c0_i32_0 : i32, i32
  }
  func.func @transform_2(%arg0: i32) -> (i32, i32) {
    %c0_i32 = arith.constant 0 : i32
    %c0_i32_0 = arith.constant 0 : i32
    %c0_i32_1 = arith.constant 0 : i32
    return %c0_i32, %c0_i32_0 : i32, i32
  }
  func.func @transform_3(%arg0: i32) -> (i32, i32) {
    %c0_i32 = arith.constant 0 : i32
    %c0_i32_0 = arith.constant 0 : i32
    %c0_i32_1 = arith.constant 0 : i32
    return %c0_i32, %c0_i32_0 : i32, i32
  }
  func.func @transform_4(%arg0: i32) -> (i32, i32) {
    %c0_i32 = arith.constant 0 : i32
    %c0_i32_0 = arith.constant 0 : i32
    %c0_i32_1 = arith.constant 0 : i32
    return %c0_i32, %c0_i32_0 : i32, i32
  }
  func.func @transform_5(%arg0: i32) -> (i32, i32) {
    %c0_i32 = arith.constant 0 : i32
    %c0_i32_0 = arith.constant 0 : i32
    %c0_i32_1 = arith.constant 0 : i32
    return %c0_i32, %c0_i32_0 : i32, i32
  }
  func.func @transform_6(%arg0: i32) -> (i32, i32) {
    %c0_i32 = arith.constant 0 : i32
    %c0_i32_0 = arith.constant 0 : i32
    %c0_i32_1 = arith.constant 0 : i32
    return %c0_i32, %c0_i32_0 : i32, i32
  }
  func.func @transform_7(%arg0: i32) -> (i32, i32) {
    %c0_i32 = arith.constant 0 : i32
    %c0_i32_0 = arith.constant 0 : i32
    %c0_i32_1 = arith.constant 0 : i32
    return %c0_i32, %c0_i32_0 : i32, i32
  }
  func.func @transform_8(%arg0: i32) -> (i32, i32) {
    %c0_i32 = arith.constant 0 : i32
    %c0_i32_0 = arith.constant 0 : i32
    %c0_i32_1 = arith.constant 0 : i32
    return %c0_i32, %c0_i32_0 : i32, i32
  }
  func.func @transform_9(%arg0: i32) -> (i32, i32) {
    %c0_i32 = arith.constant 0 : i32
    %c0_i32_0 = arith.constant 0 : i32
    %c0_i32_1 = arith.constant 0 : i32
    return %c0_i32, %c0_i32_0 : i32, i32
  }
  func.func @transform_10(%arg0: i32) -> (i32, i32, i32, i32) {
    %c0_i32 = arith.constant 0 : i32
    %c0_i32_0 = arith.constant 0 : i32
    %c0_i32_1 = arith.constant 0 : i32
    %c0_i32_2 = arith.constant 0 : i32
    return %arg0, %c0_i32, %c0_i32_0, %c0_i32_1 : i32, i32, i32, i32
  }
}

</mosaic_0001>

<llo_original>
// kernel: tpu_custom_call.1
$region0: #{tpu_custom_call.1}
  #allocation0 [shape = 'u32[]', space=smem, size = 0x4, offset = 0x4, fixed_abs, tag = 'smem constant byte address 0x4 - core index']
  #allocation1 [shape = 'u32[72,128]{1,0:T(1,128)}', space=vmem, size = 0x9000, scoped, tag = 'internal scratch']
  #allocation2 [shape = 'bf16[14,14,8]{2,1,0:T(8,128)(2,1)}', space=vmem, size = 0xe000, scoped, tag = 'scratch operand']
  #allocation3 [shape = 'bf16[14,14,16]{2,1,0:T(8,128)(2,1)}', space=vmem, size = 0xe000, scoped, tag = 'scratch operand']
  %s0 = inlined_call_operand.vmem [shape: f32[2,12,12,8], index: 0, kind: input, shape index: {}]
  %s1 = inlined_call_operand.vmem [shape: f32[1,8], index: 1, kind: input, shape index: {}]
  %s2 = inlined_call_operand.vmem [shape: f32[1,8], index: 2, kind: input, shape index: {}]
  %s3 = inlined_call_operand.vmem [shape: bf16[72,16], index: 3, kind: input, shape index: {}]
  %s4 = inlined_call_operand.vmem [shape: f32[1,16], index: 4, kind: input, shape index: {}]
  %s5 = inlined_call_operand.vmem [shape: f32[1,16], index: 5, kind: input, shape index: {}]
  %s6 = inlined_call_operand.vmem [shape: bf16[144,16], index: 6, kind: input, shape index: {}]
  %s7 = inlined_call_operand.vmem [shape: bf16[8,16], index: 7, kind: input, shape index: {}]
  %s8 = inlined_call_operand.vmem [shape: f32[16,32], index: 8, kind: input, shape index: {}]
  %s9 = inlined_call_operand.vmem [shape: f32[32,48], index: 9, kind: input, shape index: {}]
  %s10 = inlined_call_operand.vmem [shape: f32[2,12,12,16], index: 10, kind: output, shape index: {}]
  %s11 = sld [smem:[#allocation0]]
  $region73: #{tpu_custom_call.1} parent=0
    _
  %s13 = ssub.s32 1, %s11
  %s14 = scalar_select 0, %s13, %s11
  loop: start=0, step=1, limit=4
  $region2: #{tpu_custom_call.1} parent=0 // loop_pre_header
    _
  $region3: #{tpu_custom_call.1} parent=0 // loop_header
    %s16 = sphi 0, %s20
    %p17 = scmp.ge.s32.totalorder %s16, 4
    %s26 = sphi 0, %s28
    %s29 = sphi 0, %s26
    %s30 = sphi 0, %s29
    %s46 = sphi 0, %s30
    %s50 = sphi 0, %s50
    %s52 = sphi 0, %s50
    %s53 = sphi 0, %s52
    %s67 = sphi 0, %s53
    %s71 = sphi 0, %s71
    %s73 = sphi 0, %s71
    %s74 = sphi 0, %s73
    %s88 = sphi 0, %s74
    %s92 = sphi 0, %s92
    %s94 = sphi 0, %s92
    %s95 = sphi 0, %s94
    %s109 = sphi 0, %s95
    %s113 = sphi 0, %s113
    %s115 = sphi 0, %s113
    %s116 = sphi 0, %s115
    %s130 = sphi 0, %s116
    %s134 = sphi 0, %s134
    %s136 = sphi 0, %s134
    %s137 = sphi 0, %s136
    %s151 = sphi 0, %s137
    %s155 = sphi 0, %s155
    %s157 = sphi 0, %s155
    %s158 = sphi 0, %s157
    %s172 = sphi 0, %s158
    %s176 = sphi 0, %s176
    %s178 = sphi 0, %s176
    %s179 = sphi 0, %s178
    %s193 = sphi 0, %s179
    %s197 = sphi 0, %s197
    %s199 = sphi 0, %s197
    %s200 = sphi 0, %s199
    %s214 = sphi 0, %s200
    %s218 = sphi 0, %s218
    %s220 = sphi 0, %s218
    %s221 = sphi 0, %s220
    %s235 = sphi 0, %s221
    %s241 = sphi 0, %s243
    %s244 = sphi 0, %s241
    %s245 = sphi 0, %s244
    %s261 = sphi 0, %s245
  $region4: #{tpu_custom_call.1} parent=0 // loop_header_branch
    %19 = sbr.rel (%p17) target = $region8
  $region5: #{tpu_custom_call.1} parent=0 // loop_body
    %s21 = ssub.s32 %s16, 1
    %s22 = ssub.s32 %s16, 2
    %s23 = sadd.s32 %s16, 1
    %s24 = ssub.s32 %s16, %s23
    %p25 = scmp.eq.s32.totalorder %s24, 0
    %s27 = sadd.s32 %s26, 1
    %s28 = scalar_select %p25, %s26, %s27
    %p31 = pneg %p25
    %p32 = scmp.eq.s32.totalorder %s16, 1
    %p33 = por %p31, %p32
    %p34 = scmp.ne.s32.totalorder %s26, %s29
    %p35 = scmp.eq.s32.totalorder %s16, 0
    %p36 = por %p34, %p35
    %p37 = scmp.ne.s32.totalorder %s26, %s29
    %p38 = scmp.eq.s32.totalorder %s21, 1
    %p39 = por %p37, %p38
    %p40 = scmp.ne.s32.totalorder %s29, %s30
    %p41 = scmp.eq.s32.totalorder %s21, 0
    %p42 = por %p40, %p41
    %p43 = scmp.ne.s32.totalorder %s29, %s30
    %p44 = scmp.eq.s32.totalorder %s22, 1
    %p45 = por %p43, %p44
    %p47 = scmp.ne.s32.totalorder %s30, %s46
    %p48 = scmp.eq.s32.totalorder %s22, 0
    %p49 = por %p47, %p48
    %s51 = sadd.s32 %s50, 1
    %p54 = scmp.eq.s32.totalorder %s16, 1
    %p55 = scmp.ne.s32.totalorder %s50, %s52
    %p56 = scmp.eq.s32.totalorder %s16, 0
    %p57 = por %p55, %p56
    %p58 = scmp.ne.s32.totalorder %s50, %s52
    %p59 = scmp.eq.s32.totalorder %s21, 1
    %p60 = por %p58, %p59
    %p61 = scmp.ne.s32.totalorder %s52, %s53
    %p62 = scmp.eq.s32.totalorder %s21, 0
    %p63 = por %p61, %p62
    %p64 = scmp.ne.s32.totalorder %s52, %s53
    %p65 = scmp.eq.s32.totalorder %s22, 1
    %p66 = por %p64, %p65
    %p68 = scmp.ne.s32.totalorder %s53, %s67
    %p69 = scmp.eq.s32.totalorder %s22, 0
    %p70 = por %p68, %p69
    %s72 = sadd.s32 %s71, 1
    %p75 = scmp.eq.s32.totalorder %s16, 1
    %p76 = scmp.ne.s32.totalorder %s71, %s73
    %p77 = scmp.eq.s32.totalorder %s16, 0
    %p78 = por %p76, %p77
    %p79 = scmp.ne.s32.totalorder %s71, %s73
    %p80 = scmp.eq.s32.totalorder %s21, 1
    %p81 = por %p79, %p80
    %p82 = scmp.ne.s32.totalorder %s73, %s74
    %p83 = scmp.eq.s32.totalorder %s21, 0
    %p84 = por %p82, %p83
    %p85 = scmp.ne.s32.totalorder %s73, %s74
    %p86 = scmp.eq.s32.totalorder %s22, 1
    %p87 = por %p85, %p86
    %p89 = scmp.ne.s32.totalorder %s74, %s88
    %p90 = scmp.eq.s32.totalorder %s22, 0
    %p91 = por %p89, %p90
    %s93 = sadd.s32 %s92, 1
    %p96 = scmp.eq.s32.totalorder %s16, 1
    %p97 = scmp.ne.s32.totalorder %s92, %s94
    %p98 = scmp.eq.s32.totalorder %s16, 0
    %p99 = por %p97, %p98
    %p100 = scmp.ne.s32.totalorder %s92, %s94
    %p101 = scmp.eq.s32.totalorder %s21, 1
    %p102 = por %p100, %p101
    %p103 = scmp.ne.s32.totalorder %s94, %s95
    %p104 = scmp.eq.s32.totalorder %s21, 0
    %p105 = por %p103, %p104
    %p106 = scmp.ne.s32.totalorder %s94, %s95
    %p107 = scmp.eq.s32.totalorder %s22, 1
    %p108 = por %p106, %p107
    %p110 = scmp.ne.s32.totalorder %s95, %s109
    %p111 = scmp.eq.s32.totalorder %s22, 0
    %p112 = por %p110, %p111
    %s114 = sadd.s32 %s113, 1
    %p117 = scmp.eq.s32.totalorder %s16, 1
    %p118 = scmp.ne.s32.totalorder %s113, %s115
    %p119 = scmp.eq.s32.totalorder %s16, 0
    %p120 = por %p118, %p119
    %p121 = scmp.ne.s32.totalorder %s113, %s115
    %p122 = scmp.eq.s32.totalorder %s21, 1
    %p123 = por %p121, %p122
    %p124 = scmp.ne.s32.totalorder %s115, %s116
    %p125 = scmp.eq.s32.totalorder %s21, 0
    %p126 = por %p124, %p125
    %p127 = scmp.ne.s32.totalorder %s115, %s116
    %p128 = scmp.eq.s32.totalorder %s22, 1
    %p129 = por %p127, %p128
    %p131 = scmp.ne.s32.totalorder %s116, %s130
    %p132 = scmp.eq.s32.totalorder %s22, 0
    %p133 = por %p131, %p132
    %s135 = sadd.s32 %s134, 1
    %p138 = scmp.eq.s32.totalorder %s16, 1
    %p139 = scmp.ne.s32.totalorder %s134, %s136
    %p140 = scmp.eq.s32.totalorder %s16, 0
    %p141 = por %p139, %p140
    %p142 = scmp.ne.s32.totalorder %s134, %s136
    %p143 = scmp.eq.s32.totalorder %s21, 1
    %p144 = por %p142, %p143
    %p145 = scmp.ne.s32.totalorder %s136, %s137
    %p146 = scmp.eq.s32.totalorder %s21, 0
    %p147 = por %p145, %p146
    %p148 = scmp.ne.s32.totalorder %s136, %s137
    %p149 = scmp.eq.s32.totalorder %s22, 1
    %p150 = por %p148, %p149
    %p152 = scmp.ne.s32.totalorder %s137, %s151
    %p153 = scmp.eq.s32.totalorder %s22, 0
    %p154 = por %p152, %p153
    %s156 = sadd.s32 %s155, 1
    %p159 = scmp.eq.s32.totalorder %s16, 1
    %p160 = scmp.ne.s32.totalorder %s155, %s157
    %p161 = scmp.eq.s32.totalorder %s16, 0
    %p162 = por %p160, %p161
    %p163 = scmp.ne.s32.totalorder %s155, %s157
    %p164 = scmp.eq.s32.totalorder %s21, 1
    %p165 = por %p163, %p164
    %p166 = scmp.ne.s32.totalorder %s157, %s158
    %p167 = scmp.eq.s32.totalorder %s21, 0
    %p168 = por %p166, %p167
    %p169 = scmp.ne.s32.totalorder %s157, %s158
    %p170 = scmp.eq.s32.totalorder %s22, 1
    %p171 = por %p169, %p170
    %p173 = scmp.ne.s32.totalorder %s158, %s172
    %p174 = scmp.eq.s32.totalorder %s22, 0
    %p175 = por %p173, %p174
    %s177 = sadd.s32 %s176, 1
    %p180 = scmp.eq.s32.totalorder %s16, 1
    %p181 = scmp.ne.s32.totalorder %s176, %s178
    %p182 = scmp.eq.s32.totalorder %s16, 0
    %p183 = por %p181, %p182
    %p184 = scmp.ne.s32.totalorder %s176, %s178
    %p185 = scmp.eq.s32.totalorder %s21, 1
    %p186 = por %p184, %p185
    %p187 = scmp.ne.s32.totalorder %s178, %s179
    %p188 = scmp.eq.s32.totalorder %s21, 0
    %p189 = por %p187, %p188
    %p190 = scmp.ne.s32.totalorder %s178, %s179
    %p191 = scmp.eq.s32.totalorder %s22, 1
    %p192 = por %p190, %p191
    %p194 = scmp.ne.s32.totalorder %s179, %s193
    %p195 = scmp.eq.s32.totalorder %s22, 0
    %p196 = por %p194, %p195
    %s198 = sadd.s32 %s197, 1
    %p201 = scmp.eq.s32.totalorder %s16, 1
    %p202 = scmp.ne.s32.totalorder %s197, %s199
    %p203 = scmp.eq.s32.totalorder %s16, 0
    %p204 = por %p202, %p203
    %p205 = scmp.ne.s32.totalorder %s197, %s199
    %p206 = scmp.eq.s32.totalorder %s21, 1
    %p207 = por %p205, %p206
    %p208 = scmp.ne.s32.totalorder %s199, %s200
    %p209 = scmp.eq.s32.totalorder %s21, 0
    %p210 = por %p208, %p209
    %p211 = scmp.ne.s32.totalorder %s199, %s200
    %p212 = scmp.eq.s32.totalorder %s22, 1
    %p213 = por %p211, %p212
    %p215 = scmp.ne.s32.totalorder %s200, %s214
    %p216 = scmp.eq.s32.totalorder %s22, 0
    %p217 = por %p215, %p216
    %s219 = sadd.s32 %s218, 1
    %p222 = scmp.eq.s32.totalorder %s16, 1
    %p223 = scmp.ne.s32.totalorder %s218, %s220
    %p224 = scmp.eq.s32.totalorder %s16, 0
    %p225 = por %p223, %p224
    %p226 = scmp.ne.s32.totalorder %s218, %s220
    %p227 = scmp.eq.s32.totalorder %s21, 1
    %p228 = por %p226, %p227
    %p229 = scmp.ne.s32.totalorder %s220, %s221
    %p230 = scmp.eq.s32.totalorder %s21, 0
    %p231 = por %p229, %p230
    %p232 = scmp.ne.s32.totalorder %s220, %s221
    %p233 = scmp.eq.s32.totalorder %s22, 1
    %p234 = por %p232, %p233
    %p236 = scmp.ne.s32.totalorder %s221, %s235
    %p237 = scmp.eq.s32.totalorder %s22, 0
    %p238 = por %p236, %p237
    %s239 = ssub.s32 %s16, %s23
    %p240 = scmp.eq.s32.totalorder %s239, 0
    %s242 = sadd.s32 %s241, 1
    %s243 = scalar_select %p240, %s241, %s242
    %p246 = pneg %p240
    %p247 = scmp.eq.s32.totalorder %s16, 1
    %p248 = por %p246, %p247
    %p249 = scmp.ne.s32.totalorder %s241, %s244
    %p250 = scmp.eq.s32.totalorder %s16, 0
    %p251 = por %p249, %p250
    %p252 = scmp.ne.s32.totalorder %s241, %s244
    %p253 = scmp.eq.s32.totalorder %s21, 1
    %p254 = por %p252, %p253
    %p255 = scmp.ne.s32.totalorder %s244, %s245
    %p256 = scmp.eq.s32.totalorder %s21, 0
    %p257 = por %p255, %p256
    %p258 = scmp.ne.s32.totalorder %s244, %s245
    %p259 = scmp.eq.s32.totalorder %s22, 1
    %p260 = por %p258, %p259
    %p262 = scmp.ne.s32.totalorder %s245, %s261
    %p263 = scmp.eq.s32.totalorder %s22, 0
    %p264 = por %p262, %p263
    %p265 = scmp.le.s32.totalorder 1, %s16
    %p266 = scmp.lt.s32.totalorder %s16, 3
    %p267 = pnand %p265, %p266
    %p268 = pneg %p267
    // Predicated region
    $region9: #{tpu_custom_call.1} parent=5 // pred_check
      _
    $region10: #{tpu_custom_call.1} parent=5 // pred_check_branch
      %270 = sbr.rel (%p267) target = $region12
    $region11: #{tpu_custom_call.1} parent=5 // pred_region
      %s271 = ssub.s32 %s16, 1
      // Predicated region
      $region13: #{tpu_custom_call.1} parent=11 // pred_check
        %p272 = pneg %p63
      $region14: #{tpu_custom_call.1} parent=11 // pred_check_branch
        %274 = sbr.rel (%p272) target = $region16
      $region15: #{tpu_custom_call.1} parent=11 // pred_region
        _
      $region16: #{tpu_custom_call.1} parent=11 // pred_fallthru
        _
      // Predicated region
      $region17: #{tpu_custom_call.1} parent=11 // pred_check
        %p275 = pneg %p84
      $region18: #{tpu_custom_call.1} parent=11 // pred_check_branch
        %277 = sbr.rel (%p275) target = $region20
      $region19: #{tpu_custom_call.1} parent=11 // pred_region
        _
      $region20: #{tpu_custom_call.1} parent=11 // pred_fallthru
        _
      // Predicated region
      $region21: #{tpu_custom_call.1} parent=11 // pred_check
        %p278 = pneg %p105
      $region22: #{tpu_custom_call.1} parent=11 // pred_check_branch
        %280 = sbr.rel (%p278) target = $region24
      $region23: #{tpu_custom_call.1} parent=11 // pred_region
        _
      $region24: #{tpu_custom_call.1} parent=11 // pred_fallthru
        _
      // Predicated region
      $region25: #{tpu_custom_call.1} parent=11 // pred_check
        %p281 = pneg %p126
      $region26: #{tpu_custom_call.1} parent=11 // pred_check_branch
        %283 = sbr.rel (%p281) target = $region28
      $region27: #{tpu_custom_call.1} parent=11 // pred_region
        _
      $region28: #{tpu_custom_call.1} parent=11 // pred_fallthru
        _
      // Predicated region
      $region29: #{tpu_custom_call.1} parent=11 // pred_check
        %p284 = pneg %p147
      $region30: #{tpu_custom_call.1} parent=11 // pred_check_branch
        %286 = sbr.rel (%p284) target = $region32
      $region31: #{tpu_custom_call.1} parent=11 // pred_region
        _
      $region32: #{tpu_custom_call.1} parent=11 // pred_fallthru
        _
      // Predicated region
      $region33: #{tpu_custom_call.1} parent=11 // pred_check
        %p287 = pneg %p168
      $region34: #{tpu_custom_call.1} parent=11 // pred_check_branch
        %289 = sbr.rel (%p287) target = $region36
      $region35: #{tpu_custom_call.1} parent=11 // pred_region
        _
      $region36: #{tpu_custom_call.1} parent=11 // pred_fallthru
        _
      // Predicated region
      $region37: #{tpu_custom_call.1} parent=11 // pred_check
        %p290 = pneg %p189
      $region38: #{tpu_custom_call.1} parent=11 // pred_check_branch
        %292 = sbr.rel (%p290) target = $region40
      $region39: #{tpu_custom_call.1} parent=11 // pred_region
        _
      $region40: #{tpu_custom_call.1} parent=11 // pred_fallthru
        _
      // Predicated region
      $region41: #{tpu_custom_call.1} parent=11 // pred_check
        %p293 = pneg %p210
      $region42: #{tpu_custom_call.1} parent=11 // pred_check_branch
        %295 = sbr.rel (%p293) target = $region44
      $region43: #{tpu_custom_call.1} parent=11 // pred_region
        _
      $region44: #{tpu_custom_call.1} parent=11 // pred_fallthru
        _
      // Predicated region
      $region45: #{tpu_custom_call.1} parent=11 // pred_check
        %p296 = pneg %p231
      $region46: #{tpu_custom_call.1} parent=11 // pred_check_branch
        %298 = sbr.rel (%p296) target = $region48
      $region47: #{tpu_custom_call.1} parent=11 // pred_region
        _
      $region48: #{tpu_custom_call.1} parent=11 // pred_fallthru
        _
    $region12: #{tpu_custom_call.1} parent=5 // pred_fallthru
      _
    %p299 = scmp.lt.s32.totalorder %s16, 2
    // Predicated region
    $region49: #{tpu_custom_call.1} parent=5 // pred_check
      %p300 = pneg %p299
    $region50: #{tpu_custom_call.1} parent=5 // pred_check_branch
      %302 = sbr.rel (%p300) target = $region52
    $region51: #{tpu_custom_call.1} parent=5 // pred_region
      // Predicated region
      $region53: #{tpu_custom_call.1} parent=51 // pred_check
        %p303 = pneg %p36
      $region54: #{tpu_custom_call.1} parent=51 // pred_check_branch
        %305 = sbr.rel (%p303) target = $region56
      $region55: #{tpu_custom_call.1} parent=51 // pred_region
        %p306 = scmp.lt.s32.totalorder %s16, 1
        %s307 = scalar_select %p306, %s16, 1
        %s308 = smul.addr %s307, 24
        %s309 = smul.addr %s308, 8
        %s310 = scalar_lea.vmem %s0, %s309
      $region56: #{tpu_custom_call.1} parent=51 // pred_fallthru
        _
    $region52: #{tpu_custom_call.1} parent=5 // pred_fallthru
      _
    %p311 = scmp.le.s32.totalorder 1, %s16
    %p312 = scmp.lt.s32.totalorder %s16, 3
    %p313 = pnand %p311, %p312
    %p314 = pneg %p313
    // Predicated region
    $region57: #{tpu_custom_call.1} parent=5 // pred_check
      _
    $region58: #{tpu_custom_call.1} parent=5 // pred_check_branch
      %316 = sbr.rel (%p313) target = $region60
    $region59: #{tpu_custom_call.1} parent=5 // pred_region
      %s317 = ssub.s32 %s16, 1
      %p318 = scmp.lt.s32.totalorder %s21, 1
      %s319 = scalar_select %p318, %s21, 1
      %s320 = smul.addr %s319, 24
      %s321 = smul.addr %s320, 8
      %s322 = scalar_lea.vmem %s0, %s321
      %p323 = pneg %p42
      %p324 = pneg %p39
      %p325 = pneg %p63
      %p326 = pneg %p60
      %p327 = pneg %p84
      %p328 = pneg %p81
      %p329 = pneg %p105
      %p330 = pneg %p102
      %p331 = pneg %p126
      %p332 = pneg %p123
      %p333 = pneg %p147
      %p334 = pneg %p144
      %p335 = pneg %p168
      %p336 = pneg %p165
      %p337 = pneg %p189
      %p338 = pneg %p186
      %p339 = pneg %p210
      %p340 = pneg %p207
      %p341 = pneg %p231
      %p342 = pneg %p228
      %p343 = pneg %p257
      %p344 = pneg %p254
      %p345 = scmp.lt.s32.totalorder %s21, 1
      %s346 = scalar_select %p345, %s21, 1
      %s347 = smul.addr %s346, 24
      %s348 = smul.addr %s347, 8
      %s349 = scalar_lea.vmem %s10, %s348
      %p350 = scmp.lt.s32.totalorder %s21, 1
      %s351 = scalar_select %p350, %s21, 1
      %s352 = smul.addr %s351, 24
      %s353 = smul.addr %s352, 8
      %s354 = scalar_lea.vmem %s0, %s353
      %p355 = scmp.lt.s32.totalorder %s21, 1
      %s356 = scalar_select %p355, %s21, 1
      %s357 = smul.addr %s356, 24
      %s358 = smul.addr %s357, 8
      %s359 = scalar_lea.vmem %s10, %s358
      %vm361 = vcmask 60416
      %362 = vst.msk [vmem:[#allocation2] sm:$0xf] %vm361, 0
      %vm363 = vcmask 59392
      %364 = vst.msk [vmem:[#allocation2 + $0x4] sm:$0x7] %vm363, 0
      %s365 = scalar_lea.vmem [#allocation2], 104
      %366 = vst.msk [vmem:[%s365] sm:$0xf] %vm361, 0
      %367 = vst.msk [vmem:[%s365 + $0x4] sm:$0x7] %vm363, 0
      %vm368 = vcmask 57344
      %vm369 = vsmask.f32 256
      %vm370 = vmand %vm368, %vm369
      %v371 = vld [vmem:[#allocation2] sm:$0x1]
      %v372 = vsel %vm370, 0, %v371
      %373 = vst [vmem:[#allocation2] sm:$0x1] %v372
      %v374 = vld [vmem:[#allocation2 + $0x8] sm:$0x1]
      %v375 = vsel %vm370, 0, %v374
      %376 = vst [vmem:[#allocation2 + $0x8] sm:$0x1] %v375
      %v377 = vld [vmem:[#allocation2 + $0x10] sm:$0x1]
      %v378 = vsel %vm370, 0, %v377
      %379 = vst [vmem:[#allocation2 + $0x10] sm:$0x1] %v378
      %v380 = vld [vmem:[#allocation2 + $0x18] sm:$0x1]
      %v381 = vsel %vm370, 0, %v380
      %382 = vst [vmem:[#allocation2 + $0x18] sm:$0x1] %v381
      %v383 = vld [vmem:[#allocation2 + $0x20] sm:$0x1]
      %v384 = vsel %vm370, 0, %v383
      %385 = vst [vmem:[#allocation2 + $0x20] sm:$0x1] %v384
      %v386 = vld [vmem:[#allocation2 + $0x28] sm:$0x1]
      %v387 = vsel %vm370, 0, %v386
      %388 = vst [vmem:[#allocation2 + $0x28] sm:$0x1] %v387
      %v389 = vld [vmem:[#allocation2 + $0x30] sm:$0x1]
      %v390 = vsel %vm370, 0, %v389
      %391 = vst [vmem:[#allocation2 + $0x30] sm:$0x1] %v390
      %v392 = vld [vmem:[#allocation2 + $0x38] sm:$0x1]
      %v393 = vsel %vm370, 0, %v392
      %394 = vst [vmem:[#allocation2 + $0x38] sm:$0x1] %v393
      %v395 = vld [vmem:[#allocation2 + $0x40] sm:$0x1]
      %v396 = vsel %vm370, 0, %v395
      %397 = vst [vmem:[#allocation2 + $0x40] sm:$0x1] %v396
      %v398 = vld [vmem:[#allocation2 + $0x48] sm:$0x1]
      %v399 = vsel %vm370, 0, %v398
      %400 = vst [vmem:[#allocation2 + $0x48] sm:$0x1] %v399
      %v401 = vld [vmem:[#allocation2 + $0x50] sm:$0x1]
      %v402 = vsel %vm370, 0, %v401
      %403 = vst [vmem:[#allocation2 + $0x50] sm:$0x1] %v402
      %v404 = vld [vmem:[#allocation2 + $0x58] sm:$0x1]
      %v405 = vsel %vm370, 0, %v404
      %406 = vst [vmem:[#allocation2 + $0x58] sm:$0x1] %v405
      %v407 = vld [vmem:[#allocation2 + $0x60] sm:$0x1]
      %v408 = vsel %vm370, 0, %v407
      %409 = vst [vmem:[#allocation2 + $0x60] sm:$0x1] %v408
      %v410 = vld [vmem:[#allocation2 + $0x68] sm:$0x1]
      %v411 = vsel %vm370, 0, %v410
      %412 = vst [vmem:[#allocation2 + $0x68] sm:$0x1] %v411
      %vm413 = vcmask 59394
      %vm414 = vsmask.f32 7946
      %vm415 = vmand %vm413, %vm414
      %v416 = vld [vmem:[#allocation2 + $0x4] sm:$0x4]
      %v417 = vsel %vm415, 0, %v416
      %418 = vst [vmem:[#allocation2 + $0x4] sm:$0x4] %v417
      %v419 = vld [vmem:[#allocation2 + $0xc] sm:$0x4]
      %v420 = vsel %vm415, 0, %v419
      %421 = vst [vmem:[#allocation2 + $0xc] sm:$0x4] %v420
      %v422 = vld [vmem:[#allocation2 + $0x14] sm:$0x4]
      %v423 = vsel %vm415, 0, %v422
      %424 = vst [vmem:[#allocation2 + $0x14] sm:$0x4] %v423
      %v425 = vld [vmem:[#allocation2 + $0x1c] sm:$0x4]
      %v426 = vsel %vm415, 0, %v425
      %427 = vst [vmem:[#allocation2 + $0x1c] sm:$0x4] %v426
      %v428 = vld [vmem:[#allocation2 + $0x24] sm:$0x4]
      %v429 = vsel %vm415, 0, %v428
      %430 = vst [vmem:[#allocation2 + $0x24] sm:$0x4] %v429
      %v431 = vld [vmem:[#allocation2 + $0x2c] sm:$0x4]
      %v432 = vsel %vm415, 0, %v431
      %433 = vst [vmem:[#allocation2 + $0x2c] sm:$0x4] %v432
      %v434 = vld [vmem:[#allocation2 + $0x34] sm:$0x4]
      %v435 = vsel %vm415, 0, %v434
      %436 = vst [vmem:[#allocation2 + $0x34] sm:$0x4] %v435
      %v437 = vld [vmem:[#allocation2 + $0x3c] sm:$0x4]
      %v438 = vsel %vm415, 0, %v437
      %439 = vst [vmem:[#allocation2 + $0x3c] sm:$0x4] %v438
      %v440 = vld [vmem:[#allocation2 + $0x44] sm:$0x4]
      %v441 = vsel %vm415, 0, %v440
      %442 = vst [vmem:[#allocation2 + $0x44] sm:$0x4] %v441
      %v443 = vld [vmem:[#allocation2 + $0x4c] sm:$0x4]
      %v444 = vsel %vm415, 0, %v443
      %445 = vst [vmem:[#allocation2 + $0x4c] sm:$0x4] %v444
      %v446 = vld [vmem:[#allocation2 + $0x54] sm:$0x4]
      %v447 = vsel %vm415, 0, %v446
      %448 = vst [vmem:[#allocation2 + $0x54] sm:$0x4] %v447
      %v449 = vld [vmem:[#allocation2 + $0x5c] sm:$0x4]
      %v450 = vsel %vm415, 0, %v449
      %451 = vst [vmem:[#allocation2 + $0x5c] sm:$0x4] %v450
      %v452 = vld [vmem:[#allocation2 + $0x64] sm:$0x4]
      %v453 = vsel %vm415, 0, %v452
      %454 = vst [vmem:[#allocation2 + $0x64] sm:$0x4] %v453
      %v455 = vld [vmem:[#allocation2 + $0x6c] sm:$0x4]
      %v456 = vsel %vm415, 0, %v455
      %457 = vst [vmem:[#allocation2 + $0x6c] sm:$0x4] %v456
      %vm458 = vcmask 125952
      %459 = vst.msk [vmem:[#allocation3] sm:$0xf] %vm458, 0
      %vm460 = vcmask 124928
      %461 = vst.msk [vmem:[#allocation3 + $0x4] sm:$0x7] %vm460, 0
      %s462 = scalar_lea.vmem [#allocation3], 104
      %463 = vst.msk [vmem:[%s462] sm:$0xf] %vm458, 0
      %464 = vst.msk [vmem:[%s462 + $0x4] sm:$0x7] %vm460, 0
      %vm465 = vcmask 122880
      %vm466 = vmand %vm465, %vm369
      %v467 = vld [vmem:[#allocation3] sm:$0x1]
      %v468 = vsel %vm466, 0, %v467
      %469 = vst [vmem:[#allocation3] sm:$0x1] %v468
      %v470 = vld [vmem:[#allocation3 + $0x8] sm:$0x1]
      %v471 = vsel %vm466, 0, %v470
      %472 = vst [vmem:[#allocation3 + $0x8] sm:$0x1] %v471
      %v473 = vld [vmem:[#allocation3 + $0x10] sm:$0x1]
      %v474 = vsel %vm466, 0, %v473
      %475 = vst [vmem:[#allocation3 + $0x10] sm:$0x1] %v474
      %v476 = vld [vmem:[#allocation3 + $0x18] sm:$0x1]
      %v477 = vsel %vm466, 0, %v476
      %478 = vst [vmem:[#allocation3 + $0x18] sm:$0x1] %v477
      %v479 = vld [vmem:[#allocation3 + $0x20] sm:$0x1]
      %v480 = vsel %vm466, 0, %v479
      %481 = vst [vmem:[#allocation3 + $0x20] sm:$0x1] %v480
      %v482 = vld [vmem:[#allocation3 + $0x28] sm:$0x1]
      %v483 = vsel %vm466, 0, %v482
      %484 = vst [vmem:[#allocation3 + $0x28] sm:$0x1] %v483
      %v485 = vld [vmem:[#allocation3 + $0x30] sm:$0x1]
      %v486 = vsel %vm466, 0, %v485
      %487 = vst [vmem:[#allocation3 + $0x30] sm:$0x1] %v486
      %v488 = vld [vmem:[#allocation3 + $0x38] sm:$0x1]
      %v489 = vsel %vm466, 0, %v488
      %490 = vst [vmem:[#allocation3 + $0x38] sm:$0x1] %v489
      %v491 = vld [vmem:[#allocation3 + $0x40] sm:$0x1]
      %v492 = vsel %vm466, 0, %v491
      %493 = vst [vmem:[#allocation3 + $0x40] sm:$0x1] %v492
      %v494 = vld [vmem:[#allocation3 + $0x48] sm:$0x1]
      %v495 = vsel %vm466, 0, %v494
      %496 = vst [vmem:[#allocation3 + $0x48] sm:$0x1] %v495
      %v497 = vld [vmem:[#allocation3 + $0x50] sm:$0x1]
      %v498 = vsel %vm466, 0, %v497
      %499 = vst [vmem:[#allocation3 + $0x50] sm:$0x1] %v498
      %v500 = vld [vmem:[#allocation3 + $0x58] sm:$0x1]
      %v501 = vsel %vm466, 0, %v500
      %502 = vst [vmem:[#allocation3 + $0x58] sm:$0x1] %v501
      %v503 = vld [vmem:[#allocation3 + $0x60] sm:$0x1]
      %v504 = vsel %vm466, 0, %v503
      %505 = vst [vmem:[#allocation3 + $0x60] sm:$0x1] %v504
      %v506 = vld [vmem:[#allocation3 + $0x68] sm:$0x1]
      %v507 = vsel %vm466, 0, %v506
      %508 = vst [vmem:[#allocation3 + $0x68] sm:$0x1] %v507
      %vm509 = vcmask 124930
      %vm510 = vmand %vm509, %vm414
      %v511 = vld [vmem:[#allocation3 + $0x4] sm:$0x4]
      %v512 = vsel %vm510, 0, %v511
      %513 = vst [vmem:[#allocation3 + $0x4] sm:$0x4] %v512
      %v514 = vld [vmem:[#allocation3 + $0xc] sm:$0x4]
      %v515 = vsel %vm510, 0, %v514
      %516 = vst [vmem:[#allocation3 + $0xc] sm:$0x4] %v515
      %v517 = vld [vmem:[#allocation3 + $0x14] sm:$0x4]
      %v518 = vsel %vm510, 0, %v517
      %519 = vst [vmem:[#allocation3 + $0x14] sm:$0x4] %v518
      %v520 = vld [vmem:[#allocation3 + $0x1c] sm:$0x4]
      %v521 = vsel %vm510, 0, %v520
      %522 = vst [vmem:[#allocation3 + $0x1c] sm:$0x4] %v521
      %v523 = vld [vmem:[#allocation3 + $0x24] sm:$0x4]
      %v524 = vsel %vm510, 0, %v523
      %525 = vst [vmem:[#allocation3 + $0x24] sm:$0x4] %v524
      %v526 = vld [vmem:[#allocation3 + $0x2c] sm:$0x4]
      %v527 = vsel %vm510, 0, %v526
      %528 = vst [vmem:[#allocation3 + $0x2c] sm:$0x4] %v527
      %v529 = vld [vmem:[#allocation3 + $0x34] sm:$0x4]
      %v530 = vsel %vm510, 0, %v529
      %531 = vst [vmem:[#allocation3 + $0x34] sm:$0x4] %v530
      %v532 = vld [vmem:[#allocation3 + $0x3c] sm:$0x4]
      %v533 = vsel %vm510, 0, %v532
      %534 = vst [vmem:[#allocation3 + $0x3c] sm:$0x4] %v533
      %v535 = vld [vmem:[#allocation3 + $0x44] sm:$0x4]
      %v536 = vsel %vm510, 0, %v535
      %537 = vst [vmem:[#allocation3 + $0x44] sm:$0x4] %v536
      %v538 = vld [vmem:[#allocation3 + $0x4c] sm:$0x4]
      %v539 = vsel %vm510, 0, %v538
      %540 = vst [vmem:[#allocation3 + $0x4c] sm:$0x4] %v539
      %v541 = vld [vmem:[#allocation3 + $0x54] sm:$0x4]
      %v542 = vsel %vm510, 0, %v541
      %543 = vst [vmem:[#allocation3 + $0x54] sm:$0x4] %v542
      %v544 = vld [vmem:[#allocation3 + $0x5c] sm:$0x4]
      %v545 = vsel %vm510, 0, %v544
      %546 = vst [vmem:[#allocation3 + $0x5c] sm:$0x4] %v545
      %v547 = vld [vmem:[#allocation3 + $0x64] sm:$0x4]
      %v548 = vsel %vm510, 0, %v547
      %549 = vst [vmem:[#allocation3 + $0x64] sm:$0x4] %v548
      %v550 = vld [vmem:[#allocation3 + $0x6c] sm:$0x4]
      %v551 = vsel %vm510, 0, %v550
      %552 = vst [vmem:[#allocation3 + $0x6c] sm:$0x4] %v551
      %v553 = vld [vmem:[%s354] sm:$0xff]
      %v554 = vld [vmem:[%s354 + $0x8] sm:$0xf]
      %v555 = vld [vmem:[%s354 + $0x10] sm:$0xff]
      %v556 = vld [vmem:[%s354 + $0x18] sm:$0xf]
      %v557 = vld [vmem:[%s354 + $0x20] sm:$0xff]
      %v558 = vld [vmem:[%s354 + $0x28] sm:$0xf]
      %v559 = vld [vmem:[%s354 + $0x30] sm:$0xff]
      %v560 = vld [vmem:[%s354 + $0x38] sm:$0xf]
      %v561 = vld [vmem:[%s354 + $0x40] sm:$0xff]
      %v562 = vld [vmem:[%s354 + $0x48] sm:$0xf]
      %v563 = vld [vmem:[%s354 + $0x50] sm:$0xff]
      %v564 = vld [vmem:[%s354 + $0x58] sm:$0xf]
      %v565 = vld [vmem:[%s354 + $0x60] sm:$0xff]
      %v566 = vld [vmem:[%s354 + $0x68] sm:$0xf]
      %v567 = vld [vmem:[%s354 + $0x70] sm:$0xff]
      %v568 = vld [vmem:[%s354 + $0x78] sm:$0xf]
      %v569 = vld [vmem:[%s354 + $0x80] sm:$0xff]
      %v570 = vld [vmem:[%s354 + $0x88] sm:$0xf]
      %v571 = vld [vmem:[%s354 + $0x90] sm:$0xff]
      %v572 = vld [vmem:[%s354 + $0x98] sm:$0xf]
      %v573 = vld [vmem:[%s354 + $0xa0] sm:$0xff]
      %v574 = vld [vmem:[%s354 + $0xa8] sm:$0xf]
      %v575 = vld [vmem:[%s354 + $0xb0] sm:$0xff]
      %v576 = vld [vmem:[%s354 + $0xb8] sm:$0xf]
      %v577 = vld [vmem:[%s1] sm:$0x1]
      %v579 = vperm.slane %v577, 0
      %v581 = vmul.f32 %v553, %v579
      %v582 = vmul.f32 %v554, %v579
      %v583 = vmul.f32 %v555, %v579
      %v584 = vmul.f32 %v556, %v579
      %v585 = vmul.f32 %v557, %v579
      %v586 = vmul.f32 %v558, %v579
      %v587 = vmul.f32 %v559, %v579
      %v588 = vmul.f32 %v560, %v579
      %v589 = vmul.f32 %v561, %v579
      %v590 = vmul.f32 %v562, %v579
      %v591 = vmul.f32 %v563, %v579
      %v592 = vmul.f32 %v564, %v579
      %v593 = vmul.f32 %v565, %v579
      %v594 = vmul.f32 %v566, %v579
      %v595 = vmul.f32 %v567, %v579
      %v596 = vmul.f32 %v568, %v579
      %v597 = vmul.f32 %v569, %v579
      %v598 = vmul.f32 %v570, %v579
      %v599 = vmul.f32 %v571, %v579
      %v600 = vmul.f32 %v572, %v579
      %v601 = vmul.f32 %v573, %v579
      %v602 = vmul.f32 %v574, %v579
      %v603 = vmul.f32 %v575, %v579
      %v604 = vmul.f32 %v576, %v579
      %v605 = vld [vmem:[%s2] sm:$0x1]
      %v607 = vperm.slane %v605, 0
      %v609 = vadd.f32 %v581, %v607
      %v610 = vadd.f32 %v582, %v607
      %v611 = vadd.f32 %v583, %v607
      %v612 = vadd.f32 %v584, %v607
      %v613 = vadd.f32 %v585, %v607
      %v614 = vadd.f32 %v586, %v607
      %v615 = vadd.f32 %v587, %v607
      %v616 = vadd.f32 %v588, %v607
      %v617 = vadd.f32 %v589, %v607
      %v618 = vadd.f32 %v590, %v607
      %v619 = vadd.f32 %v591, %v607
      %v620 = vadd.f32 %v592, %v607
      %v621 = vadd.f32 %v593, %v607
      %v622 = vadd.f32 %v594, %v607
      %v623 = vadd.f32 %v595, %v607
      %v624 = vadd.f32 %v596, %v607
      %v625 = vadd.f32 %v597, %v607
      %v626 = vadd.f32 %v598, %v607
      %v627 = vadd.f32 %v599, %v607
      %v628 = vadd.f32 %v600, %v607
      %v629 = vadd.f32 %v601, %v607
      %v630 = vadd.f32 %v602, %v607
      %v631 = vadd.f32 %v603, %v607
      %v632 = vadd.f32 %v604, %v607
      %v633 = vmax.f32 %v609, 0.0
      %v634 = vmax.f32 %v610, 0.0
      %v635 = vmax.f32 %v611, 0.0
      %v636 = vmax.f32 %v612, 0.0
      %v637 = vmax.f32 %v613, 0.0
      %v638 = vmax.f32 %v614, 0.0
      %v639 = vmax.f32 %v615, 0.0
      %v640 = vmax.f32 %v616, 0.0
      %v641 = vmax.f32 %v617, 0.0
      %v642 = vmax.f32 %v618, 0.0
      %v643 = vmax.f32 %v619, 0.0
      %v644 = vmax.f32 %v620, 0.0
      %v645 = vmax.f32 %v621, 0.0
      %v646 = vmax.f32 %v622, 0.0
      %v647 = vmax.f32 %v623, 0.0
      %v648 = vmax.f32 %v624, 0.0
      %v649 = vmax.f32 %v625, 0.0
      %v650 = vmax.f32 %v626, 0.0
      %v651 = vmax.f32 %v627, 0.0
      %v652 = vmax.f32 %v628, 0.0
      %v653 = vmax.f32 %v629, 0.0
      %v654 = vmax.f32 %v630, 0.0
      %v655 = vmax.f32 %v631, 0.0
      %v656 = vmax.f32 %v632, 0.0
      %v657 = vpack.c.bf16 %v633, %v633
      %v658 = vpack.c.bf16 %v634, %v634
      %v659 = vpack.c.bf16 %v635, %v635
      %v660 = vpack.c.bf16 %v636, %v636
      %v661 = vpack.c.bf16 %v637, %v637
      %v662 = vpack.c.bf16 %v638, %v638
      %v663 = vpack.c.bf16 %v639, %v639
      %v664 = vpack.c.bf16 %v640, %v640
      %v665 = vpack.c.bf16 %v641, %v641
      %v666 = vpack.c.bf16 %v642, %v642
      %v667 = vpack.c.bf16 %v643, %v643
      %v668 = vpack.c.bf16 %v644, %v644
      %v669 = vpack.c.bf16 %v645, %v645
      %v670 = vpack.c.bf16 %v646, %v646
      %v671 = vpack.c.bf16 %v647, %v647
      %v672 = vpack.c.bf16 %v648, %v648
      %v673 = vpack.c.bf16 %v649, %v649
      %v674 = vpack.c.bf16 %v650, %v650
      %v675 = vpack.c.bf16 %v651, %v651
      %v676 = vpack.c.bf16 %v652, %v652
      %v677 = vpack.c.bf16 %v653, %v653
      %v678 = vpack.c.bf16 %v654, %v654
      %v679 = vpack.c.bf16 %v655, %v655
      %v680 = vpack.c.bf16 %v656, %v656
      %v705 = vrot.slane %v657, 2
      %v706 = vrot.slane %v658, 2
      %v707 = vrot.slane %v659, 2
      %v708 = vrot.slane %v660, 2
      %v709 = vrot.slane %v661, 2
      %v710 = vrot.slane %v662, 2
      %v711 = vrot.slane %v663, 2
      %v712 = vrot.slane %v664, 2
      %v713 = vrot.slane %v665, 2
      %v714 = vrot.slane %v666, 2
      %v715 = vrot.slane %v667, 2
      %v716 = vrot.slane %v668, 2
      %v717 = vrot.slane %v669, 2
      %v718 = vrot.slane %v670, 2
      %v719 = vrot.slane %v671, 2
      %v720 = vrot.slane %v672, 2
      %v721 = vrot.slane %v673, 2
      %v722 = vrot.slane %v674, 2
      %v723 = vrot.slane %v675, 2
      %v724 = vrot.slane %v676, 2
      %v725 = vrot.slane %v677, 2
      %v726 = vrot.slane %v678, 2
      %v727 = vrot.slane %v679, 2
      %v728 = vrot.slane %v680, 2
      %vm729 = vcmask 1041408
      %v732 = vsel %vm729, %v657, %v705
      %vm733 = vcmask 1043458
      %v734 = vsel %vm733, %v657, %v705
      %v736 = vrot.slane %v734, 2
      %v739 = vsel %vm729, %v658, %v706
      %v742 = vsel %vm729, %v659, %v707
      %v743 = vsel %vm733, %v659, %v707
      %v745 = vrot.slane %v743, 2
      %v748 = vsel %vm729, %v660, %v708
      %v751 = vsel %vm729, %v661, %v709
      %v752 = vsel %vm733, %v661, %v709
      %v754 = vrot.slane %v752, 2
      %v757 = vsel %vm729, %v662, %v710
      %v760 = vsel %vm729, %v663, %v711
      %v761 = vsel %vm733, %v663, %v711
      %v763 = vrot.slane %v761, 2
      %v766 = vsel %vm729, %v664, %v712
      %v769 = vsel %vm729, %v665, %v713
      %v770 = vsel %vm733, %v665, %v713
      %v772 = vrot.slane %v770, 2
      %v775 = vsel %vm729, %v666, %v714
      %v778 = vsel %vm729, %v667, %v715
      %v779 = vsel %vm733, %v667, %v715
      %v781 = vrot.slane %v779, 2
      %v784 = vsel %vm729, %v668, %v716
      %v787 = vsel %vm729, %v669, %v717
      %v788 = vsel %vm733, %v669, %v717
      %v790 = vrot.slane %v788, 2
      %v793 = vsel %vm729, %v670, %v718
      %v796 = vsel %vm729, %v671, %v719
      %v797 = vsel %vm733, %v671, %v719
      %v799 = vrot.slane %v797, 2
      %v802 = vsel %vm729, %v672, %v720
      %v805 = vsel %vm729, %v673, %v721
      %v806 = vsel %vm733, %v673, %v721
      %v808 = vrot.slane %v806, 2
      %v811 = vsel %vm729, %v674, %v722
      %v814 = vsel %vm729, %v675, %v723
      %v815 = vsel %vm733, %v675, %v723
      %v817 = vrot.slane %v815, 2
      %v820 = vsel %vm729, %v676, %v724
      %v823 = vsel %vm729, %v677, %v725
      %v824 = vsel %vm733, %v677, %v725
      %v826 = vrot.slane %v824, 2
      %v829 = vsel %vm729, %v678, %v726
      %v832 = vsel %vm729, %v679, %v727
      %v833 = vsel %vm733, %v679, %v727
      %v835 = vrot.slane %v833, 2
      %v838 = vsel %vm729, %v680, %v728
      %v839 = vld [vmem:[%s7] sm:$0xf]
      %840 = vst [vmem:[#allocation1] ss:$4 sm:$0xff] %v732
      %s842 = scalar_lea.vmem [#allocation1], 1
      %843 = vst [vmem:[%s842] ss:$4 sm:$0xff] %v736
      %s844 = scalar_lea.vmem [#allocation1], 2
      %845 = vst [vmem:[%s844] ss:$4 sm:$0xff] %v739
      %s846 = scalar_lea.vmem [#allocation1], 3
      %847 = vst [vmem:[%s846] ss:$4 sm:$0xff] %v742
      %s849 = scalar_lea.vmem [#allocation1], 32
      %850 = vst [vmem:[%s849] ss:$4 sm:$0xff] %v745
      %s851 = scalar_lea.vmem [#allocation1], 33
      %852 = vst [vmem:[%s851] ss:$4 sm:$0xff] %v748
      %s853 = scalar_lea.vmem [#allocation1], 34
      %854 = vst [vmem:[%s853] ss:$4 sm:$0xff] %v751
      %s856 = scalar_lea.vmem [#allocation1], 35
      %857 = vst [vmem:[%s856] ss:$4 sm:$0xff] %v754
      %v858 = vld.sshfl [vmem:[#allocation1] sm:$0xff pattern:$0x73625140]
      %v859 = vld.sshfl [vmem:[#allocation1 + $0x20] sm:$0xff pattern:$0x73625140]
      %860 = vst [vmem:[#allocation1] ss:$4 sm:$0xff] %v757
      %861 = vst [vmem:[%s842] ss:$4 sm:$0xff] %v760
      %863 = vst [vmem:[%s844] ss:$4 sm:$0xff] %v763
      %864 = vst [vmem:[%s846] ss:$4 sm:$0xff] %v766
      %865 = vst [vmem:[%s849] ss:$4 sm:$0xff] %v769
      %867 = vst [vmem:[%s851] ss:$4 sm:$0xff] %v772
      %868 = vst [vmem:[%s853] ss:$4 sm:$0xff] %v775
      %869 = vst [vmem:[%s856] ss:$4 sm:$0xff] %v778
      %v870 = vld.sshfl [vmem:[#allocation1] sm:$0xff pattern:$0x73625140]
      %v871 = vld.sshfl [vmem:[#allocation1 + $0x20] sm:$0xff pattern:$0x73625140]
      %873 = vst [vmem:[#allocation1] ss:$4 sm:$0xff] %v781
      %874 = vst [vmem:[%s842] ss:$4 sm:$0xff] %v784
      %875 = vst [vmem:[%s844] ss:$4 sm:$0xff] %v787
      %877 = vst [vmem:[%s846] ss:$4 sm:$0xff] %v790
      %878 = vst [vmem:[%s849] ss:$4 sm:$0xff] %v793
      %879 = vst [vmem:[%s851] ss:$4 sm:$0xff] %v796
      %881 = vst [vmem:[%s853] ss:$4 sm:$0xff] %v799
      %882 = vst [vmem:[%s856] ss:$4 sm:$0xff] %v802
      %v883 = vld.sshfl [vmem:[#allocation1] sm:$0xff pattern:$0x73625140]
      %v884 = vld.sshfl [vmem:[#allocation1 + $0x20] sm:$0xff pattern:$0x73625140]
      %885 = vst [vmem:[#allocation1] ss:$4 sm:$0xff] %v805
      %887 = vst [vmem:[%s842] ss:$4 sm:$0xff] %v808
      %888 = vst [vmem:[%s844] ss:$4 sm:$0xff] %v811
      %889 = vst [vmem:[%s846] ss:$4 sm:$0xff] %v814
      %891 = vst [vmem:[%s849] ss:$4 sm:$0xff] %v817
      %892 = vst [vmem:[%s851] ss:$4 sm:$0xff] %v820
      %893 = vst [vmem:[%s853] ss:$4 sm:$0xff] %v823
      %895 = vst [vmem:[%s856] ss:$4 sm:$0xff] %v826
      %v896 = vld.sshfl [vmem:[#allocation1] sm:$0xff pattern:$0x73625140]
      %v897 = vld.sshfl [vmem:[#allocation1 + $0x20] sm:$0xff pattern:$0x73625140]
      %898 = vst [vmem:[#allocation1] ss:$4 sm:$0xff] %v829
      %899 = vst [vmem:[%s842] ss:$4 sm:$0xff] %v832
      %901 = vst [vmem:[%s844] ss:$4 sm:$0xff] %v835
      %902 = vst [vmem:[%s846] ss:$4 sm:$0xff] %v838
      %v903 = vld.sshfl [vmem:[#allocation1] sm:$0xff pattern:$0x73625140]
      %vm904 = vcmask 64512
      %v905 = vsel %vm904, %v858, 0
      %v907 = vsel %vm904, %v859, 0
      %v909 = vsel %vm904, %v870, 0
      %v911 = vsel %vm904, %v871, 0
      %v913 = vsel %vm904, %v883, 0
      %v915 = vsel %vm904, %v884, 0
      %v917 = vsel %vm904, %v896, 0
      %v919 = vsel %vm904, %v897, 0
      %v921 = vsel %vm904, %v903, 0
      %vm923 = vcmask 1043456
      %v925 = vsel %vm923, %v839, 0
      %927 = vmatpush.bf16.msra.mxu0 0
      %928 = vmatpush.bf16.msra.mxu0 0
      %929 = vmatpush.bf16.msra.mxu0 0
      %930 = vmatpush.bf16.msra.mxu0 0
      %931 = vmatpush.bf16.msra.mxu0 0
      %932 = vmatpush.bf16.msra.mxu0 0
      %933 = vmatpush.bf16.msra.mxu0 0
      %934 = vmatpush.bf16.msra.mxu0 %v925
      %935 = vmatmul.bf16.gmra.mxu0 %v905
      %v936 = vpop.f32.mrf.mxu0
      %v937 = vadd.f32 0.0, %v936
      %v938 = vpop.f32.mrf.mxu0
      %v939 = vadd.f32 0.0, %v938
      %940 = vmatmul.bf16.gmra.mxu0 %v907
      %v941 = vpop.f32.mrf.mxu0
      %v942 = vadd.f32 0.0, %v941
      %v943 = vpop.f32.mrf.mxu0
      %v944 = vadd.f32 0.0, %v943
      %945 = vmatmul.bf16.gmra.mxu0 %v909
      %v946 = vpop.f32.mrf.mxu0
      %v947 = vadd.f32 0.0, %v946
      %v948 = vpop.f32.mrf.mxu0
      %v949 = vadd.f32 0.0, %v948
      %950 = vmatmul.bf16.gmra.mxu0 %v911
      %v951 = vpop.f32.mrf.mxu0
      %v952 = vadd.f32 0.0, %v951
      %v953 = vpop.f32.mrf.mxu0
      %v954 = vadd.f32 0.0, %v953
      %955 = vmatmul.bf16.gmra.mxu0 %v913
      %v956 = vpop.f32.mrf.mxu0
      %v957 = vadd.f32 0.0, %v956
      %v958 = vpop.f32.mrf.mxu0
      %v959 = vadd.f32 0.0, %v958
      %960 = vmatmul.bf16.gmra.mxu0 %v915
      %v961 = vpop.f32.mrf.mxu0
      %v962 = vadd.f32 0.0, %v961
      %v963 = vpop.f32.mrf.mxu0
      %v964 = vadd.f32 0.0, %v963
      %965 = vmatmul.bf16.gmra.mxu0 %v917
      %v966 = vpop.f32.mrf.mxu0
      %v967 = vadd.f32 0.0, %v966
      %v968 = vpop.f32.mrf.mxu0
      %v969 = vadd.f32 0.0, %v968
      %970 = vmatmul.bf16.gmra.mxu0 %v919
      %v971 = vpop.f32.mrf.mxu0
      %v972 = vadd.f32 0.0, %v971
      %v973 = vpop.f32.mrf.mxu0
      %v974 = vadd.f32 0.0, %v973
      %975 = vmatmul.bf16.gmra.mxu0 %v921
      %v976 = vpop.f32.mrf.mxu0
      %v977 = vadd.f32 0.0, %v976
      %v978 = vpop.f32.mrf.mxu0
      %v979 = vadd.f32 0.0, %v978
      %980 = vdwg.mxu0
      %vm981 = vsmask.f32 4368
      %vm982 = vmor %vm369, %vm981
      %v983 = vshrl.u32 %v657, 16
      %v985 = vrot.slane %v983, 7
      %v986 = vshll.u32 %v657, 16
      %v988 = vor.u32 %v985, %v986
      %v989 = vrot.slane %v985, 4
      %v990 = vshrl.u32 %v658, 16
      %v992 = vrot.slane %v990, 7
      %v993 = vshll.u32 %v658, 16
      %v995 = vor.u32 %v992, %v993
      %v996 = vsel %vm982, %v989, %v995
      %v997 = vshrl.u32 %v659, 16
      %v999 = vrot.slane %v997, 7
      %v1000 = vshll.u32 %v659, 16
      %v1002 = vor.u32 %v999, %v1000
      %v1003 = vrot.slane %v999, 4
      %v1004 = vshrl.u32 %v660, 16
      %v1006 = vrot.slane %v1004, 7
      %v1007 = vshll.u32 %v660, 16
      %v1009 = vor.u32 %v1006, %v1007
      %v1010 = vsel %vm982, %v1003, %v1009
      %v1011 = vshrl.u32 %v661, 16
      %v1013 = vrot.slane %v1011, 7
      %v1014 = vshll.u32 %v661, 16
      %v1016 = vor.u32 %v1013, %v1014
      %v1017 = vrot.slane %v1013, 4
      %v1018 = vshrl.u32 %v662, 16
      %v1020 = vrot.slane %v1018, 7
      %v1021 = vshll.u32 %v662, 16
      %v1023 = vor.u32 %v1020, %v1021
      %v1024 = vsel %vm982, %v1017, %v1023
      %v1025 = vshrl.u32 %v663, 16
      %v1027 = vrot.slane %v1025, 7
      %v1028 = vshll.u32 %v663, 16
      %v1030 = vor.u32 %v1027, %v1028
      %v1031 = vrot.slane %v1027, 4
      %v1032 = vshrl.u32 %v664, 16
      %v1034 = vrot.slane %v1032, 7
      %v1035 = vshll.u32 %v664, 16
      %v1037 = vor.u32 %v1034, %v1035
      %v1038 = vsel %vm982, %v1031, %v1037
      %v1039 = vshrl.u32 %v665, 16
      %v1041 = vrot.slane %v1039, 7
      %v1042 = vshll.u32 %v665, 16
      %v1044 = vor.u32 %v1041, %v1042
      %v1045 = vrot.slane %v1041, 4
      %v1046 = vshrl.u32 %v666, 16
      %v1048 = vrot.slane %v1046, 7
      %v1049 = vshll.u32 %v666, 16
      %v1051 = vor.u32 %v1048, %v1049
      %v1052 = vsel %vm982, %v1045, %v1051
      %v1053 = vshrl.u32 %v667, 16
      %v1055 = vrot.slane %v1053, 7
      %v1056 = vshll.u32 %v667, 16
      %v1058 = vor.u32 %v1055, %v1056
      %v1059 = vrot.slane %v1055, 4
      %v1060 = vshrl.u32 %v668, 16
      %v1062 = vrot.slane %v1060, 7
      %v1063 = vshll.u32 %v668, 16
      %v1065 = vor.u32 %v1062, %v1063
      %v1066 = vsel %vm982, %v1059, %v1065
      %v1067 = vshrl.u32 %v669, 16
      %v1069 = vrot.slane %v1067, 7
      %v1070 = vshll.u32 %v669, 16
      %v1072 = vor.u32 %v1069, %v1070
      %v1073 = vrot.slane %v1069, 4
      %v1074 = vshrl.u32 %v670, 16
      %v1076 = vrot.slane %v1074, 7
      %v1077 = vshll.u32 %v670, 16
      %v1079 = vor.u32 %v1076, %v1077
      %v1080 = vsel %vm982, %v1073, %v1079
      %v1081 = vshrl.u32 %v671, 16
      %v1083 = vrot.slane %v1081, 7
      %v1084 = vshll.u32 %v671, 16
      %v1086 = vor.u32 %v1083, %v1084
      %v1087 = vrot.slane %v1083, 4
      %v1088 = vshrl.u32 %v672, 16
      %v1090 = vrot.slane %v1088, 7
      %v1091 = vshll.u32 %v672, 16
      %v1093 = vor.u32 %v1090, %v1091
      %v1094 = vsel %vm982, %v1087, %v1093
      %v1095 = vshrl.u32 %v673, 16
      %v1097 = vrot.slane %v1095, 7
      %v1098 = vshll.u32 %v673, 16
      %v1100 = vor.u32 %v1097, %v1098
      %v1101 = vrot.slane %v1097, 4
      %v1102 = vshrl.u32 %v674, 16
      %v1104 = vrot.slane %v1102, 7
      %v1105 = vshll.u32 %v674, 16
      %v1107 = vor.u32 %v1104, %v1105
      %v1108 = vsel %vm982, %v1101, %v1107
      %v1109 = vshrl.u32 %v675, 16
      %v1111 = vrot.slane %v1109, 7
      %v1112 = vshll.u32 %v675, 16
      %v1114 = vor.u32 %v1111, %v1112
      %v1115 = vrot.slane %v1111, 4
      %v1116 = vshrl.u32 %v676, 16
      %v1118 = vrot.slane %v1116, 7
      %v1119 = vshll.u32 %v676, 16
      %v1121 = vor.u32 %v1118, %v1119
      %v1122 = vsel %vm982, %v1115, %v1121
      %v1123 = vshrl.u32 %v677, 16
      %v1125 = vrot.slane %v1123, 7
      %v1126 = vshll.u32 %v677, 16
      %v1128 = vor.u32 %v1125, %v1126
      %v1129 = vrot.slane %v1125, 4
      %v1130 = vshrl.u32 %v678, 16
      %v1132 = vrot.slane %v1130, 7
      %v1133 = vshll.u32 %v678, 16
      %v1135 = vor.u32 %v1132, %v1133
      %v1136 = vsel %vm982, %v1129, %v1135
      %v1137 = vshrl.u32 %v679, 16
      %v1139 = vrot.slane %v1137, 7
      %v1140 = vshll.u32 %v679, 16
      %v1142 = vor.u32 %v1139, %v1140
      %v1143 = vrot.slane %v1139, 4
      %v1144 = vshrl.u32 %v680, 16
      %v1146 = vrot.slane %v1144, 7
      %v1147 = vshll.u32 %v680, 16
      %v1149 = vor.u32 %v1146, %v1147
      %v1150 = vsel %vm982, %v1143, %v1149
      %s1175 = scalar_lea.vmem [#allocation2], 8
      %vm1176 = vcmask 60416
      %vm1177 = vsmask.f32 7938
      %vm1178 = vmand %vm1176, %vm1177
      %v1179 = vld [vmem:[%s1175] sm:$0xf]
      %v1180 = vsel %vm1178, %v988, %v1179
      %1181 = vst [vmem:[%s1175] sm:$0xf] %v1180
      %vm1182 = vcmask 59392
      %vm1183 = vsmask.f32 2304
      %vm1184 = vmand %vm1182, %vm1183
      %v1185 = vld [vmem:[%s1175 + $0x4] sm:$0x7]
      %v1186 = vsel %vm1184, %v996, %v1185
      %1187 = vst [vmem:[%s1175 + $0x4] sm:$0x7] %v1186
      %v1188 = vld [vmem:[%s1175 + $0x8] sm:$0xf]
      %v1189 = vsel %vm1178, %v1002, %v1188
      %1190 = vst [vmem:[%s1175 + $0x8] sm:$0xf] %v1189
      %v1191 = vld [vmem:[%s1175 + $0xc] sm:$0x7]
      %v1192 = vsel %vm1184, %v1010, %v1191
      %1193 = vst [vmem:[%s1175 + $0xc] sm:$0x7] %v1192
      %v1194 = vld [vmem:[%s1175 + $0x10] sm:$0xf]
      %v1195 = vsel %vm1178, %v1016, %v1194
      %1196 = vst [vmem:[%s1175 + $0x10] sm:$0xf] %v1195
      %v1197 = vld [vmem:[%s1175 + $0x14] sm:$0x7]
      %v1198 = vsel %vm1184, %v1024, %v1197
      %1199 = vst [vmem:[%s1175 + $0x14] sm:$0x7] %v1198
      %v1200 = vld [vmem:[%s1175 + $0x18] sm:$0xf]
      %v1201 = vsel %vm1178, %v1030, %v1200
      %1202 = vst [vmem:[%s1175 + $0x18] sm:$0xf] %v1201
      %v1203 = vld [vmem:[%s1175 + $0x1c] sm:$0x7]
      %v1204 = vsel %vm1184, %v1038, %v1203
      %1205 = vst [vmem:[%s1175 + $0x1c] sm:$0x7] %v1204
      %v1206 = vld [vmem:[%s1175 + $0x20] sm:$0xf]
      %v1207 = vsel %vm1178, %v1044, %v1206
      %1208 = vst [vmem:[%s1175 + $0x20] sm:$0xf] %v1207
      %v1209 = vld [vmem:[%s1175 + $0x24] sm:$0x7]
      %v1210 = vsel %vm1184, %v1052, %v1209
      %1211 = vst [vmem:[%s1175 + $0x24] sm:$0x7] %v1210
      %v1212 = vld [vmem:[%s1175 + $0x28] sm:$0xf]
      %v1213 = vsel %vm1178, %v1058, %v1212
      %1214 = vst [vmem:[%s1175 + $0x28] sm:$0xf] %v1213
      %v1215 = vld [vmem:[%s1175 + $0x2c] sm:$0x7]
      %v1216 = vsel %vm1184, %v1066, %v1215
      %1217 = vst [vmem:[%s1175 + $0x2c] sm:$0x7] %v1216
      %v1218 = vld [vmem:[%s1175 + $0x30] sm:$0xf]
      %v1219 = vsel %vm1178, %v1072, %v1218
      %1220 = vst [vmem:[%s1175 + $0x30] sm:$0xf] %v1219
      %v1221 = vld [vmem:[%s1175 + $0x34] sm:$0x7]
      %v1222 = vsel %vm1184, %v1080, %v1221
      %1223 = vst [vmem:[%s1175 + $0x34] sm:$0x7] %v1222
      %v1224 = vld [vmem:[%s1175 + $0x38] sm:$0xf]
      %v1225 = vsel %vm1178, %v1086, %v1224
      %1226 = vst [vmem:[%s1175 + $0x38] sm:$0xf] %v1225
      %v1227 = vld [vmem:[%s1175 + $0x3c] sm:$0x7]
      %v1228 = vsel %vm1184, %v1094, %v1227
      %1229 = vst [vmem:[%s1175 + $0x3c] sm:$0x7] %v1228
      %v1230 = vld [vmem:[%s1175 + $0x40] sm:$0xf]
      %v1231 = vsel %vm1178, %v1100, %v1230
      %1232 = vst [vmem:[%s1175 + $0x40] sm:$0xf] %v1231
      %v1233 = vld [vmem:[%s1175 + $0x44] sm:$0x7]
      %v1234 = vsel %vm1184, %v1108, %v1233
      %1235 = vst [vmem:[%s1175 + $0x44] sm:$0x7] %v1234
      %v1236 = vld [vmem:[%s1175 + $0x48] sm:$0xf]
      %v1237 = vsel %vm1178, %v1114, %v1236
      %1238 = vst [vmem:[%s1175 + $0x48] sm:$0xf] %v1237
      %v1239 = vld [vmem:[%s1175 + $0x4c] sm:$0x7]
      %v1240 = vsel %vm1184, %v1122, %v1239
      %1241 = vst [vmem:[%s1175 + $0x4c] sm:$0x7] %v1240
      %v1242 = vld [vmem:[%s1175 + $0x50] sm:$0xf]
      %v1243 = vsel %vm1178, %v1128, %v1242
      %1244 = vst [vmem:[%s1175 + $0x50] sm:$0xf] %v1243
      %v1245 = vld [vmem:[%s1175 + $0x54] sm:$0x7]
      %v1246 = vsel %vm1184, %v1136, %v1245
      %1247 = vst [vmem:[%s1175 + $0x54] sm:$0x7] %v1246
      %v1248 = vld [vmem:[%s1175 + $0x58] sm:$0xf]
      %v1249 = vsel %vm1178, %v1142, %v1248
      %1250 = vst [vmem:[%s1175 + $0x58] sm:$0xf] %v1249
      %v1251 = vld [vmem:[%s1175 + $0x5c] sm:$0x7]
      %v1252 = vsel %vm1184, %v1150, %v1251
      %1253 = vst [vmem:[%s1175 + $0x5c] sm:$0x7] %v1252
      %v1254 = vld [vmem:[#allocation2] sm:$0xf]
      %v1255 = vld [vmem:[#allocation2 + $0x4] sm:$0x3]
      %v1256 = vld [vmem:[#allocation2 + $0x8] sm:$0xf]
      %v1257 = vld [vmem:[#allocation2 + $0xc] sm:$0x3]
      %v1258 = vld [vmem:[#allocation2 + $0x10] sm:$0xf]
      %v1259 = vld [vmem:[#allocation2 + $0x14] sm:$0x3]
      %v1260 = vld [vmem:[#allocation2 + $0x18] sm:$0xf]
      %v1261 = vld [vmem:[#allocation2 + $0x1c] sm:$0x3]
      %v1262 = vld [vmem:[#allocation2 + $0x20] sm:$0xf]
      %v1263 = vld [vmem:[#allocation2 + $0x24] sm:$0x3]
      %v1264 = vld [vmem:[#allocation2 + $0x28] sm:$0xf]
      %v1265 = vld [vmem:[#allocation2 + $0x2c] sm:$0x3]
      %v1266 = vld [vmem:[#allocation2 + $0x30] sm:$0xf]
      %v1267 = vld [vmem:[#allocation2 + $0x34] sm:$0x3]
      %v1268 = vld [vmem:[#allocation2 + $0x38] sm:$0xf]
      %v1269 = vld [vmem:[#allocation2 + $0x3c] sm:$0x3]
      %v1270 = vld [vmem:[#allocation2 + $0x40] sm:$0xf]
      %v1271 = vld [vmem:[#allocation2 + $0x44] sm:$0x3]
      %v1272 = vld [vmem:[#allocation2 + $0x48] sm:$0xf]
      %v1273 = vld [vmem:[#allocation2 + $0x4c] sm:$0x3]
      %v1274 = vld [vmem:[#allocation2 + $0x50] sm:$0xf]
      %v1275 = vld [vmem:[#allocation2 + $0x54] sm:$0x3]
      %v1276 = vld [vmem:[#allocation2 + $0x58] sm:$0xf]
      %v1277 = vld [vmem:[#allocation2 + $0x5c] sm:$0x3]
      %v1278 = vld [vmem:[#allocation2 + $0x4] sm:$0x7]
      %v1279 = vld [vmem:[#allocation2 + $0xc] sm:$0x7]
      %v1280 = vld [vmem:[#allocation2 + $0x14] sm:$0x7]
      %v1281 = vld [vmem:[#allocation2 + $0x1c] sm:$0x7]
      %v1282 = vld [vmem:[#allocation2 + $0x24] sm:$0x7]
      %v1283 = vld [vmem:[#allocation2 + $0x2c] sm:$0x7]
      %v1284 = vld [vmem:[#allocation2 + $0x34] sm:$0x7]
      %v1285 = vld [vmem:[#allocation2 + $0x3c] sm:$0x7]
      %v1286 = vld [vmem:[#allocation2 + $0x44] sm:$0x7]
      %v1287 = vld [vmem:[#allocation2 + $0x4c] sm:$0x7]
      %v1288 = vld [vmem:[#allocation2 + $0x54] sm:$0x7]
      %v1289 = vld [vmem:[#allocation2 + $0x5c] sm:$0x7]
      %v1290 = vld [vmem:[#allocation2] sm:$0xe]
      %v1291 = vld [vmem:[#allocation2 + $0x8] sm:$0xe]
      %v1292 = vld [vmem:[#allocation2 + $0x10] sm:$0xe]
      %v1293 = vld [vmem:[#allocation2 + $0x18] sm:$0xe]
      %v1294 = vld [vmem:[#allocation2 + $0x20] sm:$0xe]
      %v1295 = vld [vmem:[#allocation2 + $0x28] sm:$0xe]
      %v1296 = vld [vmem:[#allocation2 + $0x30] sm:$0xe]
      %v1297 = vld [vmem:[#allocation2 + $0x38] sm:$0xe]
      %v1298 = vld [vmem:[#allocation2 + $0x40] sm:$0xe]
      %v1299 = vld [vmem:[#allocation2 + $0x48] sm:$0xe]
      %v1300 = vld [vmem:[#allocation2 + $0x50] sm:$0xe]
      %v1301 = vld [vmem:[#allocation2 + $0x58] sm:$0xe]
      %v1302 = vld [vmem:[%s1175] sm:$0xf]
      %v1303 = vld [vmem:[%s1175 + $0x4] sm:$0x3]
      %v1304 = vld [vmem:[%s1175 + $0x8] sm:$0xf]
      %v1305 = vld [vmem:[%s1175 + $0xc] sm:$0x3]
      %v1306 = vld [vmem:[%s1175 + $0x10] sm:$0xf]
      %v1307 = vld [vmem:[%s1175 + $0x14] sm:$0x3]
      %v1308 = vld [vmem:[%s1175 + $0x18] sm:$0xf]
      %v1309 = vld [vmem:[%s1175 + $0x1c] sm:$0x3]
      %v1310 = vld [vmem:[%s1175 + $0x20] sm:$0xf]
      %v1311 = vld [vmem:[%s1175 + $0x24] sm:$0x3]
      %v1312 = vld [vmem:[%s1175 + $0x28] sm:$0xf]
      %v1313 = vld [vmem:[%s1175 + $0x2c] sm:$0x3]
      %v1314 = vld [vmem:[%s1175 + $0x30] sm:$0xf]
      %v1315 = vld [vmem:[%s1175 + $0x34] sm:$0x3]
      %v1316 = vld [vmem:[%s1175 + $0x38] sm:$0xf]
      %v1317 = vld [vmem:[%s1175 + $0x3c] sm:$0x3]
      %v1318 = vld [vmem:[%s1175 + $0x40] sm:$0xf]
      %v1319 = vld [vmem:[%s1175 + $0x44] sm:$0x3]
      %v1320 = vld [vmem:[%s1175 + $0x48] sm:$0xf]
      %v1321 = vld [vmem:[%s1175 + $0x4c] sm:$0x3]
      %v1322 = vld [vmem:[%s1175 + $0x50] sm:$0xf]
      %v1323 = vld [vmem:[%s1175 + $0x54] sm:$0x3]
      %v1324 = vld [vmem:[%s1175 + $0x58] sm:$0xf]
      %v1325 = vld [vmem:[%s1175 + $0x5c] sm:$0x3]
      %v1326 = vld [vmem:[%s1175 + $0x4] sm:$0x7]
      %v1327 = vld [vmem:[%s1175 + $0xc] sm:$0x7]
      %v1328 = vld [vmem:[%s1175 + $0x14] sm:$0x7]
      %v1329 = vld [vmem:[%s1175 + $0x1c] sm:$0x7]
      %v1330 = vld [vmem:[%s1175 + $0x24] sm:$0x7]
      %v1331 = vld [vmem:[%s1175 + $0x2c] sm:$0x7]
      %v1332 = vld [vmem:[%s1175 + $0x34] sm:$0x7]
      %v1333 = vld [vmem:[%s1175 + $0x3c] sm:$0x7]
      %v1334 = vld [vmem:[%s1175 + $0x44] sm:$0x7]
      %v1335 = vld [vmem:[%s1175 + $0x4c] sm:$0x7]
      %v1336 = vld [vmem:[%s1175 + $0x54] sm:$0x7]
      %v1337 = vld [vmem:[%s1175 + $0x5c] sm:$0x7]
      %v1338 = vld [vmem:[%s1175] sm:$0xe]
      %v1339 = vld [vmem:[%s1175 + $0x8] sm:$0xe]
      %v1340 = vld [vmem:[%s1175 + $0x10] sm:$0xe]
      %v1341 = vld [vmem:[%s1175 + $0x18] sm:$0xe]
      %v1342 = vld [vmem:[%s1175 + $0x20] sm:$0xe]
      %v1343 = vld [vmem:[%s1175 + $0x28] sm:$0xe]
      %v1344 = vld [vmem:[%s1175 + $0x30] sm:$0xe]
      %v1345 = vld [vmem:[%s1175 + $0x38] sm:$0xe]
      %v1346 = vld [vmem:[%s1175 + $0x40] sm:$0xe]
      %v1347 = vld [vmem:[%s1175 + $0x48] sm:$0xe]
      %v1348 = vld [vmem:[%s1175 + $0x50] sm:$0xe]
      %v1349 = vld [vmem:[%s1175 + $0x58] sm:$0xe]
      %s1350 = scalar_lea.vmem [#allocation2], 16
      %v1351 = vld [vmem:[%s1350] sm:$0xf]
      %v1352 = vld [vmem:[%s1350 + $0x4] sm:$0x3]
      %v1353 = vld [vmem:[%s1350 + $0x8] sm:$0xf]
      %v1354 = vld [vmem:[%s1350 + $0xc] sm:$0x3]
      %v1355 = vld [vmem:[%s1350 + $0x10] sm:$0xf]
      %v1356 = vld [vmem:[%s1350 + $0x14] sm:$0x3]
      %v1357 = vld [vmem:[%s1350 + $0x18] sm:$0xf]
      %v1358 = vld [vmem:[%s1350 + $0x1c] sm:$0x3]
      %v1359 = vld [vmem:[%s1350 + $0x20] sm:$0xf]
      %v1360 = vld [vmem:[%s1350 + $0x24] sm:$0x3]
      %v1361 = vld [vmem:[%s1350 + $0x28] sm:$0xf]
      %v1362 = vld [vmem:[%s1350 + $0x2c] sm:$0x3]
      %v1363 = vld [vmem:[%s1350 + $0x30] sm:$0xf]
      %v1364 = vld [vmem:[%s1350 + $0x34] sm:$0x3]
      %v1365 = vld [vmem:[%s1350 + $0x38] sm:$0xf]
      %v1366 = vld [vmem:[%s1350 + $0x3c] sm:$0x3]
      %v1367 = vld [vmem:[%s1350 + $0x40] sm:$0xf]
      %v1368 = vld [vmem:[%s1350 + $0x44] sm:$0x3]
      %v1369 = vld [vmem:[%s1350 + $0x48] sm:$0xf]
      %v1370 = vld [vmem:[%s1350 + $0x4c] sm:$0x3]
      %v1371 = vld [vmem:[%s1350 + $0x50] sm:$0xf]
      %v1372 = vld [vmem:[%s1350 + $0x54] sm:$0x3]
      %v1373 = vld [vmem:[%s1350 + $0x58] sm:$0xf]
      %v1374 = vld [vmem:[%s1350 + $0x5c] sm:$0x3]
      %v1375 = vld [vmem:[%s1350 + $0x4] sm:$0x7]
      %v1376 = vld [vmem:[%s1350 + $0xc] sm:$0x7]
      %v1377 = vld [vmem:[%s1350 + $0x14] sm:$0x7]
      %v1378 = vld [vmem:[%s1350 + $0x1c] sm:$0x7]
      %v1379 = vld [vmem:[%s1350 + $0x24] sm:$0x7]
      %v1380 = vld [vmem:[%s1350 + $0x2c] sm:$0x7]
      %v1381 = vld [vmem:[%s1350 + $0x34] sm:$0x7]
      %v1382 = vld [vmem:[%s1350 + $0x3c] sm:$0x7]
      %v1383 = vld [vmem:[%s1350 + $0x44] sm:$0x7]
      %v1384 = vld [vmem:[%s1350 + $0x4c] sm:$0x7]
      %v1385 = vld [vmem:[%s1350 + $0x54] sm:$0x7]
      %v1386 = vld [vmem:[%s1350 + $0x5c] sm:$0x7]
      %v1387 = vld [vmem:[%s1350] sm:$0xe]
      %v1388 = vld [vmem:[%s1350 + $0x8] sm:$0xe]
      %v1389 = vld [vmem:[%s1350 + $0x10] sm:$0xe]
      %v1390 = vld [vmem:[%s1350 + $0x18] sm:$0xe]
      %v1391 = vld [vmem:[%s1350 + $0x20] sm:$0xe]
      %v1392 = vld [vmem:[%s1350 + $0x28] sm:$0xe]
      %v1393 = vld [vmem:[%s1350 + $0x30] sm:$0xe]
      %v1394 = vld [vmem:[%s1350 + $0x38] sm:$0xe]
      %v1395 = vld [vmem:[%s1350 + $0x40] sm:$0xe]
      %v1396 = vld [vmem:[%s1350 + $0x48] sm:$0xe]
      %v1397 = vld [vmem:[%s1350 + $0x50] sm:$0xe]
      %v1398 = vld [vmem:[%s1350 + $0x58] sm:$0xe]
      %v1423 = vunpack.c.l.b16 %v1254
      %v1424 = vunpack.c.l.b16 %v1255
      %v1425 = vunpack.c.l.b16 %v1256
      %v1426 = vunpack.c.l.b16 %v1257
      %v1427 = vunpack.c.l.b16 %v1258
      %v1428 = vunpack.c.l.b16 %v1259
      %v1429 = vunpack.c.l.b16 %v1260
      %v1430 = vunpack.c.l.b16 %v1261
      %v1431 = vunpack.c.l.b16 %v1262
      %v1432 = vunpack.c.l.b16 %v1263
      %v1433 = vunpack.c.l.b16 %v1264
      %v1434 = vunpack.c.l.b16 %v1265
      %v1435 = vunpack.c.l.b16 %v1266
      %v1436 = vunpack.c.l.b16 %v1267
      %v1437 = vunpack.c.l.b16 %v1268
      %v1438 = vunpack.c.l.b16 %v1269
      %v1439 = vunpack.c.l.b16 %v1270
      %v1440 = vunpack.c.l.b16 %v1271
      %v1441 = vunpack.c.l.b16 %v1272
      %v1442 = vunpack.c.l.b16 %v1273
      %v1443 = vunpack.c.l.b16 %v1274
      %v1444 = vunpack.c.l.b16 %v1275
      %v1445 = vunpack.c.l.b16 %v1276
      %v1446 = vunpack.c.l.b16 %v1277
      %v1447 = vpack.c.b16 %v1424, %v1423
      %v1448 = vpack.c.b16 %v1426, %v1425
      %v1449 = vpack.c.b16 %v1428, %v1427
      %v1450 = vpack.c.b16 %v1430, %v1429
      %v1451 = vpack.c.b16 %v1432, %v1431
      %v1452 = vpack.c.b16 %v1434, %v1433
      %v1453 = vpack.c.b16 %v1436, %v1435
      %v1454 = vpack.c.b16 %v1438, %v1437
      %v1455 = vpack.c.b16 %v1440, %v1439
      %v1456 = vpack.c.b16 %v1442, %v1441
      %v1457 = vpack.c.b16 %v1444, %v1443
      %v1458 = vpack.c.b16 %v1446, %v1445
      %v1471 = vunpack.c.l.b16 %v1278
      %v1472 = vunpack.c.l.b16 %v1279
      %v1473 = vunpack.c.l.b16 %v1280
      %v1474 = vunpack.c.l.b16 %v1281
      %v1475 = vunpack.c.l.b16 %v1282
      %v1476 = vunpack.c.l.b16 %v1283
      %v1477 = vunpack.c.l.b16 %v1284
      %v1478 = vunpack.c.l.b16 %v1285
      %v1479 = vunpack.c.l.b16 %v1286
      %v1480 = vunpack.c.l.b16 %v1287
      %v1481 = vunpack.c.l.b16 %v1288
      %v1482 = vunpack.c.l.b16 %v1289
      %v1483 = vpack.c.b16 %v1471, %v1423
      %v1484 = vpack.c.b16 %v1472, %v1425
      %v1485 = vpack.c.b16 %v1473, %v1427
      %v1486 = vpack.c.b16 %v1474, %v1429
      %v1487 = vpack.c.b16 %v1475, %v1431
      %v1488 = vpack.c.b16 %v1476, %v1433
      %v1489 = vpack.c.b16 %v1477, %v1435
      %v1490 = vpack.c.b16 %v1478, %v1437
      %v1491 = vpack.c.b16 %v1479, %v1439
      %v1492 = vpack.c.b16 %v1480, %v1441
      %v1493 = vpack.c.b16 %v1481, %v1443
      %v1494 = vpack.c.b16 %v1482, %v1445
      %v1496 = vshrl.u32 %v1483, 16
      %v1498 = vshll.u32 %v1483, 16
      %v1500 = vrot.slane %v1498, 1
      %v1501 = vor.u32 %v1496, %v1500
      %v1503 = vshrl.u32 %v1484, 16
      %v1505 = vshll.u32 %v1484, 16
      %v1507 = vrot.slane %v1505, 1
      %v1508 = vor.u32 %v1503, %v1507
      %v1510 = vshrl.u32 %v1485, 16
      %v1512 = vshll.u32 %v1485, 16
      %v1514 = vrot.slane %v1512, 1
      %v1515 = vor.u32 %v1510, %v1514
      %v1517 = vshrl.u32 %v1486, 16
      %v1519 = vshll.u32 %v1486, 16
      %v1521 = vrot.slane %v1519, 1
      %v1522 = vor.u32 %v1517, %v1521
      %v1524 = vshrl.u32 %v1487, 16
      %v1526 = vshll.u32 %v1487, 16
      %v1528 = vrot.slane %v1526, 1
      %v1529 = vor.u32 %v1524, %v1528
      %v1531 = vshrl.u32 %v1488, 16
      %v1533 = vshll.u32 %v1488, 16
      %v1535 = vrot.slane %v1533, 1
      %v1536 = vor.u32 %v1531, %v1535
      %v1538 = vshrl.u32 %v1489, 16
      %v1540 = vshll.u32 %v1489, 16
      %v1542 = vrot.slane %v1540, 1
      %v1543 = vor.u32 %v1538, %v1542
      %v1545 = vshrl.u32 %v1490, 16
      %v1547 = vshll.u32 %v1490, 16
      %v1549 = vrot.slane %v1547, 1
      %v1550 = vor.u32 %v1545, %v1549
      %v1552 = vshrl.u32 %v1491, 16
      %v1554 = vshll.u32 %v1491, 16
      %v1556 = vrot.slane %v1554, 1
      %v1557 = vor.u32 %v1552, %v1556
      %v1559 = vshrl.u32 %v1492, 16
      %v1561 = vshll.u32 %v1492, 16
      %v1563 = vrot.slane %v1561, 1
      %v1564 = vor.u32 %v1559, %v1563
      %v1566 = vshrl.u32 %v1493, 16
      %v1568 = vshll.u32 %v1493, 16
      %v1570 = vrot.slane %v1568, 1
      %v1571 = vor.u32 %v1566, %v1570
      %v1573 = vshrl.u32 %v1494, 16
      %v1575 = vshll.u32 %v1494, 16
      %v1577 = vrot.slane %v1575, 1
      %v1578 = vor.u32 %v1573, %v1577
      %1579 = vrot.lane.b32.xlu0 %v1501, 8
      %v1580 = vpop.permute.xlu0 %1579
      %1581 = vrot.lane.b32.xlu0 %v1508, 8
      %v1582 = vpop.permute.xlu0 %1581
      %1583 = vrot.lane.b32.xlu0 %v1515, 8
      %v1584 = vpop.permute.xlu0 %1583
      %1585 = vrot.lane.b32.xlu0 %v1522, 8
      %v1586 = vpop.permute.xlu0 %1585
      %1587 = vrot.lane.b32.xlu0 %v1529, 8
      %v1588 = vpop.permute.xlu0 %1587
      %1589 = vrot.lane.b32.xlu0 %v1536, 8
      %v1590 = vpop.permute.xlu0 %1589
      %1591 = vrot.lane.b32.xlu0 %v1543, 8
      %v1592 = vpop.permute.xlu0 %1591
      %1593 = vrot.lane.b32.xlu0 %v1550, 8
      %v1594 = vpop.permute.xlu0 %1593
      %1595 = vrot.lane.b32.xlu0 %v1557, 8
      %v1596 = vpop.permute.xlu0 %1595
      %1597 = vrot.lane.b32.xlu0 %v1564, 8
      %v1598 = vpop.permute.xlu0 %1597
      %1599 = vrot.lane.b32.xlu0 %v1571, 8
      %v1600 = vpop.permute.xlu0 %1599
      %1601 = vrot.lane.b32.xlu0 %v1578, 8
      %v1602 = vpop.permute.xlu0 %1601
      %v1615 = vunpack.c.l.b16 %v1290
      %v1616 = vunpack.c.l.b16 %v1291
      %v1617 = vunpack.c.l.b16 %v1292
      %v1618 = vunpack.c.l.b16 %v1293
      %v1619 = vunpack.c.l.b16 %v1294
      %v1620 = vunpack.c.l.b16 %v1295
      %v1621 = vunpack.c.l.b16 %v1296
      %v1622 = vunpack.c.l.b16 %v1297
      %v1623 = vunpack.c.l.b16 %v1298
      %v1624 = vunpack.c.l.b16 %v1299
      %v1625 = vunpack.c.l.b16 %v1300
      %v1626 = vunpack.c.l.b16 %v1301
      %v1627 = vpack.c.b16 %v1471, %v1615
      %v1628 = vpack.c.b16 %v1472, %v1616
      %v1629 = vpack.c.b16 %v1473, %v1617
      %v1630 = vpack.c.b16 %v1474, %v1618
      %v1631 = vpack.c.b16 %v1475, %v1619
      %v1632 = vpack.c.b16 %v1476, %v1620
      %v1633 = vpack.c.b16 %v1477, %v1621
      %v1634 = vpack.c.b16 %v1478, %v1622
      %v1635 = vpack.c.b16 %v1479, %v1623
      %v1636 = vpack.c.b16 %v1480, %v1624
      %v1637 = vpack.c.b16 %v1481, %v1625
      %v1638 = vpack.c.b16 %v1482, %v1626
      %v1639 = vrot.slane %v1627, 1
      %v1640 = vrot.slane %v1628, 1
      %v1641 = vrot.slane %v1629, 1
      %v1642 = vrot.slane %v1630, 1
      %v1643 = vrot.slane %v1631, 1
      %v1644 = vrot.slane %v1632, 1
      %v1645 = vrot.slane %v1633, 1
      %v1646 = vrot.slane %v1634, 1
      %v1647 = vrot.slane %v1635, 1
      %v1648 = vrot.slane %v1636, 1
      %v1649 = vrot.slane %v1637, 1
      %v1650 = vrot.slane %v1638, 1
      %1651 = vrot.lane.b32.xlu0 %v1639, 16
      %v1652 = vpop.permute.xlu0 %1651
      %1653 = vrot.lane.b32.xlu0 %v1640, 16
      %v1654 = vpop.permute.xlu0 %1653
      %1655 = vrot.lane.b32.xlu0 %v1641, 16
      %v1656 = vpop.permute.xlu0 %1655
      %1657 = vrot.lane.b32.xlu0 %v1642, 16
      %v1658 = vpop.permute.xlu0 %1657
      %1659 = vrot.lane.b32.xlu0 %v1643, 16
      %v1660 = vpop.permute.xlu0 %1659
      %1661 = vrot.lane.b32.xlu0 %v1644, 16
      %v1662 = vpop.permute.xlu0 %1661
      %1663 = vrot.lane.b32.xlu0 %v1645, 16
      %v1664 = vpop.permute.xlu0 %1663
      %1665 = vrot.lane.b32.xlu0 %v1646, 16
      %v1666 = vpop.permute.xlu0 %1665
      %1667 = vrot.lane.b32.xlu0 %v1647, 16
      %v1668 = vpop.permute.xlu0 %1667
      %1669 = vrot.lane.b32.xlu0 %v1648, 16
      %v1670 = vpop.permute.xlu0 %1669
      %1671 = vrot.lane.b32.xlu0 %v1649, 16
      %v1672 = vpop.permute.xlu0 %1671
      %1673 = vrot.lane.b32.xlu0 %v1650, 16
      %v1674 = vpop.permute.xlu0 %1673
      %v1699 = vunpack.c.l.b16 %v1302
      %v1700 = vunpack.c.l.b16 %v1303
      %v1701 = vunpack.c.l.b16 %v1304
      %v1702 = vunpack.c.l.b16 %v1305
      %v1703 = vunpack.c.l.b16 %v1306
      %v1704 = vunpack.c.l.b16 %v1307
      %v1705 = vunpack.c.l.b16 %v1308
      %v1706 = vunpack.c.l.b16 %v1309
      %v1707 = vunpack.c.l.b16 %v1310
      %v1708 = vunpack.c.l.b16 %v1311
      %v1709 = vunpack.c.l.b16 %v1312
      %v1710 = vunpack.c.l.b16 %v1313
      %v1711 = vunpack.c.l.b16 %v1314
      %v1712 = vunpack.c.l.b16 %v1315
      %v1713 = vunpack.c.l.b16 %v1316
      %v1714 = vunpack.c.l.b16 %v1317
      %v1715 = vunpack.c.l.b16 %v1318
      %v1716 = vunpack.c.l.b16 %v1319
      %v1717 = vunpack.c.l.b16 %v1320
      %v1718 = vunpack.c.l.b16 %v1321
      %v1719 = vunpack.c.l.b16 %v1322
      %v1720 = vunpack.c.l.b16 %v1323
      %v1721 = vunpack.c.l.b16 %v1324
      %v1722 = vunpack.c.l.b16 %v1325
      %v1723 = vpack.c.b16 %v1700, %v1699
      %v1724 = vpack.c.b16 %v1702, %v1701
      %v1725 = vpack.c.b16 %v1704, %v1703
      %v1726 = vpack.c.b16 %v1706, %v1705
      %v1727 = vpack.c.b16 %v1708, %v1707
      %v1728 = vpack.c.b16 %v1710, %v1709
      %v1729 = vpack.c.b16 %v1712, %v1711
      %v1730 = vpack.c.b16 %v1714, %v1713
      %v1731 = vpack.c.b16 %v1716, %v1715
      %v1732 = vpack.c.b16 %v1718, %v1717
      %v1733 = vpack.c.b16 %v1720, %v1719
      %v1734 = vpack.c.b16 %v1722, %v1721
      %1735 = vrot.lane.b32.xlu0 %v1723, 24
      %v1736 = vpop.permute.xlu0 %1735
      %1737 = vrot.lane.b32.xlu0 %v1724, 24
      %v1738 = vpop.permute.xlu0 %1737
      %1739 = vrot.lane.b32.xlu0 %v1725, 24
      %v1740 = vpop.permute.xlu0 %1739
      %1741 = vrot.lane.b32.xlu0 %v1726, 24
      %v1742 = vpop.permute.xlu0 %1741
      %1743 = vrot.lane.b32.xlu0 %v1727, 24
      %v1744 = vpop.permute.xlu0 %1743
      %1745 = vrot.lane.b32.xlu0 %v1728, 24
      %v1746 = vpop.permute.xlu0 %1745
      %1747 = vrot.lane.b32.xlu0 %v1729, 24
      %v1748 = vpop.permute.xlu0 %1747
      %1749 = vrot.lane.b32.xlu0 %v1730, 24
      %v1750 = vpop.permute.xlu0 %1749
      %1751 = vrot.lane.b32.xlu0 %v1731, 24
      %v1752 = vpop.permute.xlu0 %1751
      %1753 = vrot.lane.b32.xlu0 %v1732, 24
      %v1754 = vpop.permute.xlu0 %1753
      %1755 = vrot.lane.b32.xlu0 %v1733, 24
      %v1756 = vpop.permute.xlu0 %1755
      %1757 = vrot.lane.b32.xlu0 %v1734, 24
      %v1758 = vpop.permute.xlu0 %1757
      %v1771 = vunpack.c.l.b16 %v1326
      %v1772 = vunpack.c.l.b16 %v1327
      %v1773 = vunpack.c.l.b16 %v1328
      %v1774 = vunpack.c.l.b16 %v1329
      %v1775 = vunpack.c.l.b16 %v1330
      %v1776 = vunpack.c.l.b16 %v1331
      %v1777 = vunpack.c.l.b16 %v1332
      %v1778 = vunpack.c.l.b16 %v1333
      %v1779 = vunpack.c.l.b16 %v1334
      %v1780 = vunpack.c.l.b16 %v1335
      %v1781 = vunpack.c.l.b16 %v1336
      %v1782 = vunpack.c.l.b16 %v1337
      %v1783 = vpack.c.b16 %v1771, %v1699
      %v1784 = vpack.c.b16 %v1772, %v1701
      %v1785 = vpack.c.b16 %v1773, %v1703
      %v1786 = vpack.c.b16 %v1774, %v1705
      %v1787 = vpack.c.b16 %v1775, %v1707
      %v1788 = vpack.c.b16 %v1776, %v1709
      %v1789 = vpack.c.b16 %v1777, %v1711
      %v1790 = vpack.c.b16 %v1778, %v1713
      %v1791 = vpack.c.b16 %v1779, %v1715
      %v1792 = vpack.c.b16 %v1780, %v1717
      %v1793 = vpack.c.b16 %v1781, %v1719
      %v1794 = vpack.c.b16 %v1782, %v1721
      %v1796 = vshrl.u32 %v1783, 16
      %v1798 = vshll.u32 %v1783, 16
      %v1800 = vrot.slane %v1798, 1
      %v1801 = vor.u32 %v1796, %v1800
      %v1803 = vshrl.u32 %v1784, 16
      %v1805 = vshll.u32 %v1784, 16
      %v1807 = vrot.slane %v1805, 1
      %v1808 = vor.u32 %v1803, %v1807
      %v1810 = vshrl.u32 %v1785, 16
      %v1812 = vshll.u32 %v1785, 16
      %v1814 = vrot.slane %v1812, 1
      %v1815 = vor.u32 %v1810, %v1814
      %v1817 = vshrl.u32 %v1786, 16
      %v1819 = vshll.u32 %v1786, 16
      %v1821 = vrot.slane %v1819, 1
      %v1822 = vor.u32 %v1817, %v1821
      %v1824 = vshrl.u32 %v1787, 16
      %v1826 = vshll.u32 %v1787, 16
      %v1828 = vrot.slane %v1826, 1
      %v1829 = vor.u32 %v1824, %v1828
      %v1831 = vshrl.u32 %v1788, 16
      %v1833 = vshll.u32 %v1788, 16
      %v1835 = vrot.slane %v1833, 1
      %v1836 = vor.u32 %v1831, %v1835
      %v1838 = vshrl.u32 %v1789, 16
      %v1840 = vshll.u32 %v1789, 16
      %v1842 = vrot.slane %v1840, 1
      %v1843 = vor.u32 %v1838, %v1842
      %v1845 = vshrl.u32 %v1790, 16
      %v1847 = vshll.u32 %v1790, 16
      %v1849 = vrot.slane %v1847, 1
      %v1850 = vor.u32 %v1845, %v1849
      %v1852 = vshrl.u32 %v1791, 16
      %v1854 = vshll.u32 %v1791, 16
      %v1856 = vrot.slane %v1854, 1
      %v1857 = vor.u32 %v1852, %v1856
      %v1859 = vshrl.u32 %v1792, 16
      %v1861 = vshll.u32 %v1792, 16
      %v1863 = vrot.slane %v1861, 1
      %v1864 = vor.u32 %v1859, %v1863
      %v1866 = vshrl.u32 %v1793, 16
      %v1868 = vshll.u32 %v1793, 16
      %v1870 = vrot.slane %v1868, 1
      %v1871 = vor.u32 %v1866, %v1870
      %v1873 = vshrl.u32 %v1794, 16
      %v1875 = vshll.u32 %v1794, 16
      %v1877 = vrot.slane %v1875, 1
      %v1878 = vor.u32 %v1873, %v1877
      %1879 = vrot.lane.b32.xlu0 %v1801, 32
      %v1880 = vpop.permute.xlu0 %1879
      %1881 = vrot.lane.b32.xlu0 %v1808, 32
      %v1882 = vpop.permute.xlu0 %1881
      %1883 = vrot.lane.b32.xlu0 %v1815, 32
      %v1884 = vpop.permute.xlu0 %1883
      %1885 = vrot.lane.b32.xlu0 %v1822, 32
      %v1886 = vpop.permute.xlu0 %1885
      %1887 = vrot.lane.b32.xlu0 %v1829, 32
      %v1888 = vpop.permute.xlu0 %1887
      %1889 = vrot.lane.b32.xlu0 %v1836, 32
      %v1890 = vpop.permute.xlu0 %1889
      %1891 = vrot.lane.b32.xlu0 %v1843, 32
      %v1892 = vpop.permute.xlu0 %1891
      %1893 = vrot.lane.b32.xlu0 %v1850, 32
      %v1894 = vpop.permute.xlu0 %1893
      %1895 = vrot.lane.b32.xlu0 %v1857, 32
      %v1896 = vpop.permute.xlu0 %1895
      %1897 = vrot.lane.b32.xlu0 %v1864, 32
      %v1898 = vpop.permute.xlu0 %1897
      %1899 = vrot.lane.b32.xlu0 %v1871, 32
      %v1900 = vpop.permute.xlu0 %1899
      %1901 = vrot.lane.b32.xlu0 %v1878, 32
      %v1902 = vpop.permute.xlu0 %1901
      %v1915 = vunpack.c.l.b16 %v1338
      %v1916 = vunpack.c.l.b16 %v1339
      %v1917 = vunpack.c.l.b16 %v1340
      %v1918 = vunpack.c.l.b16 %v1341
      %v1919 = vunpack.c.l.b16 %v1342
      %v1920 = vunpack.c.l.b16 %v1343
      %v1921 = vunpack.c.l.b16 %v1344
      %v1922 = vunpack.c.l.b16 %v1345
      %v1923 = vunpack.c.l.b16 %v1346
      %v1924 = vunpack.c.l.b16 %v1347
      %v1925 = vunpack.c.l.b16 %v1348
      %v1926 = vunpack.c.l.b16 %v1349
      %v1927 = vpack.c.b16 %v1771, %v1915
      %v1928 = vpack.c.b16 %v1772, %v1916
      %v1929 = vpack.c.b16 %v1773, %v1917
      %v1930 = vpack.c.b16 %v1774, %v1918
      %v1931 = vpack.c.b16 %v1775, %v1919
      %v1932 = vpack.c.b16 %v1776, %v1920
      %v1933 = vpack.c.b16 %v1777, %v1921
      %v1934 = vpack.c.b16 %v1778, %v1922
      %v1935 = vpack.c.b16 %v1779, %v1923
      %v1936 = vpack.c.b16 %v1780, %v1924
      %v1937 = vpack.c.b16 %v1781, %v1925
      %v1938 = vpack.c.b16 %v1782, %v1926
      %v1939 = vrot.slane %v1927, 1
      %v1940 = vrot.slane %v1928, 1
      %v1941 = vrot.slane %v1929, 1
      %v1942 = vrot.slane %v1930, 1
      %v1943 = vrot.slane %v1931, 1
      %v1944 = vrot.slane %v1932, 1
      %v1945 = vrot.slane %v1933, 1
      %v1946 = vrot.slane %v1934, 1
      %v1947 = vrot.slane %v1935, 1
      %v1948 = vrot.slane %v1936, 1
      %v1949 = vrot.slane %v1937, 1
      %v1950 = vrot.slane %v1938, 1
      %1951 = vrot.lane.b32.xlu0 %v1939, 40
      %v1952 = vpop.permute.xlu0 %1951
      %1953 = vrot.lane.b32.xlu0 %v1940, 40
      %v1954 = vpop.permute.xlu0 %1953
      %1955 = vrot.lane.b32.xlu0 %v1941, 40
      %v1956 = vpop.permute.xlu0 %1955
      %1957 = vrot.lane.b32.xlu0 %v1942, 40
      %v1958 = vpop.permute.xlu0 %1957
      %1959 = vrot.lane.b32.xlu0 %v1943, 40
      %v1960 = vpop.permute.xlu0 %1959
      %1961 = vrot.lane.b32.xlu0 %v1944, 40
      %v1962 = vpop.permute.xlu0 %1961
      %1963 = vrot.lane.b32.xlu0 %v1945, 40
      %v1964 = vpop.permute.xlu0 %1963
      %1965 = vrot.lane.b32.xlu0 %v1946, 40
      %v1966 = vpop.permute.xlu0 %1965
      %1967 = vrot.lane.b32.xlu0 %v1947, 40
      %v1968 = vpop.permute.xlu0 %1967
      %1969 = vrot.lane.b32.xlu0 %v1948, 40
      %v1970 = vpop.permute.xlu0 %1969
      %1971 = vrot.lane.b32.xlu0 %v1949, 40
      %v1972 = vpop.permute.xlu0 %1971
      %1973 = vrot.lane.b32.xlu0 %v1950, 40
      %v1974 = vpop.permute.xlu0 %1973
      %v1999 = vunpack.c.l.b16 %v1351
      %v2000 = vunpack.c.l.b16 %v1352
      %v2001 = vunpack.c.l.b16 %v1353
      %v2002 = vunpack.c.l.b16 %v1354
      %v2003 = vunpack.c.l.b16 %v1355
      %v2004 = vunpack.c.l.b16 %v1356
      %v2005 = vunpack.c.l.b16 %v1357
      %v2006 = vunpack.c.l.b16 %v1358
      %v2007 = vunpack.c.l.b16 %v1359
      %v2008 = vunpack.c.l.b16 %v1360
      %v2009 = vunpack.c.l.b16 %v1361
      %v2010 = vunpack.c.l.b16 %v1362
      %v2011 = vunpack.c.l.b16 %v1363
      %v2012 = vunpack.c.l.b16 %v1364
      %v2013 = vunpack.c.l.b16 %v1365
      %v2014 = vunpack.c.l.b16 %v1366
      %v2015 = vunpack.c.l.b16 %v1367
      %v2016 = vunpack.c.l.b16 %v1368
      %v2017 = vunpack.c.l.b16 %v1369
      %v2018 = vunpack.c.l.b16 %v1370
      %v2019 = vunpack.c.l.b16 %v1371
      %v2020 = vunpack.c.l.b16 %v1372
      %v2021 = vunpack.c.l.b16 %v1373
      %v2022 = vunpack.c.l.b16 %v1374
      %v2023 = vpack.c.b16 %v2000, %v1999
      %v2024 = vpack.c.b16 %v2002, %v2001
      %v2025 = vpack.c.b16 %v2004, %v2003
      %v2026 = vpack.c.b16 %v2006, %v2005
      %v2027 = vpack.c.b16 %v2008, %v2007
      %v2028 = vpack.c.b16 %v2010, %v2009
      %v2029 = vpack.c.b16 %v2012, %v2011
      %v2030 = vpack.c.b16 %v2014, %v2013
      %v2031 = vpack.c.b16 %v2016, %v2015
      %v2032 = vpack.c.b16 %v2018, %v2017
      %v2033 = vpack.c.b16 %v2020, %v2019
      %v2034 = vpack.c.b16 %v2022, %v2021
      %2035 = vrot.lane.b32.xlu0 %v2023, 48
      %v2036 = vpop.permute.xlu0 %2035
      %2037 = vrot.lane.b32.xlu0 %v2024, 48
      %v2038 = vpop.permute.xlu0 %2037
      %2039 = vrot.lane.b32.xlu0 %v2025, 48
      %v2040 = vpop.permute.xlu0 %2039
      %2041 = vrot.lane.b32.xlu0 %v2026, 48
      %v2042 = vpop.permute.xlu0 %2041
      %2043 = vrot.lane.b32.xlu0 %v2027, 48
      %v2044 = vpop.permute.xlu0 %2043
      %2045 = vrot.lane.b32.xlu0 %v2028, 48
      %v2046 = vpop.permute.xlu0 %2045
      %2047 = vrot.lane.b32.xlu0 %v2029, 48
      %v2048 = vpop.permute.xlu0 %2047
      %2049 = vrot.lane.b32.xlu0 %v2030, 48
      %v2050 = vpop.permute.xlu0 %2049
      %2051 = vrot.lane.b32.xlu0 %v2031, 48
      %v2052 = vpop.permute.xlu0 %2051
      %2053 = vrot.lane.b32.xlu0 %v2032, 48
      %v2054 = vpop.permute.xlu0 %2053
      %2055 = vrot.lane.b32.xlu0 %v2033, 48
      %v2056 = vpop.permute.xlu0 %2055
      %2057 = vrot.lane.b32.xlu0 %v2034, 48
      %v2058 = vpop.permute.xlu0 %2057
      %v2071 = vunpack.c.l.b16 %v1375
      %v2072 = vunpack.c.l.b16 %v1376
      %v2073 = vunpack.c.l.b16 %v1377
      %v2074 = vunpack.c.l.b16 %v1378
      %v2075 = vunpack.c.l.b16 %v1379
      %v2076 = vunpack.c.l.b16 %v1380
      %v2077 = vunpack.c.l.b16 %v1381
      %v2078 = vunpack.c.l.b16 %v1382
      %v2079 = vunpack.c.l.b16 %v1383
      %v2080 = vunpack.c.l.b16 %v1384
      %v2081 = vunpack.c.l.b16 %v1385
      %v2082 = vunpack.c.l.b16 %v1386
      %v2083 = vpack.c.b16 %v2071, %v1999
      %v2084 = vpack.c.b16 %v2072, %v2001
      %v2085 = vpack.c.b16 %v2073, %v2003
      %v2086 = vpack.c.b16 %v2074, %v2005
      %v2087 = vpack.c.b16 %v2075, %v2007
      %v2088 = vpack.c.b16 %v2076, %v2009
      %v2089 = vpack.c.b16 %v2077, %v2011
      %v2090 = vpack.c.b16 %v2078, %v2013
      %v2091 = vpack.c.b16 %v2079, %v2015
      %v2092 = vpack.c.b16 %v2080, %v2017
      %v2093 = vpack.c.b16 %v2081, %v2019
      %v2094 = vpack.c.b16 %v2082, %v2021
      %v2096 = vshrl.u32 %v2083, 16
      %v2098 = vshll.u32 %v2083, 16
      %v2100 = vrot.slane %v2098, 1
      %v2101 = vor.u32 %v2096, %v2100
      %v2103 = vshrl.u32 %v2084, 16
      %v2105 = vshll.u32 %v2084, 16
      %v2107 = vrot.slane %v2105, 1
      %v2108 = vor.u32 %v2103, %v2107
      %v2110 = vshrl.u32 %v2085, 16
      %v2112 = vshll.u32 %v2085, 16
      %v2114 = vrot.slane %v2112, 1
      %v2115 = vor.u32 %v2110, %v2114
      %v2117 = vshrl.u32 %v2086, 16
      %v2119 = vshll.u32 %v2086, 16
      %v2121 = vrot.slane %v2119, 1
      %v2122 = vor.u32 %v2117, %v2121
      %v2124 = vshrl.u32 %v2087, 16
      %v2126 = vshll.u32 %v2087, 16
      %v2128 = vrot.slane %v2126, 1
      %v2129 = vor.u32 %v2124, %v2128
      %v2131 = vshrl.u32 %v2088, 16
      %v2133 = vshll.u32 %v2088, 16
      %v2135 = vrot.slane %v2133, 1
      %v2136 = vor.u32 %v2131, %v2135
      %v2138 = vshrl.u32 %v2089, 16
      %v2140 = vshll.u32 %v2089, 16
      %v2142 = vrot.slane %v2140, 1
      %v2143 = vor.u32 %v2138, %v2142
      %v2145 = vshrl.u32 %v2090, 16
      %v2147 = vshll.u32 %v2090, 16
      %v2149 = vrot.slane %v2147, 1
      %v2150 = vor.u32 %v2145, %v2149
      %v2152 = vshrl.u32 %v2091, 16
      %v2154 = vshll.u32 %v2091, 16
      %v2156 = vrot.slane %v2154, 1
      %v2157 = vor.u32 %v2152, %v2156
      %v2159 = vshrl.u32 %v2092, 16
      %v2161 = vshll.u32 %v2092, 16
      %v2163 = vrot.slane %v2161, 1
      %v2164 = vor.u32 %v2159, %v2163
      %v2166 = vshrl.u32 %v2093, 16
      %v2168 = vshll.u32 %v2093, 16
      %v2170 = vrot.slane %v2168, 1
      %v2171 = vor.u32 %v2166, %v2170
      %v2173 = vshrl.u32 %v2094, 16
      %v2175 = vshll.u32 %v2094, 16
      %v2177 = vrot.slane %v2175, 1
      %v2178 = vor.u32 %v2173, %v2177
      %2179 = vrot.lane.b32.xlu0 %v2101, 56
      %v2180 = vpop.permute.xlu0 %2179
      %2181 = vrot.lane.b32.xlu0 %v2108, 56
      %v2182 = vpop.permute.xlu0 %2181
      %2183 = vrot.lane.b32.xlu0 %v2115, 56
      %v2184 = vpop.permute.xlu0 %2183
      %2185 = vrot.lane.b32.xlu0 %v2122, 56
      %v2186 = vpop.permute.xlu0 %2185
      %2187 = vrot.lane.b32.xlu0 %v2129, 56
      %v2188 = vpop.permute.xlu0 %2187
      %2189 = vrot.lane.b32.xlu0 %v2136, 56
      %v2190 = vpop.permute.xlu0 %2189
      %2191 = vrot.lane.b32.xlu0 %v2143, 56
      %v2192 = vpop.permute.xlu0 %2191
      %2193 = vrot.lane.b32.xlu0 %v2150, 56
      %v2194 = vpop.permute.xlu0 %2193
      %2195 = vrot.lane.b32.xlu0 %v2157, 56
      %v2196 = vpop.permute.xlu0 %2195
      %2197 = vrot.lane.b32.xlu0 %v2164, 56
      %v2198 = vpop.permute.xlu0 %2197
      %2199 = vrot.lane.b32.xlu0 %v2171, 56
      %v2200 = vpop.permute.xlu0 %2199
      %2201 = vrot.lane.b32.xlu0 %v2178, 56
      %v2202 = vpop.permute.xlu0 %2201
      %v2215 = vunpack.c.l.b16 %v1387
      %v2216 = vunpack.c.l.b16 %v1388
      %v2217 = vunpack.c.l.b16 %v1389
      %v2218 = vunpack.c.l.b16 %v1390
      %v2219 = vunpack.c.l.b16 %v1391
      %v2220 = vunpack.c.l.b16 %v1392
      %v2221 = vunpack.c.l.b16 %v1393
      %v2222 = vunpack.c.l.b16 %v1394
      %v2223 = vunpack.c.l.b16 %v1395
      %v2224 = vunpack.c.l.b16 %v1396
      %v2225 = vunpack.c.l.b16 %v1397
      %v2226 = vunpack.c.l.b16 %v1398
      %v2227 = vpack.c.b16 %v2071, %v2215
      %v2228 = vpack.c.b16 %v2072, %v2216
      %v2229 = vpack.c.b16 %v2073, %v2217
      %v2230 = vpack.c.b16 %v2074, %v2218
      %v2231 = vpack.c.b16 %v2075, %v2219
      %v2232 = vpack.c.b16 %v2076, %v2220
      %v2233 = vpack.c.b16 %v2077, %v2221
      %v2234 = vpack.c.b16 %v2078, %v2222
      %v2235 = vpack.c.b16 %v2079, %v2223
      %v2236 = vpack.c.b16 %v2080, %v2224
      %v2237 = vpack.c.b16 %v2081, %v2225
      %v2238 = vpack.c.b16 %v2082, %v2226
      %v2239 = vrot.slane %v2227, 1
      %v2240 = vrot.slane %v2228, 1
      %v2241 = vrot.slane %v2229, 1
      %v2242 = vrot.slane %v2230, 1
      %v2243 = vrot.slane %v2231, 1
      %v2244 = vrot.slane %v2232, 1
      %v2245 = vrot.slane %v2233, 1
      %v2246 = vrot.slane %v2234, 1
      %v2247 = vrot.slane %v2235, 1
      %v2248 = vrot.slane %v2236, 1
      %v2249 = vrot.slane %v2237, 1
      %v2250 = vrot.slane %v2238, 1
      %2251 = vrot.lane.b32.xlu0 %v2239, 64
      %v2252 = vpop.permute.xlu0 %2251
      %2253 = vrot.lane.b32.xlu0 %v2240, 64
      %v2254 = vpop.permute.xlu0 %2253
      %2255 = vrot.lane.b32.xlu0 %v2241, 64
      %v2256 = vpop.permute.xlu0 %2255
      %2257 = vrot.lane.b32.xlu0 %v2242, 64
      %v2258 = vpop.permute.xlu0 %2257
      %2259 = vrot.lane.b32.xlu0 %v2243, 64
      %v2260 = vpop.permute.xlu0 %2259
      %2261 = vrot.lane.b32.xlu0 %v2244, 64
      %v2262 = vpop.permute.xlu0 %2261
      %2263 = vrot.lane.b32.xlu0 %v2245, 64
      %v2264 = vpop.permute.xlu0 %2263
      %2265 = vrot.lane.b32.xlu0 %v2246, 64
      %v2266 = vpop.permute.xlu0 %2265
      %2267 = vrot.lane.b32.xlu0 %v2247, 64
      %v2268 = vpop.permute.xlu0 %2267
      %2269 = vrot.lane.b32.xlu0 %v2248, 64
      %v2270 = vpop.permute.xlu0 %2269
      %2271 = vrot.lane.b32.xlu0 %v2249, 64
      %v2272 = vpop.permute.xlu0 %2271
      %2273 = vrot.lane.b32.xlu0 %v2250, 64
      %v2274 = vpop.permute.xlu0 %2273
      %v2277 = vsel %vm904, %v1447, %v1580
      %v2280 = vsel %vm904, %v1448, %v1582
      %v2283 = vsel %vm904, %v1449, %v1584
      %v2286 = vsel %vm904, %v1450, %v1586
      %v2289 = vsel %vm904, %v1451, %v1588
      %v2292 = vsel %vm904, %v1452, %v1590
      %v2295 = vsel %vm904, %v1453, %v1592
      %v2298 = vsel %vm904, %v1454, %v1594
      %v2301 = vsel %vm904, %v1455, %v1596
      %v2304 = vsel %vm904, %v1456, %v1598
      %v2307 = vsel %vm904, %v1457, %v1600
      %v2310 = vsel %vm904, %v1458, %v1602
      %vm2311 = vcmask 130048
      %v2313 = vsel %vm2311, %v2277, %v1652
      %v2315 = vsel %vm2311, %v2280, %v1654
      %v2317 = vsel %vm2311, %v2283, %v1656
      %v2319 = vsel %vm2311, %v2286, %v1658
      %v2321 = vsel %vm2311, %v2289, %v1660
      %v2323 = vsel %vm2311, %v2292, %v1662
      %v2325 = vsel %vm2311, %v2295, %v1664
      %v2327 = vsel %vm2311, %v2298, %v1666
      %v2329 = vsel %vm2311, %v2301, %v1668
      %v2331 = vsel %vm2311, %v2304, %v1670
      %v2333 = vsel %vm2311, %v2307, %v1672
      %v2335 = vsel %vm2311, %v2310, %v1674
      %vm2336 = vcmask 195584
      %v2338 = vsel %vm2336, %v2313, %v1736
      %v2340 = vsel %vm2336, %v2315, %v1738
      %v2342 = vsel %vm2336, %v2317, %v1740
      %v2344 = vsel %vm2336, %v2319, %v1742
      %v2346 = vsel %vm2336, %v2321, %v1744
      %v2348 = vsel %vm2336, %v2323, %v1746
      %v2350 = vsel %vm2336, %v2325, %v1748
      %v2352 = vsel %vm2336, %v2327, %v1750
      %v2354 = vsel %vm2336, %v2329, %v1752
      %v2356 = vsel %vm2336, %v2331, %v1754
      %v2358 = vsel %vm2336, %v2333, %v1756
      %v2360 = vsel %vm2336, %v2335, %v1758
      %vm2361 = vcmask 261120
      %v2363 = vsel %vm2361, %v2338, %v1880
      %v2365 = vsel %vm2361, %v2340, %v1882
      %v2367 = vsel %vm2361, %v2342, %v1884
      %v2369 = vsel %vm2361, %v2344, %v1886
      %v2371 = vsel %vm2361, %v2346, %v1888
      %v2373 = vsel %vm2361, %v2348, %v1890
      %v2375 = vsel %vm2361, %v2350, %v1892
      %v2377 = vsel %vm2361, %v2352, %v1894
      %v2379 = vsel %vm2361, %v2354, %v1896
      %v2381 = vsel %vm2361, %v2356, %v1898
      %v2383 = vsel %vm2361, %v2358, %v1900
      %v2385 = vsel %vm2361, %v2360, %v1902
      %vm2386 = vcmask 326656
      %v2388 = vsel %vm2386, %v2363, %v1952
      %v2390 = vsel %vm2386, %v2365, %v1954
      %v2392 = vsel %vm2386, %v2367, %v1956
      %v2394 = vsel %vm2386, %v2369, %v1958
      %v2396 = vsel %vm2386, %v2371, %v1960
      %v2398 = vsel %vm2386, %v2373, %v1962
      %v2400 = vsel %vm2386, %v2375, %v1964
      %v2402 = vsel %vm2386, %v2377, %v1966
      %v2404 = vsel %vm2386, %v2379, %v1968
      %v2406 = vsel %vm2386, %v2381, %v1970
      %v2408 = vsel %vm2386, %v2383, %v1972
      %v2410 = vsel %vm2386, %v2385, %v1974
      %vm2411 = vcmask 392192
      %v2413 = vsel %vm2411, %v2388, %v2036
      %v2415 = vsel %vm2411, %v2390, %v2038
      %v2417 = vsel %vm2411, %v2392, %v2040
      %v2419 = vsel %vm2411, %v2394, %v2042
      %v2421 = vsel %vm2411, %v2396, %v2044
      %v2423 = vsel %vm2411, %v2398, %v2046
      %v2425 = vsel %vm2411, %v2400, %v2048
      %v2427 = vsel %vm2411, %v2402, %v2050
      %v2429 = vsel %vm2411, %v2404, %v2052
      %v2431 = vsel %vm2411, %v2406, %v2054
      %v2433 = vsel %vm2411, %v2408, %v2056
      %v2435 = vsel %vm2411, %v2410, %v2058
      %vm2436 = vcmask 457728
      %v2438 = vsel %vm2436, %v2413, %v2180
      %v2440 = vsel %vm2436, %v2415, %v2182
      %v2442 = vsel %vm2436, %v2417, %v2184
      %v2444 = vsel %vm2436, %v2419, %v2186
      %v2446 = vsel %vm2436, %v2421, %v2188
      %v2448 = vsel %vm2436, %v2423, %v2190
      %v2450 = vsel %vm2436, %v2425, %v2192
      %v2452 = vsel %vm2436, %v2427, %v2194
      %v2454 = vsel %vm2436, %v2429, %v2196
      %v2456 = vsel %vm2436, %v2431, %v2198
      %v2458 = vsel %vm2436, %v2433, %v2200
      %v2460 = vsel %vm2436, %v2435, %v2202
      %vm2461 = vcmask 523264
      %v2463 = vsel %vm2461, %v2438, %v2252
      %v2465 = vsel %vm2461, %v2440, %v2254
      %v2467 = vsel %vm2461, %v2442, %v2256
      %v2469 = vsel %vm2461, %v2444, %v2258
      %v2471 = vsel %vm2461, %v2446, %v2260
      %v2473 = vsel %vm2461, %v2448, %v2262
      %v2475 = vsel %vm2461, %v2450, %v2264
      %v2477 = vsel %vm2461, %v2452, %v2266
      %v2479 = vsel %vm2461, %v2454, %v2268
      %v2481 = vsel %vm2461, %v2456, %v2270
      %v2483 = vsel %vm2461, %v2458, %v2272
      %v2485 = vsel %vm2461, %v2460, %v2274
      %v2498 = vrot.slane %v2463, 2
      %v2499 = vrot.slane %v2463, 4
      %v2500 = vrot.slane %v2465, 2
      %v2501 = vrot.slane %v2465, 4
      %v2502 = vrot.slane %v2467, 2
      %v2503 = vrot.slane %v2467, 4
      %v2504 = vrot.slane %v2469, 2
      %v2505 = vrot.slane %v2469, 4
      %v2506 = vrot.slane %v2471, 2
      %v2507 = vrot.slane %v2471, 4
      %v2508 = vrot.slane %v2473, 2
      %v2509 = vrot.slane %v2473, 4
      %v2510 = vrot.slane %v2475, 2
      %v2511 = vrot.slane %v2475, 4
      %v2512 = vrot.slane %v2477, 2
      %v2513 = vrot.slane %v2477, 4
      %v2514 = vrot.slane %v2479, 2
      %v2515 = vrot.slane %v2479, 4
      %v2516 = vrot.slane %v2481, 2
      %v2517 = vrot.slane %v2481, 4
      %v2518 = vrot.slane %v2483, 2
      %v2519 = vrot.slane %v2483, 4
      %v2520 = vrot.slane %v2485, 2
      %v2521 = vrot.slane %v2485, 4
      %v2522 = vld [vmem:[%s3] sm:$0xf]
      %v2523 = vld [vmem:[%s3 + $0x4] sm:$0xf]
      %v2524 = vld [vmem:[%s3 + $0x8] sm:$0xf]
      %v2525 = vld [vmem:[%s3 + $0xc] sm:$0xf]
      %v2526 = vld [vmem:[%s3 + $0x10] sm:$0xf]
      %v2527 = vld [vmem:[%s3 + $0x14] sm:$0xf]
      %v2528 = vld [vmem:[%s3 + $0x18] sm:$0xf]
      %v2529 = vld [vmem:[%s3 + $0x1c] sm:$0xf]
      %v2530 = vld [vmem:[%s3 + $0x20] sm:$0xf]
      %2531 = vst [vmem:[#allocation1] ss:$4 sm:$0xff] %v2463
      %s2533 = scalar_lea.vmem [#allocation1], 1
      %2534 = vst [vmem:[%s2533] ss:$4 sm:$0xff] %v2498
      %s2536 = scalar_lea.vmem [#allocation1], 2
      %2537 = vst [vmem:[%s2536] ss:$4 sm:$0xff] %v2499
      %s2538 = scalar_lea.vmem [#allocation1], 3
      %2539 = vst [vmem:[%s2538] ss:$4 sm:$0xff] %v2465
      %s2541 = scalar_lea.vmem [#allocation1], 32
      %2542 = vst [vmem:[%s2541] ss:$4 sm:$0xff] %v2500
      %s2544 = scalar_lea.vmem [#allocation1], 33
      %2545 = vst [vmem:[%s2544] ss:$4 sm:$0xff] %v2501
      %s2546 = scalar_lea.vmem [#allocation1], 34
      %2547 = vst [vmem:[%s2546] ss:$4 sm:$0xff] %v2467
      %s2549 = scalar_lea.vmem [#allocation1], 35
      %2550 = vst [vmem:[%s2549] ss:$4 sm:$0xff] %v2502
      %v2551 = vld.sshfl [vmem:[#allocation1] sm:$0xff pattern:$0x73625140]
      %v2552 = vld.sshfl [vmem:[#allocation1 + $0x20] sm:$0xff pattern:$0x73625140]
      %2554 = vst [vmem:[#allocation1] ss:$4 sm:$0xff] %v2503
      %2555 = vst [vmem:[%s2533] ss:$4 sm:$0xff] %v2469
      %2557 = vst [vmem:[%s2536] ss:$4 sm:$0xff] %v2504
      %2559 = vst [vmem:[%s2538] ss:$4 sm:$0xff] %v2505
      %2560 = vst [vmem:[%s2541] ss:$4 sm:$0xff] %v2471
      %2562 = vst [vmem:[%s2544] ss:$4 sm:$0xff] %v2506
      %2564 = vst [vmem:[%s2546] ss:$4 sm:$0xff] %v2507
      %2565 = vst [vmem:[%s2549] ss:$4 sm:$0xff] %v2473
      %v2566 = vld.sshfl [vmem:[#allocation1] sm:$0xff pattern:$0x73625140]
      %v2567 = vld.sshfl [vmem:[#allocation1 + $0x20] sm:$0xff pattern:$0x73625140]
      %2569 = vst [vmem:[#allocation1] ss:$4 sm:$0xff] %v2508
      %2571 = vst [vmem:[%s2533] ss:$4 sm:$0xff] %v2509
      %2572 = vst [vmem:[%s2536] ss:$4 sm:$0xff] %v2475
      %2574 = vst [vmem:[%s2538] ss:$4 sm:$0xff] %v2510
      %2576 = vst [vmem:[%s2541] ss:$4 sm:$0xff] %v2511
      %2577 = vst [vmem:[%s2544] ss:$4 sm:$0xff] %v2477
      %2579 = vst [vmem:[%s2546] ss:$4 sm:$0xff] %v2512
      %2581 = vst [vmem:[%s2549] ss:$4 sm:$0xff] %v2513
      %v2582 = vld.sshfl [vmem:[#allocation1] sm:$0xff pattern:$0x73625140]
      %v2583 = vld.sshfl [vmem:[#allocation1 + $0x20] sm:$0xff pattern:$0x73625140]
      %2584 = vst [vmem:[#allocation1] ss:$4 sm:$0xff] %v2479
      %2586 = vst [vmem:[%s2533] ss:$4 sm:$0xff] %v2514
      %2588 = vst [vmem:[%s2536] ss:$4 sm:$0xff] %v2515
      %2589 = vst [vmem:[%s2538] ss:$4 sm:$0xff] %v2481
      %2591 = vst [vmem:[%s2541] ss:$4 sm:$0xff] %v2516
      %2593 = vst [vmem:[%s2544] ss:$4 sm:$0xff] %v2517
      %2594 = vst [vmem:[%s2546] ss:$4 sm:$0xff] %v2483
      %2596 = vst [vmem:[%s2549] ss:$4 sm:$0xff] %v2518
      %v2597 = vld.sshfl [vmem:[#allocation1] sm:$0xff pattern:$0x73625140]
      %v2598 = vld.sshfl [vmem:[#allocation1 + $0x20] sm:$0xff pattern:$0x73625140]
      %2600 = vst [vmem:[#allocation1] ss:$4 sm:$0xff] %v2519
      %2601 = vst [vmem:[%s2533] ss:$4 sm:$0xff] %v2485
      %2603 = vst [vmem:[%s2536] ss:$4 sm:$0xff] %v2520
      %2605 = vst [vmem:[%s2538] ss:$4 sm:$0xff] %v2521
      %v2606 = vld.sshfl [vmem:[#allocation1] sm:$0xff pattern:$0x73625140]
      %v2616 = vunpack.c.l.b16 %v2522
      %v2617 = vunpack.c.l.b16 %v2523
      %v2618 = vunpack.c.l.b16 %v2524
      %v2619 = vunpack.c.l.b16 %v2525
      %v2620 = vunpack.c.l.b16 %v2526
      %v2621 = vunpack.c.l.b16 %v2527
      %v2622 = vunpack.c.l.b16 %v2528
      %v2623 = vunpack.c.l.b16 %v2529
      %v2624 = vunpack.c.l.b16 %v2530
      %v2625 = vpack.c.b16 %v2617, %v2616
      %v2626 = vpack.c.b16 %v2619, %v2618
      %v2627 = vpack.c.b16 %v2621, %v2620
      %v2628 = vpack.c.b16 %v2623, %v2622
      %v2629 = vpack.c.b16 %v2624, %v2624
      %vm2634 = vcmask 588800
      %v2635 = vsel %vm2634, %v2551, 0
      %v2637 = vsel %vm2634, %v2552, 0
      %v2639 = vsel %vm2634, %v2566, 0
      %v2641 = vsel %vm2634, %v2567, 0
      %v2643 = vsel %vm2634, %v2582, 0
      %v2645 = vsel %vm2634, %v2583, 0
      %v2647 = vsel %vm2634, %v2597, 0
      %v2649 = vsel %vm2634, %v2598, 0
      %v2651 = vsel %vm2634, %v2606, 0
      %v2654 = vsel %vm923, %v2629, 0
      %2656 = vmatpush.bf16.msra.mxu0 0
      %2657 = vmatpush.bf16.msra.mxu0 0
      %2658 = vmatpush.bf16.msra.mxu0 0
      %2659 = vmatpush.bf16.msra.mxu0 %v2654
      %2660 = vmatpush.bf16.msra.mxu0 %v2628
      %2661 = vmatpush.bf16.msra.mxu0 %v2627
      %2662 = vmatpush.bf16.msra.mxu0 %v2626
      %2663 = vmatpush.bf16.msra.mxu0 %v2625
      %2664 = vmatmul.bf16.gmra.mxu0 %v2635
      %v2665 = vpop.f32.mrf.mxu0
      %v2666 = vadd.f32 0.0, %v2665
      %v2667 = vpop.f32.mrf.mxu0
      %v2668 = vadd.f32 0.0, %v2667
      %2669 = vmatmul.bf16.gmra.mxu0 %v2637
      %v2670 = vpop.f32.mrf.mxu0
      %v2671 = vadd.f32 0.0, %v2670
      %v2672 = vpop.f32.mrf.mxu0
      %v2673 = vadd.f32 0.0, %v2672
      %2674 = vmatmul.bf16.gmra.mxu0 %v2639
      %v2675 = vpop.f32.mrf.mxu0
      %v2676 = vadd.f32 0.0, %v2675
      %v2677 = vpop.f32.mrf.mxu0
      %v2678 = vadd.f32 0.0, %v2677
      %2679 = vmatmul.bf16.gmra.mxu0 %v2641
      %v2680 = vpop.f32.mrf.mxu0
      %v2681 = vadd.f32 0.0, %v2680
      %v2682 = vpop.f32.mrf.mxu0
      %v2683 = vadd.f32 0.0, %v2682
      %2684 = vmatmul.bf16.gmra.mxu0 %v2643
      %v2685 = vpop.f32.mrf.mxu0
      %v2686 = vadd.f32 0.0, %v2685
      %v2687 = vpop.f32.mrf.mxu0
      %v2688 = vadd.f32 0.0, %v2687
      %2689 = vmatmul.bf16.gmra.mxu0 %v2645
      %v2690 = vpop.f32.mrf.mxu0
      %v2691 = vadd.f32 0.0, %v2690
      %v2692 = vpop.f32.mrf.mxu0
      %v2693 = vadd.f32 0.0, %v2692
      %2694 = vmatmul.bf16.gmra.mxu0 %v2647
      %v2695 = vpop.f32.mrf.mxu0
      %v2696 = vadd.f32 0.0, %v2695
      %v2697 = vpop.f32.mrf.mxu0
      %v2698 = vadd.f32 0.0, %v2697
      %2699 = vmatmul.bf16.gmra.mxu0 %v2649
      %v2700 = vpop.f32.mrf.mxu0
      %v2701 = vadd.f32 0.0, %v2700
      %v2702 = vpop.f32.mrf.mxu0
      %v2703 = vadd.f32 0.0, %v2702
      %2704 = vmatmul.bf16.gmra.mxu0 %v2651
      %v2705 = vpop.f32.mrf.mxu0
      %v2706 = vadd.f32 0.0, %v2705
      %v2707 = vpop.f32.mrf.mxu0
      %v2708 = vadd.f32 0.0, %v2707
      %2709 = vdwg.mxu0
      %v2710 = vld [vmem:[%s4] sm:$0x1]
      %v2712 = vperm.slane %v2710, 0
      %v2714 = vmul.f32 %v2666, %v2712
      %v2715 = vmul.f32 %v2668, %v2712
      %v2716 = vmul.f32 %v2671, %v2712
      %v2717 = vmul.f32 %v2673, %v2712
      %v2718 = vmul.f32 %v2676, %v2712
      %v2719 = vmul.f32 %v2678, %v2712
      %v2720 = vmul.f32 %v2681, %v2712
      %v2721 = vmul.f32 %v2683, %v2712
      %v2722 = vmul.f32 %v2686, %v2712
      %v2723 = vmul.f32 %v2688, %v2712
      %v2724 = vmul.f32 %v2691, %v2712
      %v2725 = vmul.f32 %v2693, %v2712
      %v2726 = vmul.f32 %v2696, %v2712
      %v2727 = vmul.f32 %v2698, %v2712
      %v2728 = vmul.f32 %v2701, %v2712
      %v2729 = vmul.f32 %v2703, %v2712
      %v2730 = vmul.f32 %v2706, %v2712
      %v2731 = vmul.f32 %v2708, %v2712
      %v2732 = vld [vmem:[%s5] sm:$0x1]
      %v2734 = vperm.slane %v2732, 0
      %v2736 = vadd.f32 %v2714, %v2734
      %v2737 = vadd.f32 %v2715, %v2734
      %v2738 = vadd.f32 %v2716, %v2734
      %v2739 = vadd.f32 %v2717, %v2734
      %v2740 = vadd.f32 %v2718, %v2734
      %v2741 = vadd.f32 %v2719, %v2734
      %v2742 = vadd.f32 %v2720, %v2734
      %v2743 = vadd.f32 %v2721, %v2734
      %v2744 = vadd.f32 %v2722, %v2734
      %v2745 = vadd.f32 %v2723, %v2734
      %v2746 = vadd.f32 %v2724, %v2734
      %v2747 = vadd.f32 %v2725, %v2734
      %v2748 = vadd.f32 %v2726, %v2734
      %v2749 = vadd.f32 %v2727, %v2734
      %v2750 = vadd.f32 %v2728, %v2734
      %v2751 = vadd.f32 %v2729, %v2734
      %v2752 = vadd.f32 %v2730, %v2734
      %v2753 = vadd.f32 %v2731, %v2734
      %v2754 = vmax.f32 %v2736, 0.0
      %v2755 = vmax.f32 %v2737, 0.0
      %v2756 = vmax.f32 %v2738, 0.0
      %v2757 = vmax.f32 %v2739, 0.0
      %v2758 = vmax.f32 %v2740, 0.0
      %v2759 = vmax.f32 %v2741, 0.0
      %v2760 = vmax.f32 %v2742, 0.0
      %v2761 = vmax.f32 %v2743, 0.0
      %v2762 = vmax.f32 %v2744, 0.0
      %v2763 = vmax.f32 %v2745, 0.0
      %v2764 = vmax.f32 %v2746, 0.0
      %v2765 = vmax.f32 %v2747, 0.0
      %v2766 = vmax.f32 %v2748, 0.0
      %v2767 = vmax.f32 %v2749, 0.0
      %v2768 = vmax.f32 %v2750, 0.0
      %v2769 = vmax.f32 %v2751, 0.0
      %v2770 = vmax.f32 %v2752, 0.0
      %v2771 = vmax.f32 %v2753, 0.0
      %v2772 = vpack.c.bf16 %v2754, %v2754
      %v2773 = vpack.c.bf16 %v2755, %v2755
      %v2774 = vpack.c.bf16 %v2756, %v2756
      %v2775 = vpack.c.bf16 %v2757, %v2757
      %v2776 = vpack.c.bf16 %v2758, %v2758
      %v2777 = vpack.c.bf16 %v2759, %v2759
      %v2778 = vpack.c.bf16 %v2760, %v2760
      %v2779 = vpack.c.bf16 %v2761, %v2761
      %v2780 = vpack.c.bf16 %v2762, %v2762
      %v2781 = vpack.c.bf16 %v2763, %v2763
      %v2782 = vpack.c.bf16 %v2764, %v2764
      %v2783 = vpack.c.bf16 %v2765, %v2765
      %v2784 = vpack.c.bf16 %v2766, %v2766
      %v2785 = vpack.c.bf16 %v2767, %v2767
      %v2786 = vpack.c.bf16 %v2768, %v2768
      %v2787 = vpack.c.bf16 %v2769, %v2769
      %v2788 = vpack.c.bf16 %v2770, %v2770
      %v2789 = vpack.c.bf16 %v2771, %v2771
      %v2808 = vrot.slane %v2772, 2
      %v2809 = vrot.slane %v2773, 2
      %v2810 = vrot.slane %v2774, 2
      %v2811 = vrot.slane %v2775, 2
      %v2812 = vrot.slane %v2776, 2
      %v2813 = vrot.slane %v2777, 2
      %v2814 = vrot.slane %v2778, 2
      %v2815 = vrot.slane %v2779, 2
      %v2816 = vrot.slane %v2780, 2
      %v2817 = vrot.slane %v2781, 2
      %v2818 = vrot.slane %v2782, 2
      %v2819 = vrot.slane %v2783, 2
      %v2820 = vrot.slane %v2784, 2
      %v2821 = vrot.slane %v2785, 2
      %v2822 = vrot.slane %v2786, 2
      %v2823 = vrot.slane %v2787, 2
      %v2824 = vrot.slane %v2788, 2
      %v2825 = vrot.slane %v2789, 2
      %v2828 = vsel %vm729, %v2772, %v2808
      %v2829 = vsel %vm733, %v2772, %v2808
      %v2831 = vrot.slane %v2829, 2
      %v2834 = vsel %vm729, %v2773, %v2809
      %v2835 = vsel %vm733, %v2773, %v2809
      %v2837 = vrot.slane %v2835, 2
      %v2840 = vsel %vm729, %v2774, %v2810
      %v2841 = vsel %vm733, %v2774, %v2810
      %v2843 = vrot.slane %v2841, 2
      %v2846 = vsel %vm729, %v2775, %v2811
      %v2847 = vsel %vm733, %v2775, %v2811
      %v2849 = vrot.slane %v2847, 2
      %v2852 = vsel %vm729, %v2776, %v2812
      %v2853 = vsel %vm733, %v2776, %v2812
      %v2855 = vrot.slane %v2853, 2
      %v2858 = vsel %vm729, %v2777, %v2813
      %v2859 = vsel %vm733, %v2777, %v2813
      %v2861 = vrot.slane %v2859, 2
      %v2864 = vsel %vm729, %v2778, %v2814
      %v2865 = vsel %vm733, %v2778, %v2814
      %v2867 = vrot.slane %v2865, 2
      %v2870 = vsel %vm729, %v2779, %v2815
      %v2871 = vsel %vm733, %v2779, %v2815
      %v2873 = vrot.slane %v2871, 2
      %v2876 = vsel %vm729, %v2780, %v2816
      %v2877 = vsel %vm733, %v2780, %v2816
      %v2879 = vrot.slane %v2877, 2
      %v2882 = vsel %vm729, %v2781, %v2817
      %v2883 = vsel %vm733, %v2781, %v2817
      %v2885 = vrot.slane %v2883, 2
      %v2888 = vsel %vm729, %v2782, %v2818
      %v2889 = vsel %vm733, %v2782, %v2818
      %v2891 = vrot.slane %v2889, 2
      %v2894 = vsel %vm729, %v2783, %v2819
      %v2895 = vsel %vm733, %v2783, %v2819
      %v2897 = vrot.slane %v2895, 2
      %v2900 = vsel %vm729, %v2784, %v2820
      %v2901 = vsel %vm733, %v2784, %v2820
      %v2903 = vrot.slane %v2901, 2
      %v2906 = vsel %vm729, %v2785, %v2821
      %v2907 = vsel %vm733, %v2785, %v2821
      %v2909 = vrot.slane %v2907, 2
      %v2912 = vsel %vm729, %v2786, %v2822
      %v2913 = vsel %vm733, %v2786, %v2822
      %v2915 = vrot.slane %v2913, 2
      %v2918 = vsel %vm729, %v2787, %v2823
      %v2919 = vsel %vm733, %v2787, %v2823
      %v2921 = vrot.slane %v2919, 2
      %v2924 = vsel %vm729, %v2788, %v2824
      %v2925 = vsel %vm733, %v2788, %v2824
      %v2927 = vrot.slane %v2925, 2
      %v2930 = vsel %vm729, %v2789, %v2825
      %v2931 = vsel %vm733, %v2789, %v2825
      %v2933 = vrot.slane %v2931, 2
      %2934 = vst [vmem:[#allocation1] ss:$2 sm:$0xff] %v2828
      %s2936 = scalar_lea.vmem [#allocation1], 1
      %2937 = vst [vmem:[%s2936] ss:$2 sm:$0xff] %v2831
      %s2938 = scalar_lea.vmem [#allocation1], 16
      %2939 = vst [vmem:[%s2938] ss:$2 sm:$0xff] %v2834
      %v2940 = vld.sshfl [vmem:[#allocation1] sm:$0xff pattern:$0x75643120]
      %v2941 = vld.sshfl [vmem:[#allocation1 + $0x10] sm:$0xff pattern:$0x75643120]
      %s2943 = scalar_lea.vmem [#allocation1], 32
      %2944 = vst [vmem:[%s2943] ss:$2 sm:$0xff] %v2837
      %s2945 = scalar_lea.vmem [#allocation1], 33
      %2946 = vst [vmem:[%s2945] ss:$2 sm:$0xff] %v2840
      %s2948 = scalar_lea.vmem [#allocation1], 48
      %2949 = vst [vmem:[%s2948] ss:$2 sm:$0xff] %v2843
      %v2950 = vld.sshfl [vmem:[#allocation1 + $0x20] sm:$0xff pattern:$0x75643120]
      %v2951 = vld.sshfl [vmem:[#allocation1 + $0x30] sm:$0xff pattern:$0x75643120]
      %2952 = vst [vmem:[#allocation1] ss:$2 sm:$0xff] %v2846
      %2954 = vst [vmem:[%s2936] ss:$2 sm:$0xff] %v2849
      %2955 = vst [vmem:[%s2938] ss:$2 sm:$0xff] %v2852
      %v2956 = vld.sshfl [vmem:[#allocation1] sm:$0xff pattern:$0x75643120]
      %v2957 = vld.sshfl [vmem:[#allocation1 + $0x10] sm:$0xff pattern:$0x75643120]
      %2959 = vst [vmem:[%s2943] ss:$2 sm:$0xff] %v2855
      %2960 = vst [vmem:[%s2945] ss:$2 sm:$0xff] %v2858
      %2962 = vst [vmem:[%s2948] ss:$2 sm:$0xff] %v2861
      %v2963 = vld.sshfl [vmem:[#allocation1 + $0x20] sm:$0xff pattern:$0x75643120]
      %v2964 = vld.sshfl [vmem:[#allocation1 + $0x30] sm:$0xff pattern:$0x75643120]
      %2965 = vst [vmem:[#allocation1] ss:$2 sm:$0xff] %v2864
      %2967 = vst [vmem:[%s2936] ss:$2 sm:$0xff] %v2867
      %2968 = vst [vmem:[%s2938] ss:$2 sm:$0xff] %v2870
      %v2969 = vld.sshfl [vmem:[#allocation1] sm:$0xff pattern:$0x75643120]
      %v2970 = vld.sshfl [vmem:[#allocation1 + $0x10] sm:$0xff pattern:$0x75643120]
      %2972 = vst [vmem:[%s2943] ss:$2 sm:$0xff] %v2873
      %2973 = vst [vmem:[%s2945] ss:$2 sm:$0xff] %v2876
      %2975 = vst [vmem:[%s2948] ss:$2 sm:$0xff] %v2879
      %v2976 = vld.sshfl [vmem:[#allocation1 + $0x20] sm:$0xff pattern:$0x75643120]
      %v2977 = vld.sshfl [vmem:[#allocation1 + $0x30] sm:$0xff pattern:$0x75643120]
      %2978 = vst [vmem:[#allocation1] ss:$2 sm:$0xff] %v2882
      %2980 = vst [vmem:[%s2936] ss:$2 sm:$0xff] %v2885
      %2981 = vst [vmem:[%s2938] ss:$2 sm:$0xff] %v2888
      %v2982 = vld.sshfl [vmem:[#allocation1] sm:$0xff pattern:$0x75643120]
      %v2983 = vld.sshfl [vmem:[#allocation1 + $0x10] sm:$0xff pattern:$0x75643120]
      %2985 = vst [vmem:[%s2943] ss:$2 sm:$0xff] %v2891
      %2986 = vst [vmem:[%s2945] ss:$2 sm:$0xff] %v2894
      %2988 = vst [vmem:[%s2948] ss:$2 sm:$0xff] %v2897
      %v2989 = vld.sshfl [vmem:[#allocation1 + $0x20] sm:$0xff pattern:$0x75643120]
      %v2990 = vld.sshfl [vmem:[#allocation1 + $0x30] sm:$0xff pattern:$0x75643120]
      %2991 = vst [vmem:[#allocation1] ss:$2 sm:$0xff] %v2900
      %2993 = vst [vmem:[%s2936] ss:$2 sm:$0xff] %v2903
      %2994 = vst [vmem:[%s2938] ss:$2 sm:$0xff] %v2906
      %v2995 = vld.sshfl [vmem:[#allocation1] sm:$0xff pattern:$0x75643120]
      %v2996 = vld.sshfl [vmem:[#allocation1 + $0x10] sm:$0xff pattern:$0x75643120]
      %2998 = vst [vmem:[%s2943] ss:$2 sm:$0xff] %v2909
      %2999 = vst [vmem:[%s2945] ss:$2 sm:$0xff] %v2912
      %3001 = vst [vmem:[%s2948] ss:$2 sm:$0xff] %v2915
      %v3002 = vld.sshfl [vmem:[#allocation1 + $0x20] sm:$0xff pattern:$0x75643120]
      %v3003 = vld.sshfl [vmem:[#allocation1 + $0x30] sm:$0xff pattern:$0x75643120]
      %3004 = vst [vmem:[#allocation1] ss:$2 sm:$0xff] %v2918
      %3006 = vst [vmem:[%s2936] ss:$2 sm:$0xff] %v2921
      %3007 = vst [vmem:[%s2938] ss:$2 sm:$0xff] %v2924
      %v3008 = vld.sshfl [vmem:[#allocation1] sm:$0xff pattern:$0x75643120]
      %v3009 = vld.sshfl [vmem:[#allocation1 + $0x10] sm:$0xff pattern:$0x75643120]
      %3011 = vst [vmem:[%s2943] ss:$2 sm:$0xff] %v2927
      %3012 = vst [vmem:[%s2945] ss:$2 sm:$0xff] %v2930
      %3014 = vst [vmem:[%s2948] ss:$2 sm:$0xff] %v2933
      %v3015 = vld.sshfl [vmem:[#allocation1 + $0x20] sm:$0xff pattern:$0x75643120]
      %v3016 = vld.sshfl [vmem:[#allocation1 + $0x30] sm:$0xff pattern:$0x75643120]
      %v3017 = vshrl.u32 %v2940, 16
      %v3019 = vrot.slane %v3017, 7
      %v3020 = vshll.u32 %v2940, 16
      %v3022 = vor.u32 %v3019, %v3020
      %v3023 = vrot.slane %v3019, 4
      %v3024 = vshrl.u32 %v2941, 16
      %v3026 = vrot.slane %v3024, 7
      %v3027 = vshll.u32 %v2941, 16
      %v3029 = vor.u32 %v3026, %v3027
      %v3030 = vsel %vm982, %v3023, %v3029
      %v3031 = vshrl.u32 %v2950, 16
      %v3033 = vrot.slane %v3031, 7
      %v3034 = vshll.u32 %v2950, 16
      %v3036 = vor.u32 %v3033, %v3034
      %v3037 = vrot.slane %v3033, 4
      %v3038 = vshrl.u32 %v2951, 16
      %v3040 = vrot.slane %v3038, 7
      %v3041 = vshll.u32 %v2951, 16
      %v3043 = vor.u32 %v3040, %v3041
      %v3044 = vsel %vm982, %v3037, %v3043
      %v3045 = vshrl.u32 %v2956, 16
      %v3047 = vrot.slane %v3045, 7
      %v3048 = vshll.u32 %v2956, 16
      %v3050 = vor.u32 %v3047, %v3048
      %v3051 = vrot.slane %v3047, 4
      %v3052 = vshrl.u32 %v2957, 16
      %v3054 = vrot.slane %v3052, 7
      %v3055 = vshll.u32 %v2957, 16
      %v3057 = vor.u32 %v3054, %v3055
      %v3058 = vsel %vm982, %v3051, %v3057
      %v3059 = vshrl.u32 %v2963, 16
      %v3061 = vrot.slane %v3059, 7
      %v3062 = vshll.u32 %v2963, 16
      %v3064 = vor.u32 %v3061, %v3062
      %v3065 = vrot.slane %v3061, 4
      %v3066 = vshrl.u32 %v2964, 16
      %v3068 = vrot.slane %v3066, 7
      %v3069 = vshll.u32 %v2964, 16
      %v3071 = vor.u32 %v3068, %v3069
      %v3072 = vsel %vm982, %v3065, %v3071
      %v3073 = vshrl.u32 %v2969, 16
      %v3075 = vrot.slane %v3073, 7
      %v3076 = vshll.u32 %v2969, 16
      %v3078 = vor.u32 %v3075, %v3076
      %v3079 = vrot.slane %v3075, 4
      %v3080 = vshrl.u32 %v2970, 16
      %v3082 = vrot.slane %v3080, 7
      %v3083 = vshll.u32 %v2970, 16
      %v3085 = vor.u32 %v3082, %v3083
      %v3086 = vsel %vm982, %v3079, %v3085
      %v3087 = vshrl.u32 %v2976, 16
      %v3089 = vrot.slane %v3087, 7
      %v3090 = vshll.u32 %v2976, 16
      %v3092 = vor.u32 %v3089, %v3090
      %v3093 = vrot.slane %v3089, 4
      %v3094 = vshrl.u32 %v2977, 16
      %v3096 = vrot.slane %v3094, 7
      %v3097 = vshll.u32 %v2977, 16
      %v3099 = vor.u32 %v3096, %v3097
      %v3100 = vsel %vm982, %v3093, %v3099
      %v3101 = vshrl.u32 %v2982, 16
      %v3103 = vrot.slane %v3101, 7
      %v3104 = vshll.u32 %v2982, 16
      %v3106 = vor.u32 %v3103, %v3104
      %v3107 = vrot.slane %v3103, 4
      %v3108 = vshrl.u32 %v2983, 16
      %v3110 = vrot.slane %v3108, 7
      %v3111 = vshll.u32 %v2983, 16
      %v3113 = vor.u32 %v3110, %v3111
      %v3114 = vsel %vm982, %v3107, %v3113
      %v3115 = vshrl.u32 %v2989, 16
      %v3117 = vrot.slane %v3115, 7
      %v3118 = vshll.u32 %v2989, 16
      %v3120 = vor.u32 %v3117, %v3118
      %v3121 = vrot.slane %v3117, 4
      %v3122 = vshrl.u32 %v2990, 16
      %v3124 = vrot.slane %v3122, 7
      %v3125 = vshll.u32 %v2990, 16
      %v3127 = vor.u32 %v3124, %v3125
      %v3128 = vsel %vm982, %v3121, %v3127
      %v3129 = vshrl.u32 %v2995, 16
      %v3131 = vrot.slane %v3129, 7
      %v3132 = vshll.u32 %v2995, 16
      %v3134 = vor.u32 %v3131, %v3132
      %v3135 = vrot.slane %v3131, 4
      %v3136 = vshrl.u32 %v2996, 16
      %v3138 = vrot.slane %v3136, 7
      %v3139 = vshll.u32 %v2996, 16
      %v3141 = vor.u32 %v3138, %v3139
      %v3142 = vsel %vm982, %v3135, %v3141
      %v3143 = vshrl.u32 %v3002, 16
      %v3145 = vrot.slane %v3143, 7
      %v3146 = vshll.u32 %v3002, 16
      %v3148 = vor.u32 %v3145, %v3146
      %v3149 = vrot.slane %v3145, 4
      %v3150 = vshrl.u32 %v3003, 16
      %v3152 = vrot.slane %v3150, 7
      %v3153 = vshll.u32 %v3003, 16
      %v3155 = vor.u32 %v3152, %v3153
      %v3156 = vsel %vm982, %v3149, %v3155
      %v3157 = vshrl.u32 %v3008, 16
      %v3159 = vrot.slane %v3157, 7
      %v3160 = vshll.u32 %v3008, 16
      %v3162 = vor.u32 %v3159, %v3160
      %v3163 = vrot.slane %v3159, 4
      %v3164 = vshrl.u32 %v3009, 16
      %v3166 = vrot.slane %v3164, 7
      %v3167 = vshll.u32 %v3009, 16
      %v3169 = vor.u32 %v3166, %v3167
      %v3170 = vsel %vm982, %v3163, %v3169
      %v3171 = vshrl.u32 %v3015, 16
      %v3173 = vrot.slane %v3171, 7
      %v3174 = vshll.u32 %v3015, 16
      %v3176 = vor.u32 %v3173, %v3174
      %v3177 = vrot.slane %v3173, 4
      %v3178 = vshrl.u32 %v3016, 16
      %v3180 = vrot.slane %v3178, 7
      %v3181 = vshll.u32 %v3016, 16
      %v3183 = vor.u32 %v3180, %v3181
      %v3184 = vsel %vm982, %v3177, %v3183
      %s3209 = scalar_lea.vmem [#allocation3], 8
      %vm3210 = vcmask 125952
      %vm3211 = vmand %vm3210, %vm1177
      %v3212 = vld [vmem:[%s3209] sm:$0xf]
      %v3213 = vsel %vm3211, %v3022, %v3212
      %3214 = vst [vmem:[%s3209] sm:$0xf] %v3213
      %vm3215 = vcmask 124928
      %vm3216 = vmand %vm3215, %vm1183
      %v3217 = vld [vmem:[%s3209 + $0x4] sm:$0x7]
      %v3218 = vsel %vm3216, %v3030, %v3217
      %3219 = vst [vmem:[%s3209 + $0x4] sm:$0x7] %v3218
      %v3220 = vld [vmem:[%s3209 + $0x8] sm:$0xf]
      %v3221 = vsel %vm3211, %v3036, %v3220
      %3222 = vst [vmem:[%s3209 + $0x8] sm:$0xf] %v3221
      %v3223 = vld [vmem:[%s3209 + $0xc] sm:$0x7]
      %v3224 = vsel %vm3216, %v3044, %v3223
      %3225 = vst [vmem:[%s3209 + $0xc] sm:$0x7] %v3224
      %v3226 = vld [vmem:[%s3209 + $0x10] sm:$0xf]
      %v3227 = vsel %vm3211, %v3050, %v3226
      %3228 = vst [vmem:[%s3209 + $0x10] sm:$0xf] %v3227
      %v3229 = vld [vmem:[%s3209 + $0x14] sm:$0x7]
      %v3230 = vsel %vm3216, %v3058, %v3229
      %3231 = vst [vmem:[%s3209 + $0x14] sm:$0x7] %v3230
      %v3232 = vld [vmem:[%s3209 + $0x18] sm:$0xf]
      %v3233 = vsel %vm3211, %v3064, %v3232
      %3234 = vst [vmem:[%s3209 + $0x18] sm:$0xf] %v3233
      %v3235 = vld [vmem:[%s3209 + $0x1c] sm:$0x7]
      %v3236 = vsel %vm3216, %v3072, %v3235
      %3237 = vst [vmem:[%s3209 + $0x1c] sm:$0x7] %v3236
      %v3238 = vld [vmem:[%s3209 + $0x20] sm:$0xf]
      %v3239 = vsel %vm3211, %v3078, %v3238
      %3240 = vst [vmem:[%s3209 + $0x20] sm:$0xf] %v3239
      %v3241 = vld [vmem:[%s3209 + $0x24] sm:$0x7]
      %v3242 = vsel %vm3216, %v3086, %v3241
      %3243 = vst [vmem:[%s3209 + $0x24] sm:$0x7] %v3242
      %v3244 = vld [vmem:[%s3209 + $0x28] sm:$0xf]
      %v3245 = vsel %vm3211, %v3092, %v3244
      %3246 = vst [vmem:[%s3209 + $0x28] sm:$0xf] %v3245
      %v3247 = vld [vmem:[%s3209 + $0x2c] sm:$0x7]
      %v3248 = vsel %vm3216, %v3100, %v3247
      %3249 = vst [vmem:[%s3209 + $0x2c] sm:$0x7] %v3248
      %v3250 = vld [vmem:[%s3209 + $0x30] sm:$0xf]
      %v3251 = vsel %vm3211, %v3106, %v3250
      %3252 = vst [vmem:[%s3209 + $0x30] sm:$0xf] %v3251
      %v3253 = vld [vmem:[%s3209 + $0x34] sm:$0x7]
      %v3254 = vsel %vm3216, %v3114, %v3253
      %3255 = vst [vmem:[%s3209 + $0x34] sm:$0x7] %v3254
      %v3256 = vld [vmem:[%s3209 + $0x38] sm:$0xf]
      %v3257 = vsel %vm3211, %v3120, %v3256
      %3258 = vst [vmem:[%s3209 + $0x38] sm:$0xf] %v3257
      %v3259 = vld [vmem:[%s3209 + $0x3c] sm:$0x7]
      %v3260 = vsel %vm3216, %v3128, %v3259
      %3261 = vst [vmem:[%s3209 + $0x3c] sm:$0x7] %v3260
      %v3262 = vld [vmem:[%s3209 + $0x40] sm:$0xf]
      %v3263 = vsel %vm3211, %v3134, %v3262
      %3264 = vst [vmem:[%s3209 + $0x40] sm:$0xf] %v3263
      %v3265 = vld [vmem:[%s3209 + $0x44] sm:$0x7]
      %v3266 = vsel %vm3216, %v3142, %v3265
      %3267 = vst [vmem:[%s3209 + $0x44] sm:$0x7] %v3266
      %v3268 = vld [vmem:[%s3209 + $0x48] sm:$0xf]
      %v3269 = vsel %vm3211, %v3148, %v3268
      %3270 = vst [vmem:[%s3209 + $0x48] sm:$0xf] %v3269
      %v3271 = vld [vmem:[%s3209 + $0x4c] sm:$0x7]
      %v3272 = vsel %vm3216, %v3156, %v3271
      %3273 = vst [vmem:[%s3209 + $0x4c] sm:$0x7] %v3272
      %v3274 = vld [vmem:[%s3209 + $0x50] sm:$0xf]
      %v3275 = vsel %vm3211, %v3162, %v3274
      %3276 = vst [vmem:[%s3209 + $0x50] sm:$0xf] %v3275
      %v3277 = vld [vmem:[%s3209 + $0x54] sm:$0x7]
      %v3278 = vsel %vm3216, %v3170, %v3277
      %3279 = vst [vmem:[%s3209 + $0x54] sm:$0x7] %v3278
      %v3280 = vld [vmem:[%s3209 + $0x58] sm:$0xf]
      %v3281 = vsel %vm3211, %v3176, %v3280
      %3282 = vst [vmem:[%s3209 + $0x58] sm:$0xf] %v3281
      %v3283 = vld [vmem:[%s3209 + $0x5c] sm:$0x7]
      %v3284 = vsel %vm3216, %v3184, %v3283
      %3285 = vst [vmem:[%s3209 + $0x5c] sm:$0x7] %v3284
      %v3286 = vld [vmem:[#allocation3] sm:$0xf]
      %v3287 = vld [vmem:[#allocation3 + $0x4] sm:$0x3]
      %v3288 = vld [vmem:[#allocation3 + $0x8] sm:$0xf]
      %v3289 = vld [vmem:[#allocation3 + $0xc] sm:$0x3]
      %v3290 = vld [vmem:[#allocation3 + $0x10] sm:$0xf]
      %v3291 = vld [vmem:[#allocation3 + $0x14] sm:$0x3]
      %v3292 = vld [vmem:[#allocation3 + $0x18] sm:$0xf]
      %v3293 = vld [vmem:[#allocation3 + $0x1c] sm:$0x3]
      %v3294 = vld [vmem:[#allocation3 + $0x20] sm:$0xf]
      %v3295 = vld [vmem:[#allocation3 + $0x24] sm:$0x3]
      %v3296 = vld [vmem:[#allocation3 + $0x28] sm:$0xf]
      %v3297 = vld [vmem:[#allocation3 + $0x2c] sm:$0x3]
      %v3298 = vld [vmem:[#allocation3 + $0x30] sm:$0xf]
      %v3299 = vld [vmem:[#allocation3 + $0x34] sm:$0x3]
      %v3300 = vld [vmem:[#allocation3 + $0x38] sm:$0xf]
      %v3301 = vld [vmem:[#allocation3 + $0x3c] sm:$0x3]
      %v3302 = vld [vmem:[#allocation3 + $0x40] sm:$0xf]
      %v3303 = vld [vmem:[#allocation3 + $0x44] sm:$0x3]
      %v3304 = vld [vmem:[#allocation3 + $0x48] sm:$0xf]
      %v3305 = vld [vmem:[#allocation3 + $0x4c] sm:$0x3]
      %v3306 = vld [vmem:[#allocation3 + $0x50] sm:$0xf]
      %v3307 = vld [vmem:[#allocation3 + $0x54] sm:$0x3]
      %v3308 = vld [vmem:[#allocation3 + $0x58] sm:$0xf]
      %v3309 = vld [vmem:[#allocation3 + $0x5c] sm:$0x3]
      %v3310 = vld [vmem:[#allocation3 + $0x4] sm:$0x7]
      %v3311 = vld [vmem:[#allocation3 + $0xc] sm:$0x7]
      %v3312 = vld [vmem:[#allocation3 + $0x14] sm:$0x7]
      %v3313 = vld [vmem:[#allocation3 + $0x1c] sm:$0x7]
      %v3314 = vld [vmem:[#allocation3 + $0x24] sm:$0x7]
      %v3315 = vld [vmem:[#allocation3 + $0x2c] sm:$0x7]
      %v3316 = vld [vmem:[#allocation3 + $0x34] sm:$0x7]
      %v3317 = vld [vmem:[#allocation3 + $0x3c] sm:$0x7]
      %v3318 = vld [vmem:[#allocation3 + $0x44] sm:$0x7]
      %v3319 = vld [vmem:[#allocation3 + $0x4c] sm:$0x7]
      %v3320 = vld [vmem:[#allocation3 + $0x54] sm:$0x7]
      %v3321 = vld [vmem:[#allocation3 + $0x5c] sm:$0x7]
      %v3322 = vld [vmem:[#allocation3] sm:$0xe]
      %v3323 = vld [vmem:[#allocation3 + $0x8] sm:$0xe]
      %v3324 = vld [vmem:[#allocation3 + $0x10] sm:$0xe]
      %v3325 = vld [vmem:[#allocation3 + $0x18] sm:$0xe]
      %v3326 = vld [vmem:[#allocation3 + $0x20] sm:$0xe]
      %v3327 = vld [vmem:[#allocation3 + $0x28] sm:$0xe]
      %v3328 = vld [vmem:[#allocation3 + $0x30] sm:$0xe]
      %v3329 = vld [vmem:[#allocation3 + $0x38] sm:$0xe]
      %v3330 = vld [vmem:[#allocation3 + $0x40] sm:$0xe]
      %v3331 = vld [vmem:[#allocation3 + $0x48] sm:$0xe]
      %v3332 = vld [vmem:[#allocation3 + $0x50] sm:$0xe]
      %v3333 = vld [vmem:[#allocation3 + $0x58] sm:$0xe]
      %v3334 = vld [vmem:[%s3209] sm:$0xf]
      %v3335 = vld [vmem:[%s3209 + $0x4] sm:$0x3]
      %v3336 = vld [vmem:[%s3209 + $0x8] sm:$0xf]
      %v3337 = vld [vmem:[%s3209 + $0xc] sm:$0x3]
      %v3338 = vld [vmem:[%s3209 + $0x10] sm:$0xf]
      %v3339 = vld [vmem:[%s3209 + $0x14] sm:$0x3]
      %v3340 = vld [vmem:[%s3209 + $0x18] sm:$0xf]
      %v3341 = vld [vmem:[%s3209 + $0x1c] sm:$0x3]
      %v3342 = vld [vmem:[%s3209 + $0x20] sm:$0xf]
      %v3343 = vld [vmem:[%s3209 + $0x24] sm:$0x3]
      %v3344 = vld [vmem:[%s3209 + $0x28] sm:$0xf]
      %v3345 = vld [vmem:[%s3209 + $0x2c] sm:$0x3]
      %v3346 = vld [vmem:[%s3209 + $0x30] sm:$0xf]
      %v3347 = vld [vmem:[%s3209 + $0x34] sm:$0x3]
      %v3348 = vld [vmem:[%s3209 + $0x38] sm:$0xf]
      %v3349 = vld [vmem:[%s3209 + $0x3c] sm:$0x3]
      %v3350 = vld [vmem:[%s3209 + $0x40] sm:$0xf]
      %v3351 = vld [vmem:[%s3209 + $0x44] sm:$0x3]
      %v3352 = vld [vmem:[%s3209 + $0x48] sm:$0xf]
      %v3353 = vld [vmem:[%s3209 + $0x4c] sm:$0x3]
      %v3354 = vld [vmem:[%s3209 + $0x50] sm:$0xf]
      %v3355 = vld [vmem:[%s3209 + $0x54] sm:$0x3]
      %v3356 = vld [vmem:[%s3209 + $0x58] sm:$0xf]
      %v3357 = vld [vmem:[%s3209 + $0x5c] sm:$0x3]
      %v3358 = vld [vmem:[%s3209 + $0x4] sm:$0x7]
      %v3359 = vld [vmem:[%s3209 + $0xc] sm:$0x7]
      %v3360 = vld [vmem:[%s3209 + $0x14] sm:$0x7]
      %v3361 = vld [vmem:[%s3209 + $0x1c] sm:$0x7]
      %v3362 = vld [vmem:[%s3209 + $0x24] sm:$0x7]
      %v3363 = vld [vmem:[%s3209 + $0x2c] sm:$0x7]
      %v3364 = vld [vmem:[%s3209 + $0x34] sm:$0x7]
      %v3365 = vld [vmem:[%s3209 + $0x3c] sm:$0x7]
      %v3366 = vld [vmem:[%s3209 + $0x44] sm:$0x7]
      %v3367 = vld [vmem:[%s3209 + $0x4c] sm:$0x7]
      %v3368 = vld [vmem:[%s3209 + $0x54] sm:$0x7]
      %v3369 = vld [vmem:[%s3209 + $0x5c] sm:$0x7]
      %v3370 = vld [vmem:[%s3209] sm:$0xe]
      %v3371 = vld [vmem:[%s3209 + $0x8] sm:$0xe]
      %v3372 = vld [vmem:[%s3209 + $0x10] sm:$0xe]
      %v3373 = vld [vmem:[%s3209 + $0x18] sm:$0xe]
      %v3374 = vld [vmem:[%s3209 + $0x20] sm:$0xe]
      %v3375 = vld [vmem:[%s3209 + $0x28] sm:$0xe]
      %v3376 = vld [vmem:[%s3209 + $0x30] sm:$0xe]
      %v3377 = vld [vmem:[%s3209 + $0x38] sm:$0xe]
      %v3378 = vld [vmem:[%s3209 + $0x40] sm:$0xe]
      %v3379 = vld [vmem:[%s3209 + $0x48] sm:$0xe]
      %v3380 = vld [vmem:[%s3209 + $0x50] sm:$0xe]
      %v3381 = vld [vmem:[%s3209 + $0x58] sm:$0xe]
      %s3382 = scalar_lea.vmem [#allocation3], 16
      %v3383 = vld [vmem:[%s3382] sm:$0xf]
      %v3384 = vld [vmem:[%s3382 + $0x4] sm:$0x3]
      %v3385 = vld [vmem:[%s3382 + $0x8] sm:$0xf]
      %v3386 = vld [vmem:[%s3382 + $0xc] sm:$0x3]
      %v3387 = vld [vmem:[%s3382 + $0x10] sm:$0xf]
      %v3388 = vld [vmem:[%s3382 + $0x14] sm:$0x3]
      %v3389 = vld [vmem:[%s3382 + $0x18] sm:$0xf]
      %v3390 = vld [vmem:[%s3382 + $0x1c] sm:$0x3]
      %v3391 = vld [vmem:[%s3382 + $0x20] sm:$0xf]
      %v3392 = vld [vmem:[%s3382 + $0x24] sm:$0x3]
      %v3393 = vld [vmem:[%s3382 + $0x28] sm:$0xf]
      %v3394 = vld [vmem:[%s3382 + $0x2c] sm:$0x3]
      %v3395 = vld [vmem:[%s3382 + $0x30] sm:$0xf]
      %v3396 = vld [vmem:[%s3382 + $0x34] sm:$0x3]
      %v3397 = vld [vmem:[%s3382 + $0x38] sm:$0xf]
      %v3398 = vld [vmem:[%s3382 + $0x3c] sm:$0x3]
      %v3399 = vld [vmem:[%s3382 + $0x40] sm:$0xf]
      %v3400 = vld [vmem:[%s3382 + $0x44] sm:$0x3]
      %v3401 = vld [vmem:[%s3382 + $0x48] sm:$0xf]
      %v3402 = vld [vmem:[%s3382 + $0x4c] sm:$0x3]
      %v3403 = vld [vmem:[%s3382 + $0x50] sm:$0xf]
      %v3404 = vld [vmem:[%s3382 + $0x54] sm:$0x3]
      %v3405 = vld [vmem:[%s3382 + $0x58] sm:$0xf]
      %v3406 = vld [vmem:[%s3382 + $0x5c] sm:$0x3]
      %v3407 = vld [vmem:[%s3382 + $0x4] sm:$0x7]
      %v3408 = vld [vmem:[%s3382 + $0xc] sm:$0x7]
      %v3409 = vld [vmem:[%s3382 + $0x14] sm:$0x7]
      %v3410 = vld [vmem:[%s3382 + $0x1c] sm:$0x7]
      %v3411 = vld [vmem:[%s3382 + $0x24] sm:$0x7]
      %v3412 = vld [vmem:[%s3382 + $0x2c] sm:$0x7]
      %v3413 = vld [vmem:[%s3382 + $0x34] sm:$0x7]
      %v3414 = vld [vmem:[%s3382 + $0x3c] sm:$0x7]
      %v3415 = vld [vmem:[%s3382 + $0x44] sm:$0x7]
      %v3416 = vld [vmem:[%s3382 + $0x4c] sm:$0x7]
      %v3417 = vld [vmem:[%s3382 + $0x54] sm:$0x7]
      %v3418 = vld [vmem:[%s3382 + $0x5c] sm:$0x7]
      %v3419 = vld [vmem:[%s3382] sm:$0xe]
      %v3420 = vld [vmem:[%s3382 + $0x8] sm:$0xe]
      %v3421 = vld [vmem:[%s3382 + $0x10] sm:$0xe]
      %v3422 = vld [vmem:[%s3382 + $0x18] sm:$0xe]
      %v3423 = vld [vmem:[%s3382 + $0x20] sm:$0xe]
      %v3424 = vld [vmem:[%s3382 + $0x28] sm:$0xe]
      %v3425 = vld [vmem:[%s3382 + $0x30] sm:$0xe]
      %v3426 = vld [vmem:[%s3382 + $0x38] sm:$0xe]
      %v3427 = vld [vmem:[%s3382 + $0x40] sm:$0xe]
      %v3428 = vld [vmem:[%s3382 + $0x48] sm:$0xe]
      %v3429 = vld [vmem:[%s3382 + $0x50] sm:$0xe]
      %v3430 = vld [vmem:[%s3382 + $0x58] sm:$0xe]
      %v3455 = vunpack.c.l.b16 %v3286
      %v3456 = vunpack.c.l.b16 %v3287
      %v3457 = vunpack.c.l.b16 %v3288
      %v3458 = vunpack.c.l.b16 %v3289
      %v3459 = vunpack.c.l.b16 %v3290
      %v3460 = vunpack.c.l.b16 %v3291
      %v3461 = vunpack.c.l.b16 %v3292
      %v3462 = vunpack.c.l.b16 %v3293
      %v3463 = vunpack.c.l.b16 %v3294
      %v3464 = vunpack.c.l.b16 %v3295
      %v3465 = vunpack.c.l.b16 %v3296
      %v3466 = vunpack.c.l.b16 %v3297
      %v3467 = vunpack.c.l.b16 %v3298
      %v3468 = vunpack.c.l.b16 %v3299
      %v3469 = vunpack.c.l.b16 %v3300
      %v3470 = vunpack.c.l.b16 %v3301
      %v3471 = vunpack.c.l.b16 %v3302
      %v3472 = vunpack.c.l.b16 %v3303
      %v3473 = vunpack.c.l.b16 %v3304
      %v3474 = vunpack.c.l.b16 %v3305
      %v3475 = vunpack.c.l.b16 %v3306
      %v3476 = vunpack.c.l.b16 %v3307
      %v3477 = vunpack.c.l.b16 %v3308
      %v3478 = vunpack.c.l.b16 %v3309
      %v3479 = vpack.c.b16 %v3456, %v3455
      %v3480 = vpack.c.b16 %v3458, %v3457
      %v3481 = vpack.c.b16 %v3460, %v3459
      %v3482 = vpack.c.b16 %v3462, %v3461
      %v3483 = vpack.c.b16 %v3464, %v3463
      %v3484 = vpack.c.b16 %v3466, %v3465
      %v3485 = vpack.c.b16 %v3468, %v3467
      %v3486 = vpack.c.b16 %v3470, %v3469
      %v3487 = vpack.c.b16 %v3472, %v3471
      %v3488 = vpack.c.b16 %v3474, %v3473
      %v3489 = vpack.c.b16 %v3476, %v3475
      %v3490 = vpack.c.b16 %v3478, %v3477
      %v3503 = vunpack.c.l.b16 %v3310
      %v3504 = vunpack.c.l.b16 %v3311
      %v3505 = vunpack.c.l.b16 %v3312
      %v3506 = vunpack.c.l.b16 %v3313
      %v3507 = vunpack.c.l.b16 %v3314
      %v3508 = vunpack.c.l.b16 %v3315
      %v3509 = vunpack.c.l.b16 %v3316
      %v3510 = vunpack.c.l.b16 %v3317
      %v3511 = vunpack.c.l.b16 %v3318
      %v3512 = vunpack.c.l.b16 %v3319
      %v3513 = vunpack.c.l.b16 %v3320
      %v3514 = vunpack.c.l.b16 %v3321
      %v3515 = vpack.c.b16 %v3503, %v3455
      %v3516 = vpack.c.b16 %v3504, %v3457
      %v3517 = vpack.c.b16 %v3505, %v3459
      %v3518 = vpack.c.b16 %v3506, %v3461
      %v3519 = vpack.c.b16 %v3507, %v3463
      %v3520 = vpack.c.b16 %v3508, %v3465
      %v3521 = vpack.c.b16 %v3509, %v3467
      %v3522 = vpack.c.b16 %v3510, %v3469
      %v3523 = vpack.c.b16 %v3511, %v3471
      %v3524 = vpack.c.b16 %v3512, %v3473
      %v3525 = vpack.c.b16 %v3513, %v3475
      %v3526 = vpack.c.b16 %v3514, %v3477
      %v3528 = vshrl.u32 %v3515, 16
      %v3530 = vshll.u32 %v3515, 16
      %v3532 = vrot.slane %v3530, 1
      %v3533 = vor.u32 %v3528, %v3532
      %v3535 = vshrl.u32 %v3516, 16
      %v3537 = vshll.u32 %v3516, 16
      %v3539 = vrot.slane %v3537, 1
      %v3540 = vor.u32 %v3535, %v3539
      %v3542 = vshrl.u32 %v3517, 16
      %v3544 = vshll.u32 %v3517, 16
      %v3546 = vrot.slane %v3544, 1
      %v3547 = vor.u32 %v3542, %v3546
      %v3549 = vshrl.u32 %v3518, 16
      %v3551 = vshll.u32 %v3518, 16
      %v3553 = vrot.slane %v3551, 1
      %v3554 = vor.u32 %v3549, %v3553
      %v3556 = vshrl.u32 %v3519, 16
      %v3558 = vshll.u32 %v3519, 16
      %v3560 = vrot.slane %v3558, 1
      %v3561 = vor.u32 %v3556, %v3560
      %v3563 = vshrl.u32 %v3520, 16
      %v3565 = vshll.u32 %v3520, 16
      %v3567 = vrot.slane %v3565, 1
      %v3568 = vor.u32 %v3563, %v3567
      %v3570 = vshrl.u32 %v3521, 16
      %v3572 = vshll.u32 %v3521, 16
      %v3574 = vrot.slane %v3572, 1
      %v3575 = vor.u32 %v3570, %v3574
      %v3577 = vshrl.u32 %v3522, 16
      %v3579 = vshll.u32 %v3522, 16
      %v3581 = vrot.slane %v3579, 1
      %v3582 = vor.u32 %v3577, %v3581
      %v3584 = vshrl.u32 %v3523, 16
      %v3586 = vshll.u32 %v3523, 16
      %v3588 = vrot.slane %v3586, 1
      %v3589 = vor.u32 %v3584, %v3588
      %v3591 = vshrl.u32 %v3524, 16
      %v3593 = vshll.u32 %v3524, 16
      %v3595 = vrot.slane %v3593, 1
      %v3596 = vor.u32 %v3591, %v3595
      %v3598 = vshrl.u32 %v3525, 16
      %v3600 = vshll.u32 %v3525, 16
      %v3602 = vrot.slane %v3600, 1
      %v3603 = vor.u32 %v3598, %v3602
      %v3605 = vshrl.u32 %v3526, 16
      %v3607 = vshll.u32 %v3526, 16
      %v3609 = vrot.slane %v3607, 1
      %v3610 = vor.u32 %v3605, %v3609
      %3611 = vrot.lane.b32.xlu0 %v3533, 16
      %v3612 = vpop.permute.xlu0 %3611
      %3613 = vrot.lane.b32.xlu0 %v3540, 16
      %v3614 = vpop.permute.xlu0 %3613
      %3615 = vrot.lane.b32.xlu0 %v3547, 16
      %v3616 = vpop.permute.xlu0 %3615
      %3617 = vrot.lane.b32.xlu0 %v3554, 16
      %v3618 = vpop.permute.xlu0 %3617
      %3619 = vrot.lane.b32.xlu0 %v3561, 16
      %v3620 = vpop.permute.xlu0 %3619
      %3621 = vrot.lane.b32.xlu0 %v3568, 16
      %v3622 = vpop.permute.xlu0 %3621
      %3623 = vrot.lane.b32.xlu0 %v3575, 16
      %v3624 = vpop.permute.xlu0 %3623
      %3625 = vrot.lane.b32.xlu0 %v3582, 16
      %v3626 = vpop.permute.xlu0 %3625
      %3627 = vrot.lane.b32.xlu0 %v3589, 16
      %v3628 = vpop.permute.xlu0 %3627
      %3629 = vrot.lane.b32.xlu0 %v3596, 16
      %v3630 = vpop.permute.xlu0 %3629
      %3631 = vrot.lane.b32.xlu0 %v3603, 16
      %v3632 = vpop.permute.xlu0 %3631
      %3633 = vrot.lane.b32.xlu0 %v3610, 16
      %v3634 = vpop.permute.xlu0 %3633
      %v3647 = vunpack.c.l.b16 %v3322
      %v3648 = vunpack.c.l.b16 %v3323
      %v3649 = vunpack.c.l.b16 %v3324
      %v3650 = vunpack.c.l.b16 %v3325
      %v3651 = vunpack.c.l.b16 %v3326
      %v3652 = vunpack.c.l.b16 %v3327
      %v3653 = vunpack.c.l.b16 %v3328
      %v3654 = vunpack.c.l.b16 %v3329
      %v3655 = vunpack.c.l.b16 %v3330
      %v3656 = vunpack.c.l.b16 %v3331
      %v3657 = vunpack.c.l.b16 %v3332
      %v3658 = vunpack.c.l.b16 %v3333
      %v3659 = vpack.c.b16 %v3503, %v3647
      %v3660 = vpack.c.b16 %v3504, %v3648
      %v3661 = vpack.c.b16 %v3505, %v3649
      %v3662 = vpack.c.b16 %v3506, %v3650
      %v3663 = vpack.c.b16 %v3507, %v3651
      %v3664 = vpack.c.b16 %v3508, %v3652
      %v3665 = vpack.c.b16 %v3509, %v3653
      %v3666 = vpack.c.b16 %v3510, %v3654
      %v3667 = vpack.c.b16 %v3511, %v3655
      %v3668 = vpack.c.b16 %v3512, %v3656
      %v3669 = vpack.c.b16 %v3513, %v3657
      %v3670 = vpack.c.b16 %v3514, %v3658
      %v3671 = vrot.slane %v3659, 1
      %v3672 = vrot.slane %v3660, 1
      %v3673 = vrot.slane %v3661, 1
      %v3674 = vrot.slane %v3662, 1
      %v3675 = vrot.slane %v3663, 1
      %v3676 = vrot.slane %v3664, 1
      %v3677 = vrot.slane %v3665, 1
      %v3678 = vrot.slane %v3666, 1
      %v3679 = vrot.slane %v3667, 1
      %v3680 = vrot.slane %v3668, 1
      %v3681 = vrot.slane %v3669, 1
      %v3682 = vrot.slane %v3670, 1
      %3683 = vrot.lane.b32.xlu0 %v3671, 32
      %v3684 = vpop.permute.xlu0 %3683
      %3685 = vrot.lane.b32.xlu0 %v3672, 32
      %v3686 = vpop.permute.xlu0 %3685
      %3687 = vrot.lane.b32.xlu0 %v3673, 32
      %v3688 = vpop.permute.xlu0 %3687
      %3689 = vrot.lane.b32.xlu0 %v3674, 32
      %v3690 = vpop.permute.xlu0 %3689
      %3691 = vrot.lane.b32.xlu0 %v3675, 32
      %v3692 = vpop.permute.xlu0 %3691
      %3693 = vrot.lane.b32.xlu0 %v3676, 32
      %v3694 = vpop.permute.xlu0 %3693
      %3695 = vrot.lane.b32.xlu0 %v3677, 32
      %v3696 = vpop.permute.xlu0 %3695
      %3697 = vrot.lane.b32.xlu0 %v3678, 32
      %v3698 = vpop.permute.xlu0 %3697
      %3699 = vrot.lane.b32.xlu0 %v3679, 32
      %v3700 = vpop.permute.xlu0 %3699
      %3701 = vrot.lane.b32.xlu0 %v3680, 32
      %v3702 = vpop.permute.xlu0 %3701
      %3703 = vrot.lane.b32.xlu0 %v3681, 32
      %v3704 = vpop.permute.xlu0 %3703
      %3705 = vrot.lane.b32.xlu0 %v3682, 32
      %v3706 = vpop.permute.xlu0 %3705
      %v3731 = vunpack.c.l.b16 %v3334
      %v3732 = vunpack.c.l.b16 %v3335
      %v3733 = vunpack.c.l.b16 %v3336
      %v3734 = vunpack.c.l.b16 %v3337
      %v3735 = vunpack.c.l.b16 %v3338
      %v3736 = vunpack.c.l.b16 %v3339
      %v3737 = vunpack.c.l.b16 %v3340
      %v3738 = vunpack.c.l.b16 %v3341
      %v3739 = vunpack.c.l.b16 %v3342
      %v3740 = vunpack.c.l.b16 %v3343
      %v3741 = vunpack.c.l.b16 %v3344
      %v3742 = vunpack.c.l.b16 %v3345
      %v3743 = vunpack.c.l.b16 %v3346
      %v3744 = vunpack.c.l.b16 %v3347
      %v3745 = vunpack.c.l.b16 %v3348
      %v3746 = vunpack.c.l.b16 %v3349
      %v3747 = vunpack.c.l.b16 %v3350
      %v3748 = vunpack.c.l.b16 %v3351
      %v3749 = vunpack.c.l.b16 %v3352
      %v3750 = vunpack.c.l.b16 %v3353
      %v3751 = vunpack.c.l.b16 %v3354
      %v3752 = vunpack.c.l.b16 %v3355
      %v3753 = vunpack.c.l.b16 %v3356
      %v3754 = vunpack.c.l.b16 %v3357
      %v3755 = vpack.c.b16 %v3732, %v3731
      %v3756 = vpack.c.b16 %v3734, %v3733
      %v3757 = vpack.c.b16 %v3736, %v3735
      %v3758 = vpack.c.b16 %v3738, %v3737
      %v3759 = vpack.c.b16 %v3740, %v3739
      %v3760 = vpack.c.b16 %v3742, %v3741
      %v3761 = vpack.c.b16 %v3744, %v3743
      %v3762 = vpack.c.b16 %v3746, %v3745
      %v3763 = vpack.c.b16 %v3748, %v3747
      %v3764 = vpack.c.b16 %v3750, %v3749
      %v3765 = vpack.c.b16 %v3752, %v3751
      %v3766 = vpack.c.b16 %v3754, %v3753
      %3767 = vrot.lane.b32.xlu0 %v3755, 48
      %v3768 = vpop.permute.xlu0 %3767
      %3769 = vrot.lane.b32.xlu0 %v3756, 48
      %v3770 = vpop.permute.xlu0 %3769
      %3771 = vrot.lane.b32.xlu0 %v3757, 48
      %v3772 = vpop.permute.xlu0 %3771
      %3773 = vrot.lane.b32.xlu0 %v3758, 48
      %v3774 = vpop.permute.xlu0 %3773
      %3775 = vrot.lane.b32.xlu0 %v3759, 48
      %v3776 = vpop.permute.xlu0 %3775
      %3777 = vrot.lane.b32.xlu0 %v3760, 48
      %v3778 = vpop.permute.xlu0 %3777
      %3779 = vrot.lane.b32.xlu0 %v3761, 48
      %v3780 = vpop.permute.xlu0 %3779
      %3781 = vrot.lane.b32.xlu0 %v3762, 48
      %v3782 = vpop.permute.xlu0 %3781
      %3783 = vrot.lane.b32.xlu0 %v3763, 48
      %v3784 = vpop.permute.xlu0 %3783
      %3785 = vrot.lane.b32.xlu0 %v3764, 48
      %v3786 = vpop.permute.xlu0 %3785
      %3787 = vrot.lane.b32.xlu0 %v3765, 48
      %v3788 = vpop.permute.xlu0 %3787
      %3789 = vrot.lane.b32.xlu0 %v3766, 48
      %v3790 = vpop.permute.xlu0 %3789
      %v3803 = vunpack.c.l.b16 %v3358
      %v3804 = vunpack.c.l.b16 %v3359
      %v3805 = vunpack.c.l.b16 %v3360
      %v3806 = vunpack.c.l.b16 %v3361
      %v3807 = vunpack.c.l.b16 %v3362
      %v3808 = vunpack.c.l.b16 %v3363
      %v3809 = vunpack.c.l.b16 %v3364
      %v3810 = vunpack.c.l.b16 %v3365
      %v3811 = vunpack.c.l.b16 %v3366
      %v3812 = vunpack.c.l.b16 %v3367
      %v3813 = vunpack.c.l.b16 %v3368
      %v3814 = vunpack.c.l.b16 %v3369
      %v3815 = vpack.c.b16 %v3803, %v3731
      %v3816 = vpack.c.b16 %v3804, %v3733
      %v3817 = vpack.c.b16 %v3805, %v3735
      %v3818 = vpack.c.b16 %v3806, %v3737
      %v3819 = vpack.c.b16 %v3807, %v3739
      %v3820 = vpack.c.b16 %v3808, %v3741
      %v3821 = vpack.c.b16 %v3809, %v3743
      %v3822 = vpack.c.b16 %v3810, %v3745
      %v3823 = vpack.c.b16 %v3811, %v3747
      %v3824 = vpack.c.b16 %v3812, %v3749
      %v3825 = vpack.c.b16 %v3813, %v3751
      %v3826 = vpack.c.b16 %v3814, %v3753
      %v3828 = vshrl.u32 %v3815, 16
      %v3830 = vshll.u32 %v3815, 16
      %v3832 = vrot.slane %v3830, 1
      %v3833 = vor.u32 %v3828, %v3832
      %v3835 = vshrl.u32 %v3816, 16
      %v3837 = vshll.u32 %v3816, 16
      %v3839 = vrot.slane %v3837, 1
      %v3840 = vor.u32 %v3835, %v3839
      %v3842 = vshrl.u32 %v3817, 16
      %v3844 = vshll.u32 %v3817, 16
      %v3846 = vrot.slane %v3844, 1
      %v3847 = vor.u32 %v3842, %v3846
      %v3849 = vshrl.u32 %v3818, 16
      %v3851 = vshll.u32 %v3818, 16
      %v3853 = vrot.slane %v3851, 1
      %v3854 = vor.u32 %v3849, %v3853
      %v3856 = vshrl.u32 %v3819, 16
      %v3858 = vshll.u32 %v3819, 16
      %v3860 = vrot.slane %v3858, 1
      %v3861 = vor.u32 %v3856, %v3860
      %v3863 = vshrl.u32 %v3820, 16
      %v3865 = vshll.u32 %v3820, 16
      %v3867 = vrot.slane %v3865, 1
      %v3868 = vor.u32 %v3863, %v3867
      %v3870 = vshrl.u32 %v3821, 16
      %v3872 = vshll.u32 %v3821, 16
      %v3874 = vrot.slane %v3872, 1
      %v3875 = vor.u32 %v3870, %v3874
      %v3877 = vshrl.u32 %v3822, 16
      %v3879 = vshll.u32 %v3822, 16
      %v3881 = vrot.slane %v3879, 1
      %v3882 = vor.u32 %v3877, %v3881
      %v3884 = vshrl.u32 %v3823, 16
      %v3886 = vshll.u32 %v3823, 16
      %v3888 = vrot.slane %v3886, 1
      %v3889 = vor.u32 %v3884, %v3888
      %v3891 = vshrl.u32 %v3824, 16
      %v3893 = vshll.u32 %v3824, 16
      %v3895 = vrot.slane %v3893, 1
      %v3896 = vor.u32 %v3891, %v3895
      %v3898 = vshrl.u32 %v3825, 16
      %v3900 = vshll.u32 %v3825, 16
      %v3902 = vrot.slane %v3900, 1
      %v3903 = vor.u32 %v3898, %v3902
      %v3905 = vshrl.u32 %v3826, 16
      %v3907 = vshll.u32 %v3826, 16
      %v3909 = vrot.slane %v3907, 1
      %v3910 = vor.u32 %v3905, %v3909
      %3911 = vrot.lane.b32.xlu0 %v3833, 64
      %v3912 = vpop.permute.xlu0 %3911
      %3913 = vrot.lane.b32.xlu0 %v3840, 64
      %v3914 = vpop.permute.xlu0 %3913
      %3915 = vrot.lane.b32.xlu0 %v3847, 64
      %v3916 = vpop.permute.xlu0 %3915
      %3917 = vrot.lane.b32.xlu0 %v3854, 64
      %v3918 = vpop.permute.xlu0 %3917
      %3919 = vrot.lane.b32.xlu0 %v3861, 64
      %v3920 = vpop.permute.xlu0 %3919
      %3921 = vrot.lane.b32.xlu0 %v3868, 64
      %v3922 = vpop.permute.xlu0 %3921
      %3923 = vrot.lane.b32.xlu0 %v3875, 64
      %v3924 = vpop.permute.xlu0 %3923
      %3925 = vrot.lane.b32.xlu0 %v3882, 64
      %v3926 = vpop.permute.xlu0 %3925
      %3927 = vrot.lane.b32.xlu0 %v3889, 64
      %v3928 = vpop.permute.xlu0 %3927
      %3929 = vrot.lane.b32.xlu0 %v3896, 64
      %v3930 = vpop.permute.xlu0 %3929
      %3931 = vrot.lane.b32.xlu0 %v3903, 64
      %v3932 = vpop.permute.xlu0 %3931
      %3933 = vrot.lane.b32.xlu0 %v3910, 64
      %v3934 = vpop.permute.xlu0 %3933
      %v3947 = vunpack.c.l.b16 %v3370
      %v3948 = vunpack.c.l.b16 %v3371
      %v3949 = vunpack.c.l.b16 %v3372
      %v3950 = vunpack.c.l.b16 %v3373
      %v3951 = vunpack.c.l.b16 %v3374
      %v3952 = vunpack.c.l.b16 %v3375
      %v3953 = vunpack.c.l.b16 %v3376
      %v3954 = vunpack.c.l.b16 %v3377
      %v3955 = vunpack.c.l.b16 %v3378
      %v3956 = vunpack.c.l.b16 %v3379
      %v3957 = vunpack.c.l.b16 %v3380
      %v3958 = vunpack.c.l.b16 %v3381
      %v3959 = vpack.c.b16 %v3803, %v3947
      %v3960 = vpack.c.b16 %v3804, %v3948
      %v3961 = vpack.c.b16 %v3805, %v3949
      %v3962 = vpack.c.b16 %v3806, %v3950
      %v3963 = vpack.c.b16 %v3807, %v3951
      %v3964 = vpack.c.b16 %v3808, %v3952
      %v3965 = vpack.c.b16 %v3809, %v3953
      %v3966 = vpack.c.b16 %v3810, %v3954
      %v3967 = vpack.c.b16 %v3811, %v3955
      %v3968 = vpack.c.b16 %v3812, %v3956
      %v3969 = vpack.c.b16 %v3813, %v3957
      %v3970 = vpack.c.b16 %v3814, %v3958
      %v3971 = vrot.slane %v3959, 1
      %v3972 = vrot.slane %v3960, 1
      %v3973 = vrot.slane %v3961, 1
      %v3974 = vrot.slane %v3962, 1
      %v3975 = vrot.slane %v3963, 1
      %v3976 = vrot.slane %v3964, 1
      %v3977 = vrot.slane %v3965, 1
      %v3978 = vrot.slane %v3966, 1
      %v3979 = vrot.slane %v3967, 1
      %v3980 = vrot.slane %v3968, 1
      %v3981 = vrot.slane %v3969, 1
      %v3982 = vrot.slane %v3970, 1
      %3983 = vrot.lane.b32.xlu0 %v3971, 80
      %v3984 = vpop.permute.xlu0 %3983
      %3985 = vrot.lane.b32.xlu0 %v3972, 80
      %v3986 = vpop.permute.xlu0 %3985
      %3987 = vrot.lane.b32.xlu0 %v3973, 80
      %v3988 = vpop.permute.xlu0 %3987
      %3989 = vrot.lane.b32.xlu0 %v3974, 80
      %v3990 = vpop.permute.xlu0 %3989
      %3991 = vrot.lane.b32.xlu0 %v3975, 80
      %v3992 = vpop.permute.xlu0 %3991
      %3993 = vrot.lane.b32.xlu0 %v3976, 80
      %v3994 = vpop.permute.xlu0 %3993
      %3995 = vrot.lane.b32.xlu0 %v3977, 80
      %v3996 = vpop.permute.xlu0 %3995
      %3997 = vrot.lane.b32.xlu0 %v3978, 80
      %v3998 = vpop.permute.xlu0 %3997
      %3999 = vrot.lane.b32.xlu0 %v3979, 80
      %v4000 = vpop.permute.xlu0 %3999
      %4001 = vrot.lane.b32.xlu0 %v3980, 80
      %v4002 = vpop.permute.xlu0 %4001
      %4003 = vrot.lane.b32.xlu0 %v3981, 80
      %v4004 = vpop.permute.xlu0 %4003
      %4005 = vrot.lane.b32.xlu0 %v3982, 80
      %v4006 = vpop.permute.xlu0 %4005
      %v4031 = vunpack.c.l.b16 %v3383
      %v4032 = vunpack.c.l.b16 %v3384
      %v4033 = vunpack.c.l.b16 %v3385
      %v4034 = vunpack.c.l.b16 %v3386
      %v4035 = vunpack.c.l.b16 %v3387
      %v4036 = vunpack.c.l.b16 %v3388
      %v4037 = vunpack.c.l.b16 %v3389
      %v4038 = vunpack.c.l.b16 %v3390
      %v4039 = vunpack.c.l.b16 %v3391
      %v4040 = vunpack.c.l.b16 %v3392
      %v4041 = vunpack.c.l.b16 %v3393
      %v4042 = vunpack.c.l.b16 %v3394
      %v4043 = vunpack.c.l.b16 %v3395
      %v4044 = vunpack.c.l.b16 %v3396
      %v4045 = vunpack.c.l.b16 %v3397
      %v4046 = vunpack.c.l.b16 %v3398
      %v4047 = vunpack.c.l.b16 %v3399
      %v4048 = vunpack.c.l.b16 %v3400
      %v4049 = vunpack.c.l.b16 %v3401
      %v4050 = vunpack.c.l.b16 %v3402
      %v4051 = vunpack.c.l.b16 %v3403
      %v4052 = vunpack.c.l.b16 %v3404
      %v4053 = vunpack.c.l.b16 %v3405
      %v4054 = vunpack.c.l.b16 %v3406
      %v4055 = vpack.c.b16 %v4032, %v4031
      %v4056 = vpack.c.b16 %v4034, %v4033
      %v4057 = vpack.c.b16 %v4036, %v4035
      %v4058 = vpack.c.b16 %v4038, %v4037
      %v4059 = vpack.c.b16 %v4040, %v4039
      %v4060 = vpack.c.b16 %v4042, %v4041
      %v4061 = vpack.c.b16 %v4044, %v4043
      %v4062 = vpack.c.b16 %v4046, %v4045
      %v4063 = vpack.c.b16 %v4048, %v4047
      %v4064 = vpack.c.b16 %v4050, %v4049
      %v4065 = vpack.c.b16 %v4052, %v4051
      %v4066 = vpack.c.b16 %v4054, %v4053
      %4067 = vrot.lane.b32.xlu0 %v4055, 96
      %v4068 = vpop.permute.xlu0 %4067
      %4069 = vrot.lane.b32.xlu0 %v4056, 96
      %v4070 = vpop.permute.xlu0 %4069
      %4071 = vrot.lane.b32.xlu0 %v4057, 96
      %v4072 = vpop.permute.xlu0 %4071
      %4073 = vrot.lane.b32.xlu0 %v4058, 96
      %v4074 = vpop.permute.xlu0 %4073
      %4075 = vrot.lane.b32.xlu0 %v4059, 96
      %v4076 = vpop.permute.xlu0 %4075
      %4077 = vrot.lane.b32.xlu0 %v4060, 96
      %v4078 = vpop.permute.xlu0 %4077
      %4079 = vrot.lane.b32.xlu0 %v4061, 96
      %v4080 = vpop.permute.xlu0 %4079
      %4081 = vrot.lane.b32.xlu0 %v4062, 96
      %v4082 = vpop.permute.xlu0 %4081
      %4083 = vrot.lane.b32.xlu0 %v4063, 96
      %v4084 = vpop.permute.xlu0 %4083
      %4085 = vrot.lane.b32.xlu0 %v4064, 96
      %v4086 = vpop.permute.xlu0 %4085
      %4087 = vrot.lane.b32.xlu0 %v4065, 96
      %v4088 = vpop.permute.xlu0 %4087
      %4089 = vrot.lane.b32.xlu0 %v4066, 96
      %v4090 = vpop.permute.xlu0 %4089
      %v4103 = vunpack.c.l.b16 %v3407
      %v4104 = vunpack.c.l.b16 %v3408
      %v4105 = vunpack.c.l.b16 %v3409
      %v4106 = vunpack.c.l.b16 %v3410
      %v4107 = vunpack.c.l.b16 %v3411
      %v4108 = vunpack.c.l.b16 %v3412
      %v4109 = vunpack.c.l.b16 %v3413
      %v4110 = vunpack.c.l.b16 %v3414
      %v4111 = vunpack.c.l.b16 %v3415
      %v4112 = vunpack.c.l.b16 %v3416
      %v4113 = vunpack.c.l.b16 %v3417
      %v4114 = vunpack.c.l.b16 %v3418
      %v4115 = vpack.c.b16 %v4103, %v4031
      %v4116 = vpack.c.b16 %v4104, %v4033
      %v4117 = vpack.c.b16 %v4105, %v4035
      %v4118 = vpack.c.b16 %v4106, %v4037
      %v4119 = vpack.c.b16 %v4107, %v4039
      %v4120 = vpack.c.b16 %v4108, %v4041
      %v4121 = vpack.c.b16 %v4109, %v4043
      %v4122 = vpack.c.b16 %v4110, %v4045
      %v4123 = vpack.c.b16 %v4111, %v4047
      %v4124 = vpack.c.b16 %v4112, %v4049
      %v4125 = vpack.c.b16 %v4113, %v4051
      %v4126 = vpack.c.b16 %v4114, %v4053
      %v4128 = vshrl.u32 %v4115, 16
      %v4130 = vshll.u32 %v4115, 16
      %v4132 = vrot.slane %v4130, 1
      %v4133 = vor.u32 %v4128, %v4132
      %v4135 = vshrl.u32 %v4116, 16
      %v4137 = vshll.u32 %v4116, 16
      %v4139 = vrot.slane %v4137, 1
      %v4140 = vor.u32 %v4135, %v4139
      %v4142 = vshrl.u32 %v4117, 16
      %v4144 = vshll.u32 %v4117, 16
      %v4146 = vrot.slane %v4144, 1
      %v4147 = vor.u32 %v4142, %v4146
      %v4149 = vshrl.u32 %v4118, 16
      %v4151 = vshll.u32 %v4118, 16
      %v4153 = vrot.slane %v4151, 1
      %v4154 = vor.u32 %v4149, %v4153
      %v4156 = vshrl.u32 %v4119, 16
      %v4158 = vshll.u32 %v4119, 16
      %v4160 = vrot.slane %v4158, 1
      %v4161 = vor.u32 %v4156, %v4160
      %v4163 = vshrl.u32 %v4120, 16
      %v4165 = vshll.u32 %v4120, 16
      %v4167 = vrot.slane %v4165, 1
      %v4168 = vor.u32 %v4163, %v4167
      %v4170 = vshrl.u32 %v4121, 16
      %v4172 = vshll.u32 %v4121, 16
      %v4174 = vrot.slane %v4172, 1
      %v4175 = vor.u32 %v4170, %v4174
      %v4177 = vshrl.u32 %v4122, 16
      %v4179 = vshll.u32 %v4122, 16
      %v4181 = vrot.slane %v4179, 1
      %v4182 = vor.u32 %v4177, %v4181
      %v4184 = vshrl.u32 %v4123, 16
      %v4186 = vshll.u32 %v4123, 16
      %v4188 = vrot.slane %v4186, 1
      %v4189 = vor.u32 %v4184, %v4188
      %v4191 = vshrl.u32 %v4124, 16
      %v4193 = vshll.u32 %v4124, 16
      %v4195 = vrot.slane %v4193, 1
      %v4196 = vor.u32 %v4191, %v4195
      %v4198 = vshrl.u32 %v4125, 16
      %v4200 = vshll.u32 %v4125, 16
      %v4202 = vrot.slane %v4200, 1
      %v4203 = vor.u32 %v4198, %v4202
      %v4205 = vshrl.u32 %v4126, 16
      %v4207 = vshll.u32 %v4126, 16
      %v4209 = vrot.slane %v4207, 1
      %v4210 = vor.u32 %v4205, %v4209
      %4211 = vrot.lane.b32.xlu0 %v4133, 112
      %v4212 = vpop.permute.xlu0 %4211
      %4213 = vrot.lane.b32.xlu0 %v4140, 112
      %v4214 = vpop.permute.xlu0 %4213
      %4215 = vrot.lane.b32.xlu0 %v4147, 112
      %v4216 = vpop.permute.xlu0 %4215
      %4217 = vrot.lane.b32.xlu0 %v4154, 112
      %v4218 = vpop.permute.xlu0 %4217
      %4219 = vrot.lane.b32.xlu0 %v4161, 112
      %v4220 = vpop.permute.xlu0 %4219
      %4221 = vrot.lane.b32.xlu0 %v4168, 112
      %v4222 = vpop.permute.xlu0 %4221
      %4223 = vrot.lane.b32.xlu0 %v4175, 112
      %v4224 = vpop.permute.xlu0 %4223
      %4225 = vrot.lane.b32.xlu0 %v4182, 112
      %v4226 = vpop.permute.xlu0 %4225
      %4227 = vrot.lane.b32.xlu0 %v4189, 112
      %v4228 = vpop.permute.xlu0 %4227
      %4229 = vrot.lane.b32.xlu0 %v4196, 112
      %v4230 = vpop.permute.xlu0 %4229
      %4231 = vrot.lane.b32.xlu0 %v4203, 112
      %v4232 = vpop.permute.xlu0 %4231
      %4233 = vrot.lane.b32.xlu0 %v4210, 112
      %v4234 = vpop.permute.xlu0 %4233
      %v4247 = vunpack.c.l.b16 %v3419
      %v4248 = vunpack.c.l.b16 %v3420
      %v4249 = vunpack.c.l.b16 %v3421
      %v4250 = vunpack.c.l.b16 %v3422
      %v4251 = vunpack.c.l.b16 %v3423
      %v4252 = vunpack.c.l.b16 %v3424
      %v4253 = vunpack.c.l.b16 %v3425
      %v4254 = vunpack.c.l.b16 %v3426
      %v4255 = vunpack.c.l.b16 %v3427
      %v4256 = vunpack.c.l.b16 %v3428
      %v4257 = vunpack.c.l.b16 %v3429
      %v4258 = vunpack.c.l.b16 %v3430
      %v4259 = vpack.c.b16 %v4103, %v4247
      %v4260 = vpack.c.b16 %v4104, %v4248
      %v4261 = vpack.c.b16 %v4105, %v4249
      %v4262 = vpack.c.b16 %v4106, %v4250
      %v4263 = vpack.c.b16 %v4107, %v4251
      %v4264 = vpack.c.b16 %v4108, %v4252
      %v4265 = vpack.c.b16 %v4109, %v4253
      %v4266 = vpack.c.b16 %v4110, %v4254
      %v4267 = vpack.c.b16 %v4111, %v4255
      %v4268 = vpack.c.b16 %v4112, %v4256
      %v4269 = vpack.c.b16 %v4113, %v4257
      %v4270 = vpack.c.b16 %v4114, %v4258
      %v4271 = vrot.slane %v4259, 1
      %v4272 = vrot.slane %v4260, 1
      %v4273 = vrot.slane %v4261, 1
      %v4274 = vrot.slane %v4262, 1
      %v4275 = vrot.slane %v4263, 1
      %v4276 = vrot.slane %v4264, 1
      %v4277 = vrot.slane %v4265, 1
      %v4278 = vrot.slane %v4266, 1
      %v4279 = vrot.slane %v4267, 1
      %v4280 = vrot.slane %v4268, 1
      %v4281 = vrot.slane %v4269, 1
      %v4282 = vrot.slane %v4270, 1
      %v4285 = vsel %vm2311, %v3479, %v3612
      %v4288 = vsel %vm2311, %v3480, %v3614
      %v4291 = vsel %vm2311, %v3481, %v3616
      %v4294 = vsel %vm2311, %v3482, %v3618
      %v4297 = vsel %vm2311, %v3483, %v3620
      %v4300 = vsel %vm2311, %v3484, %v3622
      %v4303 = vsel %vm2311, %v3485, %v3624
      %v4306 = vsel %vm2311, %v3486, %v3626
      %v4309 = vsel %vm2311, %v3487, %v3628
      %v4312 = vsel %vm2311, %v3488, %v3630
      %v4315 = vsel %vm2311, %v3489, %v3632
      %v4318 = vsel %vm2311, %v3490, %v3634
      %v4320 = vsel %vm2361, %v4285, %v3684
      %v4322 = vsel %vm2361, %v4288, %v3686
      %v4324 = vsel %vm2361, %v4291, %v3688
      %v4326 = vsel %vm2361, %v4294, %v3690
      %v4328 = vsel %vm2361, %v4297, %v3692
      %v4330 = vsel %vm2361, %v4300, %v3694
      %v4332 = vsel %vm2361, %v4303, %v3696
      %v4334 = vsel %vm2361, %v4306, %v3698
      %v4336 = vsel %vm2361, %v4309, %v3700
      %v4338 = vsel %vm2361, %v4312, %v3702
      %v4340 = vsel %vm2361, %v4315, %v3704
      %v4342 = vsel %vm2361, %v4318, %v3706
      %v4344 = vsel %vm2411, %v4320, %v3768
      %v4346 = vsel %vm2411, %v4322, %v3770
      %v4348 = vsel %vm2411, %v4324, %v3772
      %v4350 = vsel %vm2411, %v4326, %v3774
      %v4352 = vsel %vm2411, %v4328, %v3776
      %v4354 = vsel %vm2411, %v4330, %v3778
      %v4356 = vsel %vm2411, %v4332, %v3780
      %v4358 = vsel %vm2411, %v4334, %v3782
      %v4360 = vsel %vm2411, %v4336, %v3784
      %v4362 = vsel %vm2411, %v4338, %v3786
      %v4364 = vsel %vm2411, %v4340, %v3788
      %v4366 = vsel %vm2411, %v4342, %v3790
      %v4368 = vsel %vm2461, %v4344, %v3912
      %v4370 = vsel %vm2461, %v4346, %v3914
      %v4372 = vsel %vm2461, %v4348, %v3916
      %v4374 = vsel %vm2461, %v4350, %v3918
      %v4376 = vsel %vm2461, %v4352, %v3920
      %v4378 = vsel %vm2461, %v4354, %v3922
      %v4380 = vsel %vm2461, %v4356, %v3924
      %v4382 = vsel %vm2461, %v4358, %v3926
      %v4384 = vsel %vm2461, %v4360, %v3928
      %v4386 = vsel %vm2461, %v4362, %v3930
      %v4388 = vsel %vm2461, %v4364, %v3932
      %v4390 = vsel %vm2461, %v4366, %v3934
      %vm4391 = vcmask 654336
      %v4393 = vsel %vm4391, %v4368, %v3984
      %v4395 = vsel %vm4391, %v4370, %v3986
      %v4397 = vsel %vm4391, %v4372, %v3988
      %v4399 = vsel %vm4391, %v4374, %v3990
      %v4401 = vsel %vm4391, %v4376, %v3992
      %v4403 = vsel %vm4391, %v4378, %v3994
      %v4405 = vsel %vm4391, %v4380, %v3996
      %v4407 = vsel %vm4391, %v4382, %v3998
      %v4409 = vsel %vm4391, %v4384, %v4000
      %v4411 = vsel %vm4391, %v4386, %v4002
      %v4413 = vsel %vm4391, %v4388, %v4004
      %v4415 = vsel %vm4391, %v4390, %v4006
      %vm4416 = vcmask 785408
      %v4418 = vsel %vm4416, %v4393, %v4068
      %v4420 = vsel %vm4416, %v4395, %v4070
      %v4422 = vsel %vm4416, %v4397, %v4072
      %v4424 = vsel %vm4416, %v4399, %v4074
      %v4426 = vsel %vm4416, %v4401, %v4076
      %v4428 = vsel %vm4416, %v4403, %v4078
      %v4430 = vsel %vm4416, %v4405, %v4080
      %v4432 = vsel %vm4416, %v4407, %v4082
      %v4434 = vsel %vm4416, %v4409, %v4084
      %v4436 = vsel %vm4416, %v4411, %v4086
      %v4438 = vsel %vm4416, %v4413, %v4088
      %v4440 = vsel %vm4416, %v4415, %v4090
      %vm4441 = vcmask 916480
      %v4443 = vsel %vm4441, %v4418, %v4212
      %v4445 = vsel %vm4441, %v4420, %v4214
      %v4447 = vsel %vm4441, %v4422, %v4216
      %v4449 = vsel %vm4441, %v4424, %v4218
      %v4451 = vsel %vm4441, %v4426, %v4220
      %v4453 = vsel %vm4441, %v4428, %v4222
      %v4455 = vsel %vm4441, %v4430, %v4224
      %v4457 = vsel %vm4441, %v4432, %v4226
      %v4459 = vsel %vm4441, %v4434, %v4228
      %v4461 = vsel %vm4441, %v4436, %v4230
      %v4463 = vsel %vm4441, %v4438, %v4232
      %v4465 = vsel %vm4441, %v4440, %v4234
      %v4466 = vrot.slane %v4271, 6
      %v4467 = vrot.slane %v4272, 6
      %v4468 = vrot.slane %v4273, 6
      %v4469 = vrot.slane %v4274, 6
      %v4470 = vrot.slane %v4275, 6
      %v4471 = vrot.slane %v4276, 6
      %v4472 = vrot.slane %v4277, 6
      %v4473 = vrot.slane %v4278, 6
      %v4474 = vrot.slane %v4279, 6
      %v4475 = vrot.slane %v4280, 6
      %v4476 = vrot.slane %v4281, 6
      %v4477 = vrot.slane %v4282, 6
      %v4479 = vsel %vm729, %v4443, %v4466
      %v4480 = vsel %vm733, %v4443, %v4466
      %v4482 = vrot.slane %v4480, 2
      %vm4483 = vcmask 1045508
      %v4484 = vsel %vm4483, %v4443, %v4466
      %v4486 = vrot.slane %v4484, 4
      %v4488 = vsel %vm729, %v4445, %v4467
      %v4489 = vsel %vm733, %v4445, %v4467
      %v4491 = vrot.slane %v4489, 2
      %v4492 = vsel %vm4483, %v4445, %v4467
      %v4494 = vrot.slane %v4492, 4
      %v4496 = vsel %vm729, %v4447, %v4468
      %v4497 = vsel %vm733, %v4447, %v4468
      %v4499 = vrot.slane %v4497, 2
      %v4500 = vsel %vm4483, %v4447, %v4468
      %v4502 = vrot.slane %v4500, 4
      %v4504 = vsel %vm729, %v4449, %v4469
      %v4505 = vsel %vm733, %v4449, %v4469
      %v4507 = vrot.slane %v4505, 2
      %v4508 = vsel %vm4483, %v4449, %v4469
      %v4510 = vrot.slane %v4508, 4
      %v4512 = vsel %vm729, %v4451, %v4470
      %v4513 = vsel %vm733, %v4451, %v4470
      %v4515 = vrot.slane %v4513, 2
      %v4516 = vsel %vm4483, %v4451, %v4470
      %v4518 = vrot.slane %v4516, 4
      %v4520 = vsel %vm729, %v4453, %v4471
      %v4521 = vsel %vm733, %v4453, %v4471
      %v4523 = vrot.slane %v4521, 2
      %v4524 = vsel %vm4483, %v4453, %v4471
      %v4526 = vrot.slane %v4524, 4
      %v4528 = vsel %vm729, %v4455, %v4472
      %v4529 = vsel %vm733, %v4455, %v4472
      %v4531 = vrot.slane %v4529, 2
      %v4532 = vsel %vm4483, %v4455, %v4472
      %v4534 = vrot.slane %v4532, 4
      %v4536 = vsel %vm729, %v4457, %v4473
      %v4537 = vsel %vm733, %v4457, %v4473
      %v4539 = vrot.slane %v4537, 2
      %v4540 = vsel %vm4483, %v4457, %v4473
      %v4542 = vrot.slane %v4540, 4
      %v4544 = vsel %vm729, %v4459, %v4474
      %v4545 = vsel %vm733, %v4459, %v4474
      %v4547 = vrot.slane %v4545, 2
      %v4548 = vsel %vm4483, %v4459, %v4474
      %v4550 = vrot.slane %v4548, 4
      %v4552 = vsel %vm729, %v4461, %v4475
      %v4553 = vsel %vm733, %v4461, %v4475
      %v4555 = vrot.slane %v4553, 2
      %v4556 = vsel %vm4483, %v4461, %v4475
      %v4558 = vrot.slane %v4556, 4
      %v4560 = vsel %vm729, %v4463, %v4476
      %v4561 = vsel %vm733, %v4463, %v4476
      %v4563 = vrot.slane %v4561, 2
      %v4564 = vsel %vm4483, %v4463, %v4476
      %v4566 = vrot.slane %v4564, 4
      %v4568 = vsel %vm729, %v4465, %v4477
      %v4569 = vsel %vm733, %v4465, %v4477
      %v4571 = vrot.slane %v4569, 2
      %v4572 = vsel %vm4483, %v4465, %v4477
      %v4574 = vrot.slane %v4572, 4
      %v4575 = vld [vmem:[%s6] sm:$0xf]
      %v4576 = vld [vmem:[%s6 + $0x4] sm:$0xf]
      %v4577 = vld [vmem:[%s6 + $0x8] sm:$0xf]
      %v4578 = vld [vmem:[%s6 + $0xc] sm:$0xf]
      %v4579 = vld [vmem:[%s6 + $0x10] sm:$0xf]
      %v4580 = vld [vmem:[%s6 + $0x14] sm:$0xf]
      %v4581 = vld [vmem:[%s6 + $0x18] sm:$0xf]
      %v4582 = vld [vmem:[%s6 + $0x1c] sm:$0xf]
      %v4583 = vld [vmem:[%s6 + $0x20] sm:$0xf]
      %v4584 = vld [vmem:[%s6 + $0x24] sm:$0xf]
      %v4585 = vld [vmem:[%s6 + $0x28] sm:$0xf]
      %v4586 = vld [vmem:[%s6 + $0x2c] sm:$0xf]
      %v4587 = vld [vmem:[%s6 + $0x30] sm:$0xf]
      %v4588 = vld [vmem:[%s6 + $0x34] sm:$0xf]
      %v4589 = vld [vmem:[%s6 + $0x38] sm:$0xf]
      %v4590 = vld [vmem:[%s6 + $0x3c] sm:$0xf]
      %v4591 = vld [vmem:[%s6 + $0x40] sm:$0xf]
      %v4592 = vld [vmem:[%s6 + $0x44] sm:$0xf]
      %4593 = vst [vmem:[#allocation1] ss:$4 sm:$0xff] %v4479
      %s4595 = scalar_lea.vmem [#allocation1], 1
      %4596 = vst [vmem:[%s4595] ss:$4 sm:$0xff] %v4482
      %s4598 = scalar_lea.vmem [#allocation1], 2
      %4599 = vst [vmem:[%s4598] ss:$4 sm:$0xff] %v4486
      %s4600 = scalar_lea.vmem [#allocation1], 3
      %4601 = vst [vmem:[%s4600] ss:$4 sm:$0xff] %v4488
      %s4603 = scalar_lea.vmem [#allocation1], 32
      %4604 = vst [vmem:[%s4603] ss:$4 sm:$0xff] %v4491
      %s4606 = scalar_lea.vmem [#allocation1], 33
      %4607 = vst [vmem:[%s4606] ss:$4 sm:$0xff] %v4494
      %s4608 = scalar_lea.vmem [#allocation1], 34
      %4609 = vst [vmem:[%s4608] ss:$4 sm:$0xff] %v4496
      %s4611 = scalar_lea.vmem [#allocation1], 35
      %4612 = vst [vmem:[%s4611] ss:$4 sm:$0xff] %v4499
      %v4613 = vld.sshfl [vmem:[#allocation1] sm:$0xff pattern:$0x73625140]
      %v4614 = vld.sshfl [vmem:[#allocation1 + $0x8] sm:$0xff pattern:$0x73625140]
      %v4615 = vld.sshfl [vmem:[#allocation1 + $0x20] sm:$0xff pattern:$0x73625140]
      %v4616 = vld.sshfl [vmem:[#allocation1 + $0x28] sm:$0xff pattern:$0x73625140]
      %4618 = vst [vmem:[#allocation1] ss:$4 sm:$0xff] %v4502
      %4619 = vst [vmem:[%s4595] ss:$4 sm:$0xff] %v4504
      %4621 = vst [vmem:[%s4598] ss:$4 sm:$0xff] %v4507
      %4623 = vst [vmem:[%s4600] ss:$4 sm:$0xff] %v4510
      %4624 = vst [vmem:[%s4603] ss:$4 sm:$0xff] %v4512
      %4626 = vst [vmem:[%s4606] ss:$4 sm:$0xff] %v4515
      %4628 = vst [vmem:[%s4608] ss:$4 sm:$0xff] %v4518
      %4629 = vst [vmem:[%s4611] ss:$4 sm:$0xff] %v4520
      %v4630 = vld.sshfl [vmem:[#allocation1] sm:$0xff pattern:$0x73625140]
      %v4631 = vld.sshfl [vmem:[#allocation1 + $0x8] sm:$0xff pattern:$0x73625140]
      %v4632 = vld.sshfl [vmem:[#allocation1 + $0x20] sm:$0xff pattern:$0x73625140]
      %v4633 = vld.sshfl [vmem:[#allocation1 + $0x28] sm:$0xff pattern:$0x73625140]
      %4635 = vst [vmem:[#allocation1] ss:$4 sm:$0xff] %v4523
      %4637 = vst [vmem:[%s4595] ss:$4 sm:$0xff] %v4526
      %4638 = vst [vmem:[%s4598] ss:$4 sm:$0xff] %v4528
      %4640 = vst [vmem:[%s4600] ss:$4 sm:$0xff] %v4531
      %4642 = vst [vmem:[%s4603] ss:$4 sm:$0xff] %v4534
      %4643 = vst [vmem:[%s4606] ss:$4 sm:$0xff] %v4536
      %4645 = vst [vmem:[%s4608] ss:$4 sm:$0xff] %v4539
      %4647 = vst [vmem:[%s4611] ss:$4 sm:$0xff] %v4542
      %v4648 = vld.sshfl [vmem:[#allocation1] sm:$0xff pattern:$0x73625140]
      %v4649 = vld.sshfl [vmem:[#allocation1 + $0x8] sm:$0xff pattern:$0x73625140]
      %v4650 = vld.sshfl [vmem:[#allocation1 + $0x20] sm:$0xff pattern:$0x73625140]
      %v4651 = vld.sshfl [vmem:[#allocation1 + $0x28] sm:$0xff pattern:$0x73625140]
      %4652 = vst [vmem:[#allocation1] ss:$4 sm:$0xff] %v4544
      %4654 = vst [vmem:[%s4595] ss:$4 sm:$0xff] %v4547
      %4656 = vst [vmem:[%s4598] ss:$4 sm:$0xff] %v4550
      %4657 = vst [vmem:[%s4600] ss:$4 sm:$0xff] %v4552
      %4659 = vst [vmem:[%s4603] ss:$4 sm:$0xff] %v4555
      %4661 = vst [vmem:[%s4606] ss:$4 sm:$0xff] %v4558
      %4662 = vst [vmem:[%s4608] ss:$4 sm:$0xff] %v4560
      %4664 = vst [vmem:[%s4611] ss:$4 sm:$0xff] %v4563
      %v4665 = vld.sshfl [vmem:[#allocation1] sm:$0xff pattern:$0x73625140]
      %v4666 = vld.sshfl [vmem:[#allocation1 + $0x8] sm:$0xff pattern:$0x73625140]
      %v4667 = vld.sshfl [vmem:[#allocation1 + $0x20] sm:$0xff pattern:$0x73625140]
      %v4668 = vld.sshfl [vmem:[#allocation1 + $0x28] sm:$0xff pattern:$0x73625140]
      %4670 = vst [vmem:[#allocation1] ss:$4 sm:$0xff] %v4566
      %4671 = vst [vmem:[%s4595] ss:$4 sm:$0xff] %v4568
      %4673 = vst [vmem:[%s4598] ss:$4 sm:$0xff] %v4571
      %4675 = vst [vmem:[%s4600] ss:$4 sm:$0xff] %v4574
      %v4676 = vld.sshfl [vmem:[#allocation1] sm:$0xff pattern:$0x73625140]
      %v4677 = vld.sshfl [vmem:[#allocation1 + $0x8] sm:$0xff pattern:$0x73625140]
      %v4705 = vunpack.c.l.b16 %v4575
      %v4706 = vunpack.c.l.b16 %v4576
      %v4707 = vunpack.c.l.b16 %v4577
      %v4708 = vunpack.c.l.b16 %v4578
      %v4709 = vunpack.c.l.b16 %v4579
      %v4710 = vunpack.c.l.b16 %v4580
      %v4711 = vunpack.c.l.b16 %v4581
      %v4712 = vunpack.c.l.b16 %v4582
      %v4713 = vunpack.c.l.b16 %v4583
      %v4714 = vunpack.c.l.b16 %v4584
      %v4715 = vunpack.c.l.b16 %v4585
      %v4716 = vunpack.c.l.b16 %v4586
      %v4717 = vunpack.c.l.b16 %v4587
      %v4718 = vunpack.c.l.b16 %v4588
      %v4719 = vunpack.c.l.b16 %v4589
      %v4720 = vunpack.c.l.b16 %v4590
      %v4721 = vunpack.c.l.b16 %v4591
      %v4722 = vunpack.c.l.b16 %v4592
      %v4723 = vpack.c.b16 %v4706, %v4705
      %v4724 = vpack.c.b16 %v4708, %v4707
      %v4725 = vpack.c.b16 %v4710, %v4709
      %v4726 = vpack.c.b16 %v4712, %v4711
      %v4727 = vpack.c.b16 %v4714, %v4713
      %v4728 = vpack.c.b16 %v4716, %v4715
      %v4729 = vpack.c.b16 %v4718, %v4717
      %v4730 = vpack.c.b16 %v4720, %v4719
      %v4731 = vpack.c.b16 %v4722, %v4721
      %v4741 = vsel %vm2311, %v4614, 0
      %v4743 = vsel %vm2311, %v4616, 0
      %v4745 = vsel %vm2311, %v4631, 0
      %v4747 = vsel %vm2311, %v4633, 0
      %v4749 = vsel %vm2311, %v4649, 0
      %v4751 = vsel %vm2311, %v4651, 0
      %v4753 = vsel %vm2311, %v4666, 0
      %v4755 = vsel %vm2311, %v4668, 0
      %v4757 = vsel %vm2311, %v4677, 0
      %4759 = vmatpush.bf16.msra.mxu0 %v4730
      %4760 = vmatpush.bf16.msra.mxu0 %v4729
      %4761 = vmatpush.bf16.msra.mxu0 %v4728
      %4762 = vmatpush.bf16.msra.mxu0 %v4727
      %4763 = vmatpush.bf16.msra.mxu0 %v4726
      %4764 = vmatpush.bf16.msra.mxu0 %v4725
      %4765 = vmatpush.bf16.msra.mxu0 %v4724
      %4766 = vmatpush.bf16.msra.mxu0 %v4723
      %4767 = vmatmul.bf16.gmra.mxu0 %v4613
      %v4768 = vpop.f32.mrf.mxu0
      %v4769 = vadd.f32 0.0, %v4768
      %v4770 = vpop.f32.mrf.mxu0
      %v4771 = vadd.f32 0.0, %v4770
      %4772 = vmatmul.bf16.gmra.mxu0 %v4615
      %v4773 = vpop.f32.mrf.mxu0
      %v4774 = vadd.f32 0.0, %v4773
      %v4775 = vpop.f32.mrf.mxu0
      %v4776 = vadd.f32 0.0, %v4775
      %4777 = vmatmul.bf16.gmra.mxu0 %v4630
      %v4778 = vpop.f32.mrf.mxu0
      %v4779 = vadd.f32 0.0, %v4778
      %v4780 = vpop.f32.mrf.mxu0
      %v4781 = vadd.f32 0.0, %v4780
      %4782 = vmatmul.bf16.gmra.mxu0 %v4632
      %v4783 = vpop.f32.mrf.mxu0
      %v4784 = vadd.f32 0.0, %v4783
      %v4785 = vpop.f32.mrf.mxu0
      %v4786 = vadd.f32 0.0, %v4785
      %4787 = vmatmul.bf16.gmra.mxu0 %v4648
      %v4788 = vpop.f32.mrf.mxu0
      %v4789 = vadd.f32 0.0, %v4788
      %v4790 = vpop.f32.mrf.mxu0
      %v4791 = vadd.f32 0.0, %v4790
      %4792 = vmatmul.bf16.gmra.mxu0 %v4650
      %v4793 = vpop.f32.mrf.mxu0
      %v4794 = vadd.f32 0.0, %v4793
      %v4795 = vpop.f32.mrf.mxu0
      %v4796 = vadd.f32 0.0, %v4795
      %4797 = vmatmul.bf16.gmra.mxu0 %v4665
      %v4798 = vpop.f32.mrf.mxu0
      %v4799 = vadd.f32 0.0, %v4798
      %v4800 = vpop.f32.mrf.mxu0
      %v4801 = vadd.f32 0.0, %v4800
      %4802 = vmatmul.bf16.gmra.mxu0 %v4667
      %v4803 = vpop.f32.mrf.mxu0
      %v4804 = vadd.f32 0.0, %v4803
      %v4805 = vpop.f32.mrf.mxu0
      %v4806 = vadd.f32 0.0, %v4805
      %4807 = vmatmul.bf16.gmra.mxu0 %v4676
      %v4808 = vpop.f32.mrf.mxu0
      %v4809 = vadd.f32 0.0, %v4808
      %v4810 = vpop.f32.mrf.mxu0
      %v4811 = vadd.f32 0.0, %v4810
      %4812 = vdwg.mxu0
      %4813 = vmatpush.bf16.msra.mxu0 0
      %4814 = vmatpush.bf16.msra.mxu0 0
      %4815 = vmatpush.bf16.msra.mxu0 0
      %4816 = vmatpush.bf16.msra.mxu0 0
      %4817 = vmatpush.bf16.msra.mxu0 0
      %4818 = vmatpush.bf16.msra.mxu0 0
      %4819 = vmatpush.bf16.msra.mxu0 0
      %4820 = vmatpush.bf16.msra.mxu0 %v4731
      %4821 = vmatmul.bf16.gmra.mxu0 %v4741
      %v4822 = vpop.f32.mrf.mxu0
      %v4823 = vadd.f32 %v4769, %v4822
      %v4824 = vpop.f32.mrf.mxu0
      %v4825 = vadd.f32 %v4771, %v4824
      %4826 = vmatmul.bf16.gmra.mxu0 %v4743
      %v4827 = vpop.f32.mrf.mxu0
      %v4828 = vadd.f32 %v4774, %v4827
      %v4829 = vpop.f32.mrf.mxu0
      %v4830 = vadd.f32 %v4776, %v4829
      %4831 = vmatmul.bf16.gmra.mxu0 %v4745
      %v4832 = vpop.f32.mrf.mxu0
      %v4833 = vadd.f32 %v4779, %v4832
      %v4834 = vpop.f32.mrf.mxu0
      %v4835 = vadd.f32 %v4781, %v4834
      %4836 = vmatmul.bf16.gmra.mxu0 %v4747
      %v4837 = vpop.f32.mrf.mxu0
      %v4838 = vadd.f32 %v4784, %v4837
      %v4839 = vpop.f32.mrf.mxu0
      %v4840 = vadd.f32 %v4786, %v4839
      %4841 = vmatmul.bf16.gmra.mxu0 %v4749
      %v4842 = vpop.f32.mrf.mxu0
      %v4843 = vadd.f32 %v4789, %v4842
      %v4844 = vpop.f32.mrf.mxu0
      %v4845 = vadd.f32 %v4791, %v4844
      %4846 = vmatmul.bf16.gmra.mxu0 %v4751
      %v4847 = vpop.f32.mrf.mxu0
      %v4848 = vadd.f32 %v4794, %v4847
      %v4849 = vpop.f32.mrf.mxu0
      %v4850 = vadd.f32 %v4796, %v4849
      %4851 = vmatmul.bf16.gmra.mxu0 %v4753
      %v4852 = vpop.f32.mrf.mxu0
      %v4853 = vadd.f32 %v4799, %v4852
      %v4854 = vpop.f32.mrf.mxu0
      %v4855 = vadd.f32 %v4801, %v4854
      %4856 = vmatmul.bf16.gmra.mxu0 %v4755
      %v4857 = vpop.f32.mrf.mxu0
      %v4858 = vadd.f32 %v4804, %v4857
      %v4859 = vpop.f32.mrf.mxu0
      %v4860 = vadd.f32 %v4806, %v4859
      %4861 = vmatmul.bf16.gmra.mxu0 %v4757
      %v4862 = vpop.f32.mrf.mxu0
      %v4863 = vadd.f32 %v4809, %v4862
      %v4864 = vpop.f32.mrf.mxu0
      %v4865 = vadd.f32 %v4811, %v4864
      %4866 = vdwg.mxu0
      %v4885 = vrot.slane %v4823, 4
      %v4886 = vrot.slane %v4825, 4
      %v4887 = vrot.slane %v4828, 4
      %v4888 = vrot.slane %v4830, 4
      %v4889 = vrot.slane %v4833, 4
      %v4890 = vrot.slane %v4835, 4
      %v4891 = vrot.slane %v4838, 4
      %v4892 = vrot.slane %v4840, 4
      %v4893 = vrot.slane %v4843, 4
      %v4894 = vrot.slane %v4845, 4
      %v4895 = vrot.slane %v4848, 4
      %v4896 = vrot.slane %v4850, 4
      %v4897 = vrot.slane %v4853, 4
      %v4898 = vrot.slane %v4855, 4
      %v4899 = vrot.slane %v4858, 4
      %v4900 = vrot.slane %v4860, 4
      %v4901 = vrot.slane %v4863, 4
      %v4902 = vrot.slane %v4865, 4
      %v4921 = vrot.slane %v937, 4
      %v4922 = vrot.slane %v939, 4
      %v4923 = vrot.slane %v942, 4
      %v4924 = vrot.slane %v944, 4
      %v4925 = vrot.slane %v947, 4
      %v4926 = vrot.slane %v949, 4
      %v4927 = vrot.slane %v952, 4
      %v4928 = vrot.slane %v954, 4
      %v4929 = vrot.slane %v957, 4
      %v4930 = vrot.slane %v959, 4
      %v4931 = vrot.slane %v962, 4
      %v4932 = vrot.slane %v964, 4
      %v4933 = vrot.slane %v967, 4
      %v4934 = vrot.slane %v969, 4
      %v4935 = vrot.slane %v972, 4
      %v4936 = vrot.slane %v974, 4
      %v4937 = vrot.slane %v977, 4
      %v4938 = vrot.slane %v979, 4
      %4939 = vst [vmem:[#allocation1] ss:$2 sm:$0xff] %v4823
      %s4940 = scalar_lea.vmem [#allocation1], 1
      %4941 = vst [vmem:[%s4940] ss:$2 sm:$0xff] %v4885
      %s4942 = scalar_lea.vmem [#allocation1], 16
      %4943 = vst [vmem:[%s4942] ss:$2 sm:$0xff] %v4825
      %s4944 = scalar_lea.vmem [#allocation1], 17
      %4945 = vst [vmem:[%s4944] ss:$2 sm:$0xff] %v4886
      %s4946 = scalar_lea.vmem [#allocation1], 32
      %4947 = vst [vmem:[%s4946] ss:$2 sm:$0xff] %v4828
      %s4948 = scalar_lea.vmem [#allocation1], 33
      %4949 = vst [vmem:[%s4948] ss:$2 sm:$0xff] %v4887
      %s4950 = scalar_lea.vmem [#allocation1], 48
      %4951 = vst [vmem:[%s4950] ss:$2 sm:$0xff] %v4830
      %s4952 = scalar_lea.vmem [#allocation1], 49
      %4953 = vst [vmem:[%s4952] ss:$2 sm:$0xff] %v4888
      %v4954 = vld.sshfl [vmem:[#allocation1] sm:$0xff pattern:$0x75316420]
      %v4955 = vld.sshfl [vmem:[#allocation1 + $0x10] sm:$0xff pattern:$0x75316420]
      %v4956 = vld.sshfl [vmem:[#allocation1 + $0x20] sm:$0xff pattern:$0x75316420]
      %v4957 = vld.sshfl [vmem:[#allocation1 + $0x30] sm:$0xff pattern:$0x75316420]
      %4958 = vst [vmem:[#allocation1] ss:$2 sm:$0xff] %v4833
      %4959 = vst [vmem:[%s4940] ss:$2 sm:$0xff] %v4889
      %4960 = vst [vmem:[%s4942] ss:$2 sm:$0xff] %v4835
      %4961 = vst [vmem:[%s4944] ss:$2 sm:$0xff] %v4890
      %v4962 = vld.sshfl [vmem:[#allocation1] sm:$0xff pattern:$0x75316420]
      %v4963 = vld.sshfl [vmem:[#allocation1 + $0x10] sm:$0xff pattern:$0x75316420]
      %v4970 = vsel %vm2311, %v4954, 0.0
      %v4971 = vsel %vm2311, %v4955, 0.0
      %v4972 = vadd.f32 %v4970, %v4971
      %v4973 = vsel %vm2311, %v4956, 0.0
      %v4974 = vadd.f32 %v4972, %v4973
      %v4975 = vsel %vm2311, %v4957, 0.0
      %v4976 = vadd.f32 %v4974, %v4975
      %v4977 = vsel %vm2311, %v4962, 0.0
      %v4978 = vadd.f32 %v4976, %v4977
      %v4979 = vsel %vm2311, %v4963, 0.0
      %v4980 = vadd.f32 %v4978, %v4979
      %v4981 = vrot.slane %v4980, 4
      %v4982 = vadd.f32 %v4980, %v4981
      %v4983 = vrot.slane %v4982, 2
      %v4984 = vadd.f32 %v4982, %v4983
      %v4985 = vrot.slane %v4984, 1
      %v4986 = vadd.f32 %v4984, %v4985
      %v4987 = vmul.f32 %v4986, 0.020833334
      %4988 = vst [vmem:[#allocation1] ss:$2 sm:$0xff] %v4838
      %s4989 = scalar_lea.vmem [#allocation1], 1
      %4990 = vst [vmem:[%s4989] ss:$2 sm:$0xff] %v4891
      %s4991 = scalar_lea.vmem [#allocation1], 16
      %4992 = vst [vmem:[%s4991] ss:$2 sm:$0xff] %v4840
      %s4993 = scalar_lea.vmem [#allocation1], 17
      %4994 = vst [vmem:[%s4993] ss:$2 sm:$0xff] %v4892
      %s4995 = scalar_lea.vmem [#allocation1], 32
      %4996 = vst [vmem:[%s4995] ss:$2 sm:$0xff] %v4843
      %s4997 = scalar_lea.vmem [#allocation1], 33
      %4998 = vst [vmem:[%s4997] ss:$2 sm:$0xff] %v4893
      %s4999 = scalar_lea.vmem [#allocation1], 48
      %5000 = vst [vmem:[%s4999] ss:$2 sm:$0xff] %v4845
      %s5001 = scalar_lea.vmem [#allocation1], 49
      %5002 = vst [vmem:[%s5001] ss:$2 sm:$0xff] %v4894
      %v5003 = vld.sshfl [vmem:[#allocation1] sm:$0xff pattern:$0x75316420]
      %v5004 = vld.sshfl [vmem:[#allocation1 + $0x10] sm:$0xff pattern:$0x75316420]
      %v5005 = vld.sshfl [vmem:[#allocation1 + $0x20] sm:$0xff pattern:$0x75316420]
      %v5006 = vld.sshfl [vmem:[#allocation1 + $0x30] sm:$0xff pattern:$0x75316420]
      %5007 = vst [vmem:[#allocation1] ss:$2 sm:$0xff] %v4848
      %5008 = vst [vmem:[%s4989] ss:$2 sm:$0xff] %v4895
      %5009 = vst [vmem:[%s4991] ss:$2 sm:$0xff] %v4850
      %5010 = vst [vmem:[%s4993] ss:$2 sm:$0xff] %v4896
      %v5011 = vld.sshfl [vmem:[#allocation1] sm:$0xff pattern:$0x75316420]
      %v5012 = vld.sshfl [vmem:[#allocation1 + $0x10] sm:$0xff pattern:$0x75316420]
      %v5019 = vsel %vm2311, %v5003, 0.0
      %v5020 = vsel %vm2311, %v5004, 0.0
      %v5021 = vadd.f32 %v5019, %v5020
      %v5022 = vsel %vm2311, %v5005, 0.0
      %v5023 = vadd.f32 %v5021, %v5022
      %v5024 = vsel %vm2311, %v5006, 0.0
      %v5025 = vadd.f32 %v5023, %v5024
      %v5026 = vsel %vm2311, %v5011, 0.0
      %v5027 = vadd.f32 %v5025, %v5026
      %v5028 = vsel %vm2311, %v5012, 0.0
      %v5029 = vadd.f32 %v5027, %v5028
      %v5030 = vrot.slane %v5029, 4
      %v5031 = vadd.f32 %v5029, %v5030
      %v5032 = vrot.slane %v5031, 2
      %v5033 = vadd.f32 %v5031, %v5032
      %v5034 = vrot.slane %v5033, 1
      %v5035 = vadd.f32 %v5033, %v5034
      %v5036 = vmul.f32 %v5035, 0.020833334
      %5037 = vst [vmem:[#allocation1] ss:$2 sm:$0xff] %v4853
      %s5038 = scalar_lea.vmem [#allocation1], 1
      %5039 = vst [vmem:[%s5038] ss:$2 sm:$0xff] %v4897
      %s5040 = scalar_lea.vmem [#allocation1], 16
      %5041 = vst [vmem:[%s5040] ss:$2 sm:$0xff] %v4855
      %s5042 = scalar_lea.vmem [#allocation1], 17
      %5043 = vst [vmem:[%s5042] ss:$2 sm:$0xff] %v4898
      %s5044 = scalar_lea.vmem [#allocation1], 32
      %5045 = vst [vmem:[%s5044] ss:$2 sm:$0xff] %v4858
      %s5046 = scalar_lea.vmem [#allocation1], 33
      %5047 = vst [vmem:[%s5046] ss:$2 sm:$0xff] %v4899
      %s5048 = scalar_lea.vmem [#allocation1], 48
      %5049 = vst [vmem:[%s5048] ss:$2 sm:$0xff] %v4860
      %s5050 = scalar_lea.vmem [#allocation1], 49
      %5051 = vst [vmem:[%s5050] ss:$2 sm:$0xff] %v4900
      %v5052 = vld.sshfl [vmem:[#allocation1] sm:$0xff pattern:$0x75316420]
      %v5053 = vld.sshfl [vmem:[#allocation1 + $0x10] sm:$0xff pattern:$0x75316420]
      %v5054 = vld.sshfl [vmem:[#allocation1 + $0x20] sm:$0xff pattern:$0x75316420]
      %v5055 = vld.sshfl [vmem:[#allocation1 + $0x30] sm:$0xff pattern:$0x75316420]
      %5056 = vst [vmem:[#allocation1] ss:$2 sm:$0xff] %v4863
      %5057 = vst [vmem:[%s5038] ss:$2 sm:$0xff] %v4901
      %5058 = vst [vmem:[%s5040] ss:$2 sm:$0xff] %v4865
      %5059 = vst [vmem:[%s5042] ss:$2 sm:$0xff] %v4902
      %v5060 = vld.sshfl [vmem:[#allocation1] sm:$0xff pattern:$0x75316420]
      %v5061 = vld.sshfl [vmem:[#allocation1 + $0x10] sm:$0xff pattern:$0x75316420]
      %v5068 = vsel %vm2311, %v5052, 0.0
      %v5069 = vsel %vm2311, %v5053, 0.0
      %v5070 = vadd.f32 %v5068, %v5069
      %v5071 = vsel %vm2311, %v5054, 0.0
      %v5072 = vadd.f32 %v5070, %v5071
      %v5073 = vsel %vm2311, %v5055, 0.0
      %v5074 = vadd.f32 %v5072, %v5073
      %v5075 = vsel %vm2311, %v5060, 0.0
      %v5076 = vadd.f32 %v5074, %v5075
      %v5077 = vsel %vm2311, %v5061, 0.0
      %v5078 = vadd.f32 %v5076, %v5077
      %v5079 = vrot.slane %v5078, 4
      %v5080 = vadd.f32 %v5078, %v5079
      %v5081 = vrot.slane %v5080, 2
      %v5082 = vadd.f32 %v5080, %v5081
      %v5083 = vrot.slane %v5082, 1
      %v5084 = vadd.f32 %v5082, %v5083
      %v5085 = vmul.f32 %v5084, 0.020833334
      %v5086 = vadd.f32 %v4987, %v5036
      %v5087 = vadd.f32 %v5086, %v5085
      %v5088 = vld [vmem:[%s8] sm:$0xff]
      %v5089 = vld [vmem:[%s8 + $0x8] sm:$0xff]
      %v5091 = vsel %vm2311, %v5087, 0
      %5093 = vmatpush.msra.mxu0 0.0
      %5094 = vmatpush.msra.mxu0 0.0
      %5095 = vmatpush.msra.mxu0 0.0
      %5096 = vmatpush.msra.mxu0 0.0
      %5097 = vmatpush.msra.mxu0 0.0
      %5098 = vmatpush.msra.mxu0 0.0
      %5099 = vmatpush.msra.mxu0 0.0
      %5100 = vmatpush.msra.mxu0 0.0
      %5101 = vmatpush.msra.mxu0 0.0
      %5102 = vmatpush.msra.mxu0 0.0
      %5103 = vmatpush.msra.mxu0 0.0
      %5104 = vmatpush.msra.mxu0 0.0
      %5105 = vmatpush.msra.mxu0 0.0
      %5106 = vmatpush.msra.mxu0 0.0
      %5107 = vmatpush.msra.mxu0 %v5089
      %5108 = vmatpush.msra.mxu0 %v5088
      %5109 = vmatmul.f32.gmra.mxu0 %v5091
      %v5110 = vpop.f32.mrf.mxu0
      %v5111 = vadd.f32 0.0, %v5110
      %5112 = vdwg.mxu0
      %v5113 = vmax.f32 %v5111, 0.0
      %v5114 = vld [vmem:[%s9] sm:$0xff]
      %v5115 = vld [vmem:[%s9 + $0x8] sm:$0xff]
      %v5116 = vld [vmem:[%s9 + $0x10] sm:$0xff]
      %v5117 = vld [vmem:[%s9 + $0x18] sm:$0xff]
      %v5119 = vsel %vm2361, %v5113, 0
      %5121 = vmatpush.msra.mxu0 0.0
      %5122 = vmatpush.msra.mxu0 0.0
      %5123 = vmatpush.msra.mxu0 0.0
      %5124 = vmatpush.msra.mxu0 0.0
      %5125 = vmatpush.msra.mxu0 0.0
      %5126 = vmatpush.msra.mxu0 0.0
      %5127 = vmatpush.msra.mxu0 0.0
      %5128 = vmatpush.msra.mxu0 0.0
      %5129 = vmatpush.msra.mxu0 0.0
      %5130 = vmatpush.msra.mxu0 0.0
      %5131 = vmatpush.msra.mxu0 0.0
      %5132 = vmatpush.msra.mxu0 0.0
      %5133 = vmatpush.msra.mxu0 %v5117
      %5134 = vmatpush.msra.mxu0 %v5116
      %5135 = vmatpush.msra.mxu0 %v5115
      %5136 = vmatpush.msra.mxu0 %v5114
      %5137 = vmatmul.f32.gmra.mxu0 %v5119
      %v5138 = vpop.f32.mrf.mxu0
      %v5139 = vadd.f32 0.0, %v5138
      %5140 = vdwg.mxu0
      %5142 = vrot.lane.b32.xlu0 %v5139, 112
      %v5143 = vpop.permute.xlu0 %5142
      %v5145 = vmax.f32 %v5139, %v5143
      %5146 = vrot.lane.b32.xlu0 %v5139, 96
      %v5147 = vpop.permute.xlu0 %5146
      %v5149 = vmax.f32 %v5145, %v5147
      %v5150 = vsub.f32 %v5139, %v5149
      %v5151 = vmul.f32 %v5150, 1.442695
      %v5152 = vpow.pop %v5151
      %5154 = vrot.lane.b32.xlu0 %v5149, 16
      %v5155 = vpop.permute.xlu0 %5154
      %v5157 = vsub.f32 %v5139, %v5155
      %v5158 = vmul.f32 %v5157, 1.442695
      %v5159 = vpow.pop %v5158
      %5160 = vrot.lane.b32.xlu0 %v5149, 32
      %v5161 = vpop.permute.xlu0 %5160
      %v5163 = vsub.f32 %v5139, %v5161
      %v5164 = vmul.f32 %v5163, 1.442695
      %v5165 = vpow.pop %v5164
      %5167 = vrot.lane.b32.xlu0 %v5159, 112
      %v5168 = vpop.permute.xlu0 %5167
      %v5170 = vadd.f32 %v5152, %v5168
      %5172 = vrot.lane.b32.xlu0 %v5165, 96
      %v5173 = vpop.permute.xlu0 %5172
      %v5175 = vadd.f32 %v5170, %v5173
      %v5176 = vrcp.pop %v5175
      %v5177 = vmul.f32 %v5152, %v5176
      %5179 = vrot.lane.b32.xlu0 %v5176, 16
      %v5180 = vpop.permute.xlu0 %5179
      %v5182 = vmul.f32 %v5159, %v5180
      %5183 = vrot.lane.b32.xlu0 %v5176, 32
      %v5184 = vpop.permute.xlu0 %5183
      %v5186 = vmul.f32 %v5165, %v5184
      %v5187 = vperm.slane %v5177, 0
      %5188 = vst [vmem:[#allocation1] ss:$2 sm:$0xff] %v4823
      %s5189 = scalar_lea.vmem [#allocation1], 1
      %5190 = vst [vmem:[%s5189] ss:$2 sm:$0xff] %v4885
      %s5191 = scalar_lea.vmem [#allocation1], 16
      %5192 = vst [vmem:[%s5191] ss:$2 sm:$0xff] %v4825
      %v5193 = vld.sshfl [vmem:[#allocation1] sm:$0xff pattern:$0x75316420]
      %v5194 = vld.sshfl [vmem:[#allocation1 + $0x10] sm:$0xff pattern:$0x75316420]
      %s5195 = scalar_lea.vmem [#allocation1], 32
      %5196 = vst [vmem:[%s5195] ss:$2 sm:$0xff] %v4886
      %s5197 = scalar_lea.vmem [#allocation1], 33
      %5198 = vst [vmem:[%s5197] ss:$2 sm:$0xff] %v4828
      %s5199 = scalar_lea.vmem [#allocation1], 48
      %5200 = vst [vmem:[%s5199] ss:$2 sm:$0xff] %v4887
      %v5201 = vld.sshfl [vmem:[#allocation1 + $0x20] sm:$0xff pattern:$0x75316420]
      %v5202 = vld.sshfl [vmem:[#allocation1 + $0x30] sm:$0xff pattern:$0x75316420]
      %5203 = vst [vmem:[#allocation1] ss:$2 sm:$0xff] %v4830
      %5204 = vst [vmem:[%s5189] ss:$2 sm:$0xff] %v4888
      %5205 = vst [vmem:[%s5191] ss:$2 sm:$0xff] %v4833
      %v5206 = vld.sshfl [vmem:[#allocation1] sm:$0xff pattern:$0x75316420]
      %v5207 = vld.sshfl [vmem:[#allocation1 + $0x10] sm:$0xff pattern:$0x75316420]
      %5208 = vst [vmem:[%s5195] ss:$2 sm:$0xff] %v4889
      %5209 = vst [vmem:[%s5197] ss:$2 sm:$0xff] %v4835
      %5210 = vst [vmem:[%s5199] ss:$2 sm:$0xff] %v4890
      %v5211 = vld.sshfl [vmem:[#allocation1 + $0x20] sm:$0xff pattern:$0x75316420]
      %v5212 = vld.sshfl [vmem:[#allocation1 + $0x30] sm:$0xff pattern:$0x75316420]
      %v5221 = vmul.f32 %v5187, %v5193
      %v5222 = vmul.f32 %v5187, %v5194
      %v5223 = vmul.f32 %v5187, %v5201
      %v5224 = vmul.f32 %v5187, %v5202
      %v5225 = vmul.f32 %v5187, %v5206
      %v5226 = vmul.f32 %v5187, %v5207
      %v5227 = vmul.f32 %v5187, %v5211
      %v5228 = vmul.f32 %v5187, %v5212
      %5229 = vst [vmem:[#allocation1] ss:$2 sm:$0xff] %v937
      %s5230 = scalar_lea.vmem [#allocation1], 1
      %5231 = vst [vmem:[%s5230] ss:$2 sm:$0xff] %v4921
      %s5232 = scalar_lea.vmem [#allocation1], 16
      %5233 = vst [vmem:[%s5232] ss:$2 sm:$0xff] %v939
      %v5234 = vld.sshfl [vmem:[#allocation1] sm:$0xff pattern:$0x75316420]
      %v5235 = vld.sshfl [vmem:[#allocation1 + $0x10] sm:$0xff pattern:$0x75316420]
      %s5236 = scalar_lea.vmem [#allocation1], 32
      %5237 = vst [vmem:[%s5236] ss:$2 sm:$0xff] %v4922
      %s5238 = scalar_lea.vmem [#allocation1], 33
      %5239 = vst [vmem:[%s5238] ss:$2 sm:$0xff] %v942
      %s5240 = scalar_lea.vmem [#allocation1], 48
      %5241 = vst [vmem:[%s5240] ss:$2 sm:$0xff] %v4923
      %v5242 = vld.sshfl [vmem:[#allocation1 + $0x20] sm:$0xff pattern:$0x75316420]
      %v5243 = vld.sshfl [vmem:[#allocation1 + $0x30] sm:$0xff pattern:$0x75316420]
      %5244 = vst [vmem:[#allocation1] ss:$2 sm:$0xff] %v944
      %5245 = vst [vmem:[%s5230] ss:$2 sm:$0xff] %v4924
      %5246 = vst [vmem:[%s5232] ss:$2 sm:$0xff] %v947
      %v5247 = vld.sshfl [vmem:[#allocation1] sm:$0xff pattern:$0x75316420]
      %v5248 = vld.sshfl [vmem:[#allocation1 + $0x10] sm:$0xff pattern:$0x75316420]
      %5249 = vst [vmem:[%s5236] ss:$2 sm:$0xff] %v4925
      %5250 = vst [vmem:[%s5238] ss:$2 sm:$0xff] %v949
      %5251 = vst [vmem:[%s5240] ss:$2 sm:$0xff] %v4926
      %v5252 = vld.sshfl [vmem:[#allocation1 + $0x20] sm:$0xff pattern:$0x75316420]
      %v5253 = vld.sshfl [vmem:[#allocation1 + $0x30] sm:$0xff pattern:$0x75316420]
      %v5262 = vadd.f32 %v5221, %v5234
      %v5263 = vadd.f32 %v5222, %v5235
      %v5264 = vadd.f32 %v5223, %v5242
      %v5265 = vadd.f32 %v5224, %v5243
      %v5266 = vadd.f32 %v5225, %v5247
      %v5267 = vadd.f32 %v5226, %v5248
      %v5268 = vadd.f32 %v5227, %v5252
      %v5269 = vadd.f32 %v5228, %v5253
      %5270 = vst.msk [vmem:[%s359] sm:$0xff] %vm2311, %v5262
      %5271 = vst.msk [vmem:[%s359 + $0x8] sm:$0xf] %vm458, %v5263
      %5272 = vst.msk [vmem:[%s359 + $0x10] sm:$0xff] %vm2311, %v5264
      %5273 = vst.msk [vmem:[%s359 + $0x18] sm:$0xf] %vm458, %v5265
      %5274 = vst.msk [vmem:[%s359 + $0x20] sm:$0xff] %vm2311, %v5266
      %5275 = vst.msk [vmem:[%s359 + $0x28] sm:$0xf] %vm458, %v5267
      %5276 = vst.msk [vmem:[%s359 + $0x30] sm:$0xff] %vm2311, %v5268
      %5277 = vst.msk [vmem:[%s359 + $0x38] sm:$0xf] %vm458, %v5269
      %v5278 = vperm.slane %v5182, 0
      %5279 = vst [vmem:[#allocation1] ss:$2 sm:$0xff] %v4838
      %s5280 = scalar_lea.vmem [#allocation1], 1
      %5281 = vst [vmem:[%s5280] ss:$2 sm:$0xff] %v4891
      %s5282 = scalar_lea.vmem [#allocation1], 16
      %5283 = vst [vmem:[%s5282] ss:$2 sm:$0xff] %v4840
      %v5284 = vld.sshfl [vmem:[#allocation1] sm:$0xff pattern:$0x75316420]
      %v5285 = vld.sshfl [vmem:[#allocation1 + $0x10] sm:$0xff pattern:$0x75316420]
      %s5286 = scalar_lea.vmem [#allocation1], 32
      %5287 = vst [vmem:[%s5286] ss:$2 sm:$0xff] %v4892
      %s5288 = scalar_lea.vmem [#allocation1], 33
      %5289 = vst [vmem:[%s5288] ss:$2 sm:$0xff] %v4843
      %s5290 = scalar_lea.vmem [#allocation1], 48
      %5291 = vst [vmem:[%s5290] ss:$2 sm:$0xff] %v4893
      %v5292 = vld.sshfl [vmem:[#allocation1 + $0x20] sm:$0xff pattern:$0x75316420]
      %v5293 = vld.sshfl [vmem:[#allocation1 + $0x30] sm:$0xff pattern:$0x75316420]
      %5294 = vst [vmem:[#allocation1] ss:$2 sm:$0xff] %v4845
      %5295 = vst [vmem:[%s5280] ss:$2 sm:$0xff] %v4894
      %5296 = vst [vmem:[%s5282] ss:$2 sm:$0xff] %v4848
      %v5297 = vld.sshfl [vmem:[#allocation1] sm:$0xff pattern:$0x75316420]
      %v5298 = vld.sshfl [vmem:[#allocation1 + $0x10] sm:$0xff pattern:$0x75316420]
      %5299 = vst [vmem:[%s5286] ss:$2 sm:$0xff] %v4895
      %5300 = vst [vmem:[%s5288] ss:$2 sm:$0xff] %v4850
      %5301 = vst [vmem:[%s5290] ss:$2 sm:$0xff] %v4896
      %v5302 = vld.sshfl [vmem:[#allocation1 + $0x20] sm:$0xff pattern:$0x75316420]
      %v5303 = vld.sshfl [vmem:[#allocation1 + $0x30] sm:$0xff pattern:$0x75316420]
      %5304 = vrot.lane.b32.xlu0 %v5284, 16
      %v5305 = vpop.permute.xlu0 %5304
      %5306 = vrot.lane.b32.xlu0 %v5285, 16
      %v5307 = vpop.permute.xlu0 %5306
      %5308 = vrot.lane.b32.xlu0 %v5292, 16
      %v5309 = vpop.permute.xlu0 %5308
      %5310 = vrot.lane.b32.xlu0 %v5293, 16
      %v5311 = vpop.permute.xlu0 %5310
      %5312 = vrot.lane.b32.xlu0 %v5297, 16
      %v5313 = vpop.permute.xlu0 %5312
      %5314 = vrot.lane.b32.xlu0 %v5298, 16
      %v5315 = vpop.permute.xlu0 %5314
      %5316 = vrot.lane.b32.xlu0 %v5302, 16
      %v5317 = vpop.permute.xlu0 %5316
      %5318 = vrot.lane.b32.xlu0 %v5303, 16
      %v5319 = vpop.permute.xlu0 %5318
      %v5328 = vmul.f32 %v5278, %v5305
      %v5329 = vmul.f32 %v5278, %v5307
      %v5330 = vmul.f32 %v5278, %v5309
      %v5331 = vmul.f32 %v5278, %v5311
      %v5332 = vmul.f32 %v5278, %v5313
      %v5333 = vmul.f32 %v5278, %v5315
      %v5334 = vmul.f32 %v5278, %v5317
      %v5335 = vmul.f32 %v5278, %v5319
      %5336 = vst [vmem:[#allocation1] ss:$2 sm:$0xff] %v952
      %s5337 = scalar_lea.vmem [#allocation1], 1
      %5338 = vst [vmem:[%s5337] ss:$2 sm:$0xff] %v4927
      %s5339 = scalar_lea.vmem [#allocation1], 16
      %5340 = vst [vmem:[%s5339] ss:$2 sm:$0xff] %v954
      %v5341 = vld.sshfl [vmem:[#allocation1] sm:$0xff pattern:$0x75316420]
      %v5342 = vld.sshfl [vmem:[#allocation1 + $0x10] sm:$0xff pattern:$0x75316420]
      %s5343 = scalar_lea.vmem [#allocation1], 32
      %5344 = vst [vmem:[%s5343] ss:$2 sm:$0xff] %v4928
      %s5345 = scalar_lea.vmem [#allocation1], 33
      %5346 = vst [vmem:[%s5345] ss:$2 sm:$0xff] %v957
      %s5347 = scalar_lea.vmem [#allocation1], 48
      %5348 = vst [vmem:[%s5347] ss:$2 sm:$0xff] %v4929
      %v5349 = vld.sshfl [vmem:[#allocation1 + $0x20] sm:$0xff pattern:$0x75316420]
      %v5350 = vld.sshfl [vmem:[#allocation1 + $0x30] sm:$0xff pattern:$0x75316420]
      %5351 = vst [vmem:[#allocation1] ss:$2 sm:$0xff] %v959
      %5352 = vst [vmem:[%s5337] ss:$2 sm:$0xff] %v4930
      %5353 = vst [vmem:[%s5339] ss:$2 sm:$0xff] %v962
      %v5354 = vld.sshfl [vmem:[#allocation1] sm:$0xff pattern:$0x75316420]
      %v5355 = vld.sshfl [vmem:[#allocation1 + $0x10] sm:$0xff pattern:$0x75316420]
      %5356 = vst [vmem:[%s5343] ss:$2 sm:$0xff] %v4931
      %5357 = vst [vmem:[%s5345] ss:$2 sm:$0xff] %v964
      %5358 = vst [vmem:[%s5347] ss:$2 sm:$0xff] %v4932
      %v5359 = vld.sshfl [vmem:[#allocation1 + $0x20] sm:$0xff pattern:$0x75316420]
      %v5360 = vld.sshfl [vmem:[#allocation1 + $0x30] sm:$0xff pattern:$0x75316420]
      %5361 = vrot.lane.b32.xlu0 %v5341, 16
      %v5362 = vpop.permute.xlu0 %5361
      %5363 = vrot.lane.b32.xlu0 %v5342, 16
      %v5364 = vpop.permute.xlu0 %5363
      %5365 = vrot.lane.b32.xlu0 %v5349, 16
      %v5366 = vpop.permute.xlu0 %5365
      %5367 = vrot.lane.b32.xlu0 %v5350, 16
      %v5368 = vpop.permute.xlu0 %5367
      %5369 = vrot.lane.b32.xlu0 %v5354, 16
      %v5370 = vpop.permute.xlu0 %5369
      %5371 = vrot.lane.b32.xlu0 %v5355, 16
      %v5372 = vpop.permute.xlu0 %5371
      %5373 = vrot.lane.b32.xlu0 %v5359, 16
      %v5374 = vpop.permute.xlu0 %5373
      %5375 = vrot.lane.b32.xlu0 %v5360, 16
      %v5376 = vpop.permute.xlu0 %5375
      %v5385 = vadd.f32 %v5328, %v5362
      %v5386 = vadd.f32 %v5329, %v5364
      %v5387 = vadd.f32 %v5330, %v5366
      %v5388 = vadd.f32 %v5331, %v5368
      %v5389 = vadd.f32 %v5332, %v5370
      %v5390 = vadd.f32 %v5333, %v5372
      %v5391 = vadd.f32 %v5334, %v5374
      %v5392 = vadd.f32 %v5335, %v5376
      %5401 = vrot.lane.b32.xlu0 %v5385, 112
      %v5402 = vpop.permute.xlu0 %5401
      %5403 = vrot.lane.b32.xlu0 %v5386, 112
      %v5404 = vpop.permute.xlu0 %5403
      %5405 = vrot.lane.b32.xlu0 %v5387, 112
      %v5406 = vpop.permute.xlu0 %5405
      %5407 = vrot.lane.b32.xlu0 %v5388, 112
      %v5408 = vpop.permute.xlu0 %5407
      %5409 = vrot.lane.b32.xlu0 %v5389, 112
      %v5410 = vpop.permute.xlu0 %5409
      %5411 = vrot.lane.b32.xlu0 %v5390, 112
      %v5412 = vpop.permute.xlu0 %5411
      %5413 = vrot.lane.b32.xlu0 %v5391, 112
      %v5414 = vpop.permute.xlu0 %5413
      %5415 = vrot.lane.b32.xlu0 %v5392, 112
      %v5416 = vpop.permute.xlu0 %5415
      %s5425 = scalar_lea.vmem %s359, 64
      %5426 = vst.msk [vmem:[%s5425] sm:$0xff] %vm2311, %v5402
      %5427 = vst.msk [vmem:[%s5425 + $0x8] sm:$0xf] %vm458, %v5404
      %5428 = vst.msk [vmem:[%s5425 + $0x10] sm:$0xff] %vm2311, %v5406
      %5429 = vst.msk [vmem:[%s5425 + $0x18] sm:$0xf] %vm458, %v5408
      %5430 = vst.msk [vmem:[%s5425 + $0x20] sm:$0xff] %vm2311, %v5410
      %5431 = vst.msk [vmem:[%s5425 + $0x28] sm:$0xf] %vm458, %v5412
      %5432 = vst.msk [vmem:[%s5425 + $0x30] sm:$0xff] %vm2311, %v5414
      %5433 = vst.msk [vmem:[%s5425 + $0x38] sm:$0xf] %vm458, %v5416
      %v5434 = vperm.slane %v5186, 0
      %5435 = vst [vmem:[#allocation1] ss:$2 sm:$0xff] %v4853
      %s5436 = scalar_lea.vmem [#allocation1], 1
      %5437 = vst [vmem:[%s5436] ss:$2 sm:$0xff] %v4897
      %s5438 = scalar_lea.vmem [#allocation1], 16
      %5439 = vst [vmem:[%s5438] ss:$2 sm:$0xff] %v4855
      %v5440 = vld.sshfl [vmem:[#allocation1] sm:$0xff pattern:$0x75316420]
      %v5441 = vld.sshfl [vmem:[#allocation1 + $0x10] sm:$0xff pattern:$0x75316420]
      %s5442 = scalar_lea.vmem [#allocation1], 32
      %5443 = vst [vmem:[%s5442] ss:$2 sm:$0xff] %v4898
      %s5444 = scalar_lea.vmem [#allocation1], 33
      %5445 = vst [vmem:[%s5444] ss:$2 sm:$0xff] %v4858
      %s5446 = scalar_lea.vmem [#allocation1], 48
      %5447 = vst [vmem:[%s5446] ss:$2 sm:$0xff] %v4899
      %v5448 = vld.sshfl [vmem:[#allocation1 + $0x20] sm:$0xff pattern:$0x75316420]
      %v5449 = vld.sshfl [vmem:[#allocation1 + $0x30] sm:$0xff pattern:$0x75316420]
      %5450 = vst [vmem:[#allocation1] ss:$2 sm:$0xff] %v4860
      %5451 = vst [vmem:[%s5436] ss:$2 sm:$0xff] %v4900
      %5452 = vst [vmem:[%s5438] ss:$2 sm:$0xff] %v4863
      %v5453 = vld.sshfl [vmem:[#allocation1] sm:$0xff pattern:$0x75316420]
      %v5454 = vld.sshfl [vmem:[#allocation1 + $0x10] sm:$0xff pattern:$0x75316420]
      %5455 = vst [vmem:[%s5442] ss:$2 sm:$0xff] %v4901
      %5456 = vst [vmem:[%s5444] ss:$2 sm:$0xff] %v4865
      %5457 = vst [vmem:[%s5446] ss:$2 sm:$0xff] %v4902
      %v5458 = vld.sshfl [vmem:[#allocation1 + $0x20] sm:$0xff pattern:$0x75316420]
      %v5459 = vld.sshfl [vmem:[#allocation1 + $0x30] sm:$0xff pattern:$0x75316420]
      %5460 = vrot.lane.b32.xlu0 %v5440, 32
      %v5461 = vpop.permute.xlu0 %5460
      %5462 = vrot.lane.b32.xlu0 %v5441, 32
      %v5463 = vpop.permute.xlu0 %5462
      %5464 = vrot.lane.b32.xlu0 %v5448, 32
      %v5465 = vpop.permute.xlu0 %5464
      %5466 = vrot.lane.b32.xlu0 %v5449, 32
      %v5467 = vpop.permute.xlu0 %5466
      %5468 = vrot.lane.b32.xlu0 %v5453, 32
      %v5469 = vpop.permute.xlu0 %5468
      %5470 = vrot.lane.b32.xlu0 %v5454, 32
      %v5471 = vpop.permute.xlu0 %5470
      %5472 = vrot.lane.b32.xlu0 %v5458, 32
      %v5473 = vpop.permute.xlu0 %5472
      %5474 = vrot.lane.b32.xlu0 %v5459, 32
      %v5475 = vpop.permute.xlu0 %5474
      %v5484 = vmul.f32 %v5434, %v5461
      %v5485 = vmul.f32 %v5434, %v5463
      %v5486 = vmul.f32 %v5434, %v5465
      %v5487 = vmul.f32 %v5434, %v5467
      %v5488 = vmul.f32 %v5434, %v5469
      %v5489 = vmul.f32 %v5434, %v5471
      %v5490 = vmul.f32 %v5434, %v5473
      %v5491 = vmul.f32 %v5434, %v5475
      %5492 = vst [vmem:[#allocation1] ss:$2 sm:$0xff] %v967
      %s5493 = scalar_lea.vmem [#allocation1], 1
      %5494 = vst [vmem:[%s5493] ss:$2 sm:$0xff] %v4933
      %s5495 = scalar_lea.vmem [#allocation1], 16
      %5496 = vst [vmem:[%s5495] ss:$2 sm:$0xff] %v969
      %v5497 = vld.sshfl [vmem:[#allocation1] sm:$0xff pattern:$0x75316420]
      %v5498 = vld.sshfl [vmem:[#allocation1 + $0x10] sm:$0xff pattern:$0x75316420]
      %s5499 = scalar_lea.vmem [#allocation1], 32
      %5500 = vst [vmem:[%s5499] ss:$2 sm:$0xff] %v4934
      %s5501 = scalar_lea.vmem [#allocation1], 33
      %5502 = vst [vmem:[%s5501] ss:$2 sm:$0xff] %v972
      %s5503 = scalar_lea.vmem [#allocation1], 48
      %5504 = vst [vmem:[%s5503] ss:$2 sm:$0xff] %v4935
      %v5505 = vld.sshfl [vmem:[#allocation1 + $0x20] sm:$0xff pattern:$0x75316420]
      %v5506 = vld.sshfl [vmem:[#allocation1 + $0x30] sm:$0xff pattern:$0x75316420]
      %5507 = vst [vmem:[#allocation1] ss:$2 sm:$0xff] %v974
      %5508 = vst [vmem:[%s5493] ss:$2 sm:$0xff] %v4936
      %5509 = vst [vmem:[%s5495] ss:$2 sm:$0xff] %v977
      %v5510 = vld.sshfl [vmem:[#allocation1] sm:$0xff pattern:$0x75316420]
      %v5511 = vld.sshfl [vmem:[#allocation1 + $0x10] sm:$0xff pattern:$0x75316420]
      %5512 = vst [vmem:[%s5499] ss:$2 sm:$0xff] %v4937
      %5513 = vst [vmem:[%s5501] ss:$2 sm:$0xff] %v979
      %5514 = vst [vmem:[%s5503] ss:$2 sm:$0xff] %v4938
      %v5515 = vld.sshfl [vmem:[#allocation1 + $0x20] sm:$0xff pattern:$0x75316420]
      %v5516 = vld.sshfl [vmem:[#allocation1 + $0x30] sm:$0xff pattern:$0x75316420]
      %5517 = vrot.lane.b32.xlu0 %v5497, 32
      %v5518 = vpop.permute.xlu0 %5517
      %5519 = vrot.lane.b32.xlu0 %v5498, 32
      %v5520 = vpop.permute.xlu0 %5519
      %5521 = vrot.lane.b32.xlu0 %v5505, 32
      %v5522 = vpop.permute.xlu0 %5521
      %5523 = vrot.lane.b32.xlu0 %v5506, 32
      %v5524 = vpop.permute.xlu0 %5523
      %5525 = vrot.lane.b32.xlu0 %v5510, 32
      %v5526 = vpop.permute.xlu0 %5525
      %5527 = vrot.lane.b32.xlu0 %v5511, 32
      %v5528 = vpop.permute.xlu0 %5527
      %5529 = vrot.lane.b32.xlu0 %v5515, 32
      %v5530 = vpop.permute.xlu0 %5529
      %5531 = vrot.lane.b32.xlu0 %v5516, 32
      %v5532 = vpop.permute.xlu0 %5531
      %v5541 = vadd.f32 %v5484, %v5518
      %v5542 = vadd.f32 %v5485, %v5520
      %v5543 = vadd.f32 %v5486, %v5522
      %v5544 = vadd.f32 %v5487, %v5524
      %v5545 = vadd.f32 %v5488, %v5526
      %v5546 = vadd.f32 %v5489, %v5528
      %v5547 = vadd.f32 %v5490, %v5530
      %v5548 = vadd.f32 %v5491, %v5532
      %5557 = vrot.lane.b32.xlu0 %v5541, 96
      %v5558 = vpop.permute.xlu0 %5557
      %5559 = vrot.lane.b32.xlu0 %v5542, 96
      %v5560 = vpop.permute.xlu0 %5559
      %5561 = vrot.lane.b32.xlu0 %v5543, 96
      %v5562 = vpop.permute.xlu0 %5561
      %5563 = vrot.lane.b32.xlu0 %v5544, 96
      %v5564 = vpop.permute.xlu0 %5563
      %5565 = vrot.lane.b32.xlu0 %v5545, 96
      %v5566 = vpop.permute.xlu0 %5565
      %5567 = vrot.lane.b32.xlu0 %v5546, 96
      %v5568 = vpop.permute.xlu0 %5567
      %5569 = vrot.lane.b32.xlu0 %v5547, 96
      %v5570 = vpop.permute.xlu0 %5569
      %5571 = vrot.lane.b32.xlu0 %v5548, 96
      %v5572 = vpop.permute.xlu0 %5571
      %s5581 = scalar_lea.vmem %s359, 128
      %5582 = vst.msk [vmem:[%s5581] sm:$0xff] %vm2311, %v5558
      %5583 = vst.msk [vmem:[%s5581 + $0x8] sm:$0xf] %vm458, %v5560
      %5584 = vst.msk [vmem:[%s5581 + $0x10] sm:$0xff] %vm2311, %v5562
      %5585 = vst.msk [vmem:[%s5581 + $0x18] sm:$0xf] %vm458, %v5564
      %5586 = vst.msk [vmem:[%s5581 + $0x20] sm:$0xff] %vm2311, %v5566
      %5587 = vst.msk [vmem:[%s5581 + $0x28] sm:$0xf] %vm458, %v5568
      %5588 = vst.msk [vmem:[%s5581 + $0x30] sm:$0xff] %vm2311, %v5570
      %5589 = vst.msk [vmem:[%s5581 + $0x38] sm:$0xf] %vm458, %v5572
      %p5590 = scmp.lt.s32.totalorder %s21, 1
      %s5591 = scalar_select %p5590, %s21, 1
      %s5592 = smul.addr %s5591, 24
      %s5593 = smul.addr %s5592, 8
      %s5594 = scalar_lea.vmem %s10, %s5593
      // Predicated region
      $region61: #{tpu_custom_call.1} parent=59 // pred_check
        %p5595 = pneg %p254
      $region62: #{tpu_custom_call.1} parent=59 // pred_check_branch
        %5597 = sbr.rel (%p5595) target = $region64
      $region63: #{tpu_custom_call.1} parent=59 // pred_region
        _
      $region64: #{tpu_custom_call.1} parent=59 // pred_fallthru
        _
    $region60: #{tpu_custom_call.1} parent=5 // pred_fallthru
      _
    %p5598 = scmp.le.s32.totalorder 2, %s16
    // Predicated region
    $region65: #{tpu_custom_call.1} parent=5 // pred_check
      %p5599 = pneg %p5598
    $region66: #{tpu_custom_call.1} parent=5 // pred_check_branch
      %5601 = sbr.rel (%p5599) target = $region68
    $region67: #{tpu_custom_call.1} parent=5 // pred_region
      %s5602 = ssub.s32 %s16, 2
      // Predicated region
      $region69: #{tpu_custom_call.1} parent=67 // pred_check
        %p5603 = pneg %p260
      $region70: #{tpu_custom_call.1} parent=67 // pred_check_branch
        %5605 = sbr.rel (%p5603) target = $region72
      $region71: #{tpu_custom_call.1} parent=67 // pred_region
        %p5606 = scmp.lt.s32.totalorder %s22, 1
        %s5607 = scalar_select %p5606, %s22, 1
        %s5608 = smul.addr %s5607, 24
        %s5609 = smul.addr %s5608, 8
        %s5610 = scalar_lea.vmem %s10, %s5609
      $region72: #{tpu_custom_call.1} parent=67 // pred_fallthru
        _
    $region68: #{tpu_custom_call.1} parent=5 // pred_fallthru
      _
  $region6: #{tpu_custom_call.1} parent=0 // loop_footer
    %s20 = sadd.s32 1, %s16
  $region7: #{tpu_custom_call.1} parent=0 // loop_footer_branch
    %15 = sbr.rel target = $region3
  $region8: #{tpu_custom_call.1} parent=0 // loop_exit
    _

</llo_original>
